<compile_context>
chip_gen: v7x
topology: tpu7x:2x2x1
jax: 0.10.0
libtpu: 0.0.40
codegen_flags: <defaults>
</compile_context>

<pallas_src>
import functools

import jax
import jax.numpy as jnp
from jax import lax
from jax.experimental import pallas as pl
from jax.experimental.pallas import tpu as pltpu

POSTERIOR_MU_INIT = 0.0
POSTERIOR_RHO_INIT = -2.0
PRIOR_MU = 0.0
PRIOR_SIGMA = 1.0
BN_EPS = 1e-5
CPAD = 128  # every channel axis zero-padded to one full lane register -> lane-dense

_VMEM = pl.BlockSpec(memory_space=pltpu.MemorySpace.VMEM)


# ---------------------------------------------------------------------------
# The fused forward kernel (stem + all BasicBlocks + global average pool)
# ---------------------------------------------------------------------------
def _resnet_kernel(x_ref, w_ref, g_ref, b_ref, o_ref, ds_scr, *,
                   batch, length, block_cfg):
    """x_ref:  (B, L, 128) bf16       channels-last input, lanes >= C_in are zero
       w_ref:  (P, 3, 128, 128) bf16  conv weights (tap, c_in, c_out), zero padded
       g_ref:  (P, 1, 128) f32        BN gamma (zero on padded lanes)
       b_ref:  (P, 1, 128) f32        BN beta
       o_ref:  (B, 128) f32           globally averaged features
       ds_scr: (B*L, 128) f32         scratch used only for stride-2 row subsampling
    Activations live as flat (B*l, 128) f32 values in vregs/VMEM; only the pooled
    features are written back to HBM."""
    f32, bf16 = jnp.float32, jnp.bfloat16

    def conv3_s1(act, w_idx, l):
        # k=3 / pad=1 / stride=1 conv of a flat (B*l, 128) f32 activation.
        # prev/next taps come from XLU sublane rolls (no padded-scratch copy, no per-tap
        # relayout); per-sample boundary rows are zeroed with an iota mask; taps are
        # cast to bf16 only at the MXU boundary, accumulation is f32.
        rows = act.shape[0]
        pos = lax.broadcasted_iota(jnp.int32, (rows, 1), 0) % l
        not_first = (pos != 0).astype(f32)
        not_last = (pos != l - 1).astype(f32)
        t_prev = (pltpu.roll(act, 1, 0) * not_first).astype(bf16)
        t_mid = act.astype(bf16)
        t_next = (pltpu.roll(act, rows - 1, 0) * not_last).astype(bf16)  # == roll by -1
        acc = jnp.dot(t_prev, w_ref[w_idx, 0], preferred_element_type=f32)
        acc = acc + jnp.dot(t_mid, w_ref[w_idx, 1], preferred_element_type=f32)
        acc = acc + jnp.dot(t_next, w_ref[w_idx, 2], preferred_element_type=f32)
        return acc

    def bn(y, p_idx):
        # Two-pass (subtract-mean) variance for numerical robustness; padded lanes have
        # gamma == 0 so they stay exactly zero.
        inv_n = 1.0 / float(y.shape[0])
        mean = jnp.sum(y, axis=0, keepdims=True) * inv_n
        d = y - mean
        var = jnp.sum(d * d, axis=0, keepdims=True) * inv_n
        scale = g_ref[p_idx] * lax.rsqrt(var + BN_EPS)
        return d * scale + b_ref[p_idx]

    def every_other_row(y, rows_out):
        # stride-2 length subsample: write only the real rows once, read back strided.
        ds_scr[pl.ds(0, y.shape[0]), :] = y
        return ds_scr[pl.ds(0, rows_out, 2), :]

    # ---- stem: conv1 -> bn1 -> relu -----------------------------------------------
    l_cur = length
    rows = batch * l_cur
    act = x_ref[...].reshape(rows, CPAD).astype(f32)
    act = jnp.maximum(bn(conv3_s1(act, 0, l_cur), 0), 0.0)

    # ---- BasicBlocks (statically unrolled; every intermediate stays on chip) --------
    p_idx = 1
    for stride, in_planes, planes in block_cfg:
        l_out = (l_cur - 1) // stride + 1
        rows_out = batch * l_out
        x_in = act

        # conv1 (stride folded in as an even-row subsample of the s=1 conv) -> bn1 -> relu
        y1 = conv3_s1(x_in, p_idx, l_cur)
        if stride != 1:
            y1 = every_other_row(y1, rows_out)
        h = jnp.maximum(bn(y1, p_idx), 0.0)

        # conv2 -> bn2 (h never leaves VMEM/vregs)
        y2 = bn(conv3_s1(h, p_idx + 1, l_out), p_idx + 1)

        # option-'A' shortcut: stride-2 row subsample + zero-padded channel shift.
        # Real input channels occupy lanes [0, in_planes), so a lane roll by planes//4
        # is exactly the zero channel padding (the wrapped-around lanes are already 0).
        res = x_in
        if stride != 1:
            res = every_other_row(x_in, rows_out)
        if in_planes != planes:
            res = pltpu.roll(res, planes // 4, 1)

        act = jnp.maximum(y2 + res, 0.0)
        l_cur, rows, p_idx = l_out, rows_out, p_idx + 2

    # ---- fused global average pool over L: only (B, 128) leaves the chip ------------
    o_ref[...] = jnp.mean(act.reshape(batch, l_cur, CPAD), axis=1)


# ---------------------------------------------------------------------------
# Variational weight sampling + parameter packing (lane-padded layouts)
# ---------------------------------------------------------------------------
def sample_variational_conv1d(key, c_out, c_in, ksize=3):
    """Reparameterized weight sample + Gaussian KL for Conv1dVariational (bias=False)."""
    k_mu, k_rho, k_eps = jax.random.split(key, 3)
    shape = (c_out, c_in, ksize)
    mu = POSTERIOR_MU_INIT + 0.1 * jax.random.normal(k_mu, shape, jnp.float32)
    rho = POSTERIOR_RHO_INIT + 0.1 * jax.random.normal(k_rho, shape, jnp.float32)
    eps = jax.random.normal(k_eps, shape, jnp.float32)
    sigma = jnp.log1p(jnp.exp(rho))                       # softplus(rho)
    weight = mu + sigma * eps                             # reparameterized sample
    kl = jnp.sum(jnp.log(PRIOR_SIGMA) - jnp.log(sigma)
                 + (sigma ** 2 + (mu - PRIOR_MU) ** 2) / (2.0 * PRIOR_SIGMA ** 2) - 0.5)
    # (Cout, Cin, K) -> (K, 128, 128) bf16, zero padded: padded input lanes contribute
    # nothing and padded output lanes stay exactly zero.
    w_pad = jnp.zeros((ksize, CPAD, CPAD), jnp.float32)
    w_pad = w_pad.at[:, :c_in, :c_out].set(jnp.transpose(weight, (2, 1, 0)))
    return {"w": w_pad.astype(jnp.bfloat16), "kl": kl}


def _bn_params(c):
    gamma = jnp.zeros((1, CPAD), jnp.float32).at[:, :c].set(1.0)
    beta = jnp.zeros((1, CPAD), jnp.float32)
    return {"gamma": gamma, "beta": beta}


def init_resnet_params(key, num_blocks=(1, 1, 1), in_channels=1, first_dim=16):
    n_keys = 1 + 2 * sum(num_blocks)
    keys = iter(jax.random.split(key, n_keys))
    params = {
        "conv1": sample_variational_conv1d(next(keys), first_dim, in_channels),
        "bn1": _bn_params(first_dim),
        "layers": [],
        "first_dim": first_dim,
    }
    in_planes = first_dim
    for planes, nb, first_stride in zip(
            (first_dim, 2 * first_dim, 4 * first_dim), num_blocks, (1, 2, 2)):
        blocks = []
        for s in [first_stride] + [1] * (nb - 1):
            blocks.append({
                "stride": s,
                "planes": planes,
                "in_planes": in_planes,
                "conv1": sample_variational_conv1d(next(keys), planes, in_planes),
                "bn1": _bn_params(planes),
                "conv2": sample_variational_conv1d(next(keys), planes, planes),
                "bn2": _bn_params(planes),
            })
            in_planes = planes
        params["layers"].append(blocks)
    return params


# ---------------------------------------------------------------------------
# Forward pass (single fused pallas_call)
# ---------------------------------------------------------------------------
def resnet_forward(params, x_ncl):
    """x_ncl: PyTorch-convention (B, C_in, L). Returns (features (B, 4*first_dim), kl_sum)."""
    b, c_in, length = x_ncl.shape
    first_dim = params["first_dim"]

    # channels-last, zero lane-padded to 128 lanes, bf16 activations in HBM
    x = jnp.transpose(x_ncl, (0, 2, 1)).astype(jnp.float32)
    x = jnp.pad(x, ((0, 0), (0, 0), (0, CPAD - c_in))).astype(jnp.bfloat16)

    # Pack every conv weight / BN param so the whole forward is ONE pallas_call.
    convs, bns, block_cfg = [params["conv1"]], [params["bn1"]], []
    for blocks in params["layers"]:
        for blk in blocks:
            block_cfg.append((blk["stride"], blk["in_planes"], blk["planes"]))
            convs += [blk["conv1"], blk["conv2"]]
            bns += [blk["bn1"], blk["bn2"]]
    l_chk = length
    for stride, _, _ in block_cfg:
        if stride != 1:
            assert l_chk % 2 == 0, "stride-2 blocks need an even length"
        l_chk = (l_chk - 1) // stride + 1

    w_all = jnp.stack([c["w"] for c in convs])                    # (P, 3, 128, 128) bf16
    g_all = jnp.stack([p["gamma"] for p in bns])                  # (P, 1, 128) f32
    b_all = jnp.stack([p["beta"] for p in bns])                   # (P, 1, 128) f32

    kernel = functools.partial(_resnet_kernel, batch=b, length=length,
                               block_cfg=tuple(block_cfg))

    # Explicit VMEM budget = real operand + scratch footprint + slack; well under the
    # 16/32 MiB scoped defaults and portable to v7x's 64 MiB physical VMEM.
    vmem_bytes = (int(x.size) * 2 + int(w_all.size) * 2
                  + (int(g_all.size) + int(b_all.size)) * 4
                  + b * CPAD * 4 + b * length * CPAD * 4)
    pooled = pl.pallas_call(
        kernel,
        out_shape=jax.ShapeDtypeStruct((b, CPAD), jnp.float32),
        in_specs=[_VMEM] * 4,
        out_specs=_VMEM,
        scratch_shapes=[pltpu.VMEM((b * length, CPAD), jnp.float32)],
        compiler_params=pltpu.CompilerParams(vmem_limit_bytes=vmem_bytes + (8 << 20)),
    )(x, w_all, g_all, b_all)

    feats = pooled[:, :4 * first_dim]            # drop lane padding -> (B, 4*first_dim)

    # KL: matches the reference forward exactly -- it overwrites `kl` inside each layer's
    # loop and adds it once afterwards, so only conv1's KL plus each layer's LAST block's
    # (conv1 + conv2) KL contribute to kl_sum.
    kl_sum = params["conv1"]["kl"]
    for blocks in params["layers"]:
        kl_sum = kl_sum + blocks[-1]["conv1"]["kl"] + blocks[-1]["conv2"]["kl"]
    return feats, kl_sum


# ---------------------------------------------------------------------------
# Pure-JAX/XLA reference (same bf16 rounding points) for in-script validation
# ---------------------------------------------------------------------------
def _reference_forward(params, x_ncl):
    b, c_in, _ = x_ncl.shape
    first_dim = params["first_dim"]
    x = jnp.transpose(x_ncl, (0, 2, 1)).astype(jnp.float32)
    x = jnp.pad(x, ((0, 0), (0, 0), (0, CPAD - c_in)))
    x = x.astype(jnp.bfloat16).astype(jnp.float32)      # match bf16 HBM storage

    def conv3(h, w, stride):
        b_, l_, _ = h.shape
        l_out = (l_ - 1) // stride + 1
        hp = jnp.pad(h, ((0, 0), (1, 1), (0, 0)))
        acc = jnp.zeros((b_, l_out, CPAD), jnp.float32)
        for k in range(3):
            tap = hp[:, k:k + stride * (l_out - 1) + 1:stride, :]
            acc = acc + jnp.einsum("blc,cd->bld", tap.astype(jnp.bfloat16), w[k],
                                   preferred_element_type=jnp.float32)
        return acc

    def bn(y, p):
        mean = jnp.mean(y, axis=(0, 1), keepdims=True)
        var = jnp.mean((y - mean) ** 2, axis=(0, 1), keepdims=True)
        return ((y - mean) * (p["gamma"].reshape(1, 1, CPAD) * lax.rsqrt(var + BN_EPS))
                + p["beta"].reshape(1, 1, CPAD))

    out = jnp.maximum(bn(conv3(x, params["conv1"]["w"], 1), params["bn1"]), 0.0)
    for blocks in params["layers"]:
        for blk in blocks:
            h = jnp.maximum(bn(conv3(out, blk["conv1"]["w"], blk["stride"]), blk["bn1"]), 0.0)
            y = bn(conv3(h, blk["conv2"]["w"], 1), blk["bn2"])
            res = out[:, ::blk["stride"], :] if blk["stride"] != 1 else out
            if blk["in_planes"] != blk["planes"]:
                res = jnp.roll(res, blk["planes"] // 4, axis=-1)
            out = jnp.maximum(y + res, 0.0)
    return jnp.mean(out, axis=1)[:, :4 * first_dim]


if __name__ == "__main__":
    key = jax.random.PRNGKey(0)
    k_params, k_x = jax.random.split(key)
    params = init_resnet_params(k_params, num_blocks=(1, 1, 1),
                                in_channels=1, first_dim=16)
    # small input consistent with the Conv1d stem: (batch=2, in_channels=1, length=16)
    x = jax.random.normal(k_x, (2, 1, 16), jnp.float32)

    feats, kl_sum = resnet_forward(params, x)
    jax.block_until_ready((feats, kl_sum))
    assert feats.shape == (2, 64)
    assert kl_sum.shape == ()

    ref = _reference_forward(params, x)
    err = float(jnp.max(jnp.abs(feats - ref)))
    assert err < 2e-2, f"kernel/reference mismatch: max|diff|={err}"
    print("KERNEL_OK")
</pallas_src>

<mosaic_0001>
module attributes {stable_mosaic.version = 11 : i64} {
  func.func @_resnet_kernel(%arg0: memref<2x16x128xbf16, #tpu.memory_space<vmem>>, %arg1: memref<7x3x128x128xbf16, #tpu.memory_space<vmem>>, %arg2: memref<7x1x128xf32, #tpu.memory_space<vmem>>, %arg3: memref<7x1x128xf32, #tpu.memory_space<vmem>>, %arg4: memref<2x128xf32, #tpu.memory_space<vmem>>, %arg5: memref<32x128xf32, #tpu.memory_space<vmem>>) attributes {dimension_semantics = [], scalar_prefetch = 0 : i64, scratch_operands = 1 : i64, tpu.core_type = #tpu.core_type<tc>} {
    %c0 = arith.constant 0 : index
    %c0_0 = arith.constant 0 : index
    %c0_1 = arith.constant 0 : index
    %0 = vector.load %arg0[%c0, %c0_0, %c0_1] : memref<2x16x128xbf16, #tpu.memory_space<vmem>>, vector<2x16x128xbf16>
    %1 = vector.shape_cast %0 : vector<2x16x128xbf16> to vector<32x128xbf16>
    %2 = arith.extf %1 : vector<32x128xbf16> to vector<32x128xf32>
    %3 = tpu.iota {dimensions = array<i32: 0>} : vector<32x1xi32>
    %c16_i32 = arith.constant 16 : i32
    %c0_i32 = arith.constant 0 : i32
    %4 = arith.cmpi eq, %c16_i32, %c0_i32 : i32
    %c1_i32 = arith.constant 1 : i32
    %5 = arith.select %4, %c1_i32, %c16_i32 : i32
    %6 = vector.broadcast %5 : i32 to vector<32x1xi32>
    %7 = arith.remsi %3, %6 : vector<32x1xi32>
    %c0_i32_2 = arith.constant 0 : i32
    %8 = vector.broadcast %c0_i32_2 : i32 to vector<32x1xi32>
    %9 = arith.cmpi ne, %7, %8 : vector<32x1xi32>
    %c0_i32_3 = arith.constant 0 : i32
    %10 = vector.broadcast %c0_i32_3 : i32 to vector<32x1xi32>
    %11 = arith.cmpi slt, %7, %10 : vector<32x1xi32>
    %c0_i32_4 = arith.constant 0 : i32
    %12 = arith.cmpi slt, %5, %c0_i32_4 : i32
    %13 = vector.broadcast %12 : i1 to vector<32x1xi1>
    %14 = vector.broadcast %13 : vector<32x1xi1> to vector<32x1xi1>
    %15 = arith.xori %11, %14 : vector<32x1xi1>
    %16 = arith.andi %15, %9 : vector<32x1xi1>
    %17 = vector.broadcast %5 : i32 to vector<32x1xi32>
    %18 = arith.addi %7, %17 : vector<32x1xi32>
    %19 = arith.select %16, %18, %7 : vector<32x1xi1>, vector<32x1xi32>
    %c0_i32_5 = arith.constant 0 : i32
    %20 = vector.broadcast %c0_i32_5 : i32 to vector<32x1xi32>
    %21 = arith.cmpi ne, %19, %20 : vector<32x1xi32>
    %22 = arith.extui %21 : vector<32x1xi1> to vector<32x1xi32>
    %23 = arith.sitofp %22 : vector<32x1xi32> to vector<32x1xf32>
    %c15_i32 = arith.constant 15 : i32
    %24 = vector.broadcast %c15_i32 : i32 to vector<32x1xi32>
    %25 = arith.cmpi ne, %19, %24 : vector<32x1xi32>
    %26 = arith.extui %25 : vector<32x1xi1> to vector<32x1xi32>
    %27 = arith.sitofp %26 : vector<32x1xi32> to vector<32x1xf32>
    %c1_i32_6 = arith.constant 1 : i32
    %28 = tpu.dynamic_rotate %2 by %c1_i32_6 dim 0 : vector<32x128xf32>, i32 -> vector<32x128xf32>
    %29 = vector.broadcast %23 : vector<32x1xf32> to vector<32x128xf32>
    %30 = arith.mulf %28, %29 : vector<32x128xf32>
    %31 = arith.truncf %30 : vector<32x128xf32> to vector<32x128xbf16>
    %32 = arith.truncf %2 : vector<32x128xf32> to vector<32x128xbf16>
    %c31_i32 = arith.constant 31 : i32
    %33 = tpu.dynamic_rotate %2 by %c31_i32 dim 0 : vector<32x128xf32>, i32 -> vector<32x128xf32>
    %34 = vector.broadcast %27 : vector<32x1xf32> to vector<32x128xf32>
    %35 = arith.mulf %33, %34 : vector<32x128xf32>
    %36 = arith.truncf %35 : vector<32x128xf32> to vector<32x128xbf16>
    %c0_7 = arith.constant 0 : index
    %c0_8 = arith.constant 0 : index
    %c0_9 = arith.constant 0 : index
    %c0_10 = arith.constant 0 : index
    %37 = vector.load %arg1[%c0_7, %c0_8, %c0_9, %c0_10] : memref<7x3x128x128xbf16, #tpu.memory_space<vmem>>, vector<1x1x128x128xbf16>
    %38 = vector.shape_cast %37 : vector<1x1x128x128xbf16> to vector<128x128xbf16>
    %cst = arith.constant dense<0.000000e+00> : vector<32x128xf32>
    %39 = tpu.matmul %31, %38, %cst {dimension_numbers = #tpu.dot_dimension_numbers<[1], [0], [0], [1], [0, 0, 1, 1], [], []>} : vector<32x128xbf16>, vector<128x128xbf16>, vector<32x128xf32> -> vector<32x128xf32>
    %c0_11 = arith.constant 0 : index
    %c1 = arith.constant 1 : index
    %c0_12 = arith.constant 0 : index
    %c0_13 = arith.constant 0 : index
    %40 = vector.load %arg1[%c0_11, %c1, %c0_12, %c0_13] : memref<7x3x128x128xbf16, #tpu.memory_space<vmem>>, vector<1x1x128x128xbf16>
    %41 = vector.shape_cast %40 : vector<1x1x128x128xbf16> to vector<128x128xbf16>
    %cst_14 = arith.constant dense<0.000000e+00> : vector<32x128xf32>
    %42 = tpu.matmul %32, %41, %cst_14 {dimension_numbers = #tpu.dot_dimension_numbers<[1], [0], [0], [1], [0, 0, 1, 1], [], []>} : vector<32x128xbf16>, vector<128x128xbf16>, vector<32x128xf32> -> vector<32x128xf32>
    %43 = arith.addf %39, %42 : vector<32x128xf32>
    %c0_15 = arith.constant 0 : index
    %c2 = arith.constant 2 : index
    %c0_16 = arith.constant 0 : index
    %c0_17 = arith.constant 0 : index
    %44 = vector.load %arg1[%c0_15, %c2, %c0_16, %c0_17] : memref<7x3x128x128xbf16, #tpu.memory_space<vmem>>, vector<1x1x128x128xbf16>
    %45 = vector.shape_cast %44 : vector<1x1x128x128xbf16> to vector<128x128xbf16>
    %cst_18 = arith.constant dense<0.000000e+00> : vector<32x128xf32>
    %46 = tpu.matmul %36, %45, %cst_18 {dimension_numbers = #tpu.dot_dimension_numbers<[1], [0], [0], [1], [0, 0, 1, 1], [], []>} : vector<32x128xbf16>, vector<128x128xbf16>, vector<32x128xf32> -> vector<32x128xf32>
    %47 = arith.addf %43, %46 : vector<32x128xf32>
    %cst_19 = arith.constant dense<0.000000e+00> : vector<128xf32>
    %48 = vector.multi_reduction <add>, %47, %cst_19 [0] : vector<32x128xf32> to vector<128xf32>
    %49 = vector.shape_cast %48 : vector<128xf32> to vector<1x128xf32>
    %cst_20 = arith.constant 3.125000e-02 : f32
    %50 = vector.broadcast %cst_20 : f32 to vector<1x128xf32>
    %51 = arith.mulf %49, %50 : vector<1x128xf32>
    %52 = vector.broadcast %51 : vector<1x128xf32> to vector<32x128xf32>
    %53 = arith.subf %47, %52 : vector<32x128xf32>
    %54 = arith.mulf %53, %53 : vector<32x128xf32>
    %cst_21 = arith.constant dense<0.000000e+00> : vector<128xf32>
    %55 = vector.multi_reduction <add>, %54, %cst_21 [0] : vector<32x128xf32> to vector<128xf32>
    %56 = vector.shape_cast %55 : vector<128xf32> to vector<1x128xf32>
    %cst_22 = arith.constant 3.125000e-02 : f32
    %57 = vector.broadcast %cst_22 : f32 to vector<1x128xf32>
    %58 = arith.mulf %56, %57 : vector<1x128xf32>
    %c0_23 = arith.constant 0 : index
    %c0_24 = arith.constant 0 : index
    %c0_25 = arith.constant 0 : index
    %59 = vector.load %arg2[%c0_23, %c0_24, %c0_25] : memref<7x1x128xf32, #tpu.memory_space<vmem>>, vector<1x1x128xf32>
    %60 = vector.shape_cast %59 : vector<1x1x128xf32> to vector<1x128xf32>
    %cst_26 = arith.constant 9.99999974E-6 : f32
    %61 = vector.broadcast %cst_26 : f32 to vector<1x128xf32>
    %62 = arith.addf %58, %61 : vector<1x128xf32>
    %63 = math.rsqrt %62 : vector<1x128xf32>
    %64 = arith.mulf %60, %63 : vector<1x128xf32>
    %65 = vector.broadcast %64 : vector<1x128xf32> to vector<32x128xf32>
    %66 = arith.mulf %53, %65 : vector<32x128xf32>
    %c0_27 = arith.constant 0 : index
    %c0_28 = arith.constant 0 : index
    %c0_29 = arith.constant 0 : index
    %67 = vector.load %arg3[%c0_27, %c0_28, %c0_29] : memref<7x1x128xf32, #tpu.memory_space<vmem>>, vector<1x1x128xf32>
    %68 = vector.shape_cast %67 : vector<1x1x128xf32> to vector<1x128xf32>
    %69 = vector.broadcast %68 : vector<1x128xf32> to vector<32x128xf32>
    %70 = arith.addf %66, %69 : vector<32x128xf32>
    %cst_30 = arith.constant 0.000000e+00 : f32
    %71 = vector.broadcast %cst_30 : f32 to vector<32x128xf32>
    %72 = arith.maximumf %70, %71 : vector<32x128xf32>
    %73 = tpu.iota {dimensions = array<i32: 0>} : vector<32x1xi32>
    %c16_i32_31 = arith.constant 16 : i32
    %c0_i32_32 = arith.constant 0 : i32
    %74 = arith.cmpi eq, %c16_i32_31, %c0_i32_32 : i32
    %c1_i32_33 = arith.constant 1 : i32
    %75 = arith.select %74, %c1_i32_33, %c16_i32_31 : i32
    %76 = vector.broadcast %75 : i32 to vector<32x1xi32>
    %77 = arith.remsi %73, %76 : vector<32x1xi32>
    %c0_i32_34 = arith.constant 0 : i32
    %78 = vector.broadcast %c0_i32_34 : i32 to vector<32x1xi32>
    %79 = arith.cmpi ne, %77, %78 : vector<32x1xi32>
    %c0_i32_35 = arith.constant 0 : i32
    %80 = vector.broadcast %c0_i32_35 : i32 to vector<32x1xi32>
    %81 = arith.cmpi slt, %77, %80 : vector<32x1xi32>
    %c0_i32_36 = arith.constant 0 : i32
    %82 = arith.cmpi slt, %75, %c0_i32_36 : i32
    %83 = vector.broadcast %82 : i1 to vector<32x1xi1>
    %84 = vector.broadcast %83 : vector<32x1xi1> to vector<32x1xi1>
    %85 = arith.xori %81, %84 : vector<32x1xi1>
    %86 = arith.andi %85, %79 : vector<32x1xi1>
    %87 = vector.broadcast %75 : i32 to vector<32x1xi32>
    %88 = arith.addi %77, %87 : vector<32x1xi32>
    %89 = arith.select %86, %88, %77 : vector<32x1xi1>, vector<32x1xi32>
    %c0_i32_37 = arith.constant 0 : i32
    %90 = vector.broadcast %c0_i32_37 : i32 to vector<32x1xi32>
    %91 = arith.cmpi ne, %89, %90 : vector<32x1xi32>
    %92 = arith.extui %91 : vector<32x1xi1> to vector<32x1xi32>
    %93 = arith.sitofp %92 : vector<32x1xi32> to vector<32x1xf32>
    %c15_i32_38 = arith.constant 15 : i32
    %94 = vector.broadcast %c15_i32_38 : i32 to vector<32x1xi32>
    %95 = arith.cmpi ne, %89, %94 : vector<32x1xi32>
    %96 = arith.extui %95 : vector<32x1xi1> to vector<32x1xi32>
    %97 = arith.sitofp %96 : vector<32x1xi32> to vector<32x1xf32>
    %c1_i32_39 = arith.constant 1 : i32
    %98 = tpu.dynamic_rotate %72 by %c1_i32_39 dim 0 : vector<32x128xf32>, i32 -> vector<32x128xf32>
    %99 = vector.broadcast %93 : vector<32x1xf32> to vector<32x128xf32>
    %100 = arith.mulf %98, %99 : vector<32x128xf32>
    %101 = arith.truncf %100 : vector<32x128xf32> to vector<32x128xbf16>
    %102 = arith.truncf %72 : vector<32x128xf32> to vector<32x128xbf16>
    %c31_i32_40 = arith.constant 31 : i32
    %103 = tpu.dynamic_rotate %72 by %c31_i32_40 dim 0 : vector<32x128xf32>, i32 -> vector<32x128xf32>
    %104 = vector.broadcast %97 : vector<32x1xf32> to vector<32x128xf32>
    %105 = arith.mulf %103, %104 : vector<32x128xf32>
    %106 = arith.truncf %105 : vector<32x128xf32> to vector<32x128xbf16>
    %c1_41 = arith.constant 1 : index
    %c0_42 = arith.constant 0 : index
    %c0_43 = arith.constant 0 : index
    %c0_44 = arith.constant 0 : index
    %107 = vector.load %arg1[%c1_41, %c0_42, %c0_43, %c0_44] : memref<7x3x128x128xbf16, #tpu.memory_space<vmem>>, vector<1x1x128x128xbf16>
    %108 = vector.shape_cast %107 : vector<1x1x128x128xbf16> to vector<128x128xbf16>
    %cst_45 = arith.constant dense<0.000000e+00> : vector<32x128xf32>
    %109 = tpu.matmul %101, %108, %cst_45 {dimension_numbers = #tpu.dot_dimension_numbers<[1], [0], [0], [1], [0, 0, 1, 1], [], []>} : vector<32x128xbf16>, vector<128x128xbf16>, vector<32x128xf32> -> vector<32x128xf32>
    %c1_46 = arith.constant 1 : index
    %c1_47 = arith.constant 1 : index
    %c0_48 = arith.constant 0 : index
    %c0_49 = arith.constant 0 : index
    %110 = vector.load %arg1[%c1_46, %c1_47, %c0_48, %c0_49] : memref<7x3x128x128xbf16, #tpu.memory_space<vmem>>, vector<1x1x128x128xbf16>
    %111 = vector.shape_cast %110 : vector<1x1x128x128xbf16> to vector<128x128xbf16>
    %cst_50 = arith.constant dense<0.000000e+00> : vector<32x128xf32>
    %112 = tpu.matmul %102, %111, %cst_50 {dimension_numbers = #tpu.dot_dimension_numbers<[1], [0], [0], [1], [0, 0, 1, 1], [], []>} : vector<32x128xbf16>, vector<128x128xbf16>, vector<32x128xf32> -> vector<32x128xf32>
    %113 = arith.addf %109, %112 : vector<32x128xf32>
    %c1_51 = arith.constant 1 : index
    %c2_52 = arith.constant 2 : index
    %c0_53 = arith.constant 0 : index
    %c0_54 = arith.constant 0 : index
    %114 = vector.load %arg1[%c1_51, %c2_52, %c0_53, %c0_54] : memref<7x3x128x128xbf16, #tpu.memory_space<vmem>>, vector<1x1x128x128xbf16>
    %115 = vector.shape_cast %114 : vector<1x1x128x128xbf16> to vector<128x128xbf16>
    %cst_55 = arith.constant dense<0.000000e+00> : vector<32x128xf32>
    %116 = tpu.matmul %106, %115, %cst_55 {dimension_numbers = #tpu.dot_dimension_numbers<[1], [0], [0], [1], [0, 0, 1, 1], [], []>} : vector<32x128xbf16>, vector<128x128xbf16>, vector<32x128xf32> -> vector<32x128xf32>
    %117 = arith.addf %113, %116 : vector<32x128xf32>
    %cst_56 = arith.constant dense<0.000000e+00> : vector<128xf32>
    %118 = vector.multi_reduction <add>, %117, %cst_56 [0] : vector<32x128xf32> to vector<128xf32>
    %119 = vector.shape_cast %118 : vector<128xf32> to vector<1x128xf32>
    %cst_57 = arith.constant 3.125000e-02 : f32
    %120 = vector.broadcast %cst_57 : f32 to vector<1x128xf32>
    %121 = arith.mulf %119, %120 : vector<1x128xf32>
    %122 = vector.broadcast %121 : vector<1x128xf32> to vector<32x128xf32>
    %123 = arith.subf %117, %122 : vector<32x128xf32>
    %124 = arith.mulf %123, %123 : vector<32x128xf32>
    %cst_58 = arith.constant dense<0.000000e+00> : vector<128xf32>
    %125 = vector.multi_reduction <add>, %124, %cst_58 [0] : vector<32x128xf32> to vector<128xf32>
    %126 = vector.shape_cast %125 : vector<128xf32> to vector<1x128xf32>
    %cst_59 = arith.constant 3.125000e-02 : f32
    %127 = vector.broadcast %cst_59 : f32 to vector<1x128xf32>
    %128 = arith.mulf %126, %127 : vector<1x128xf32>
    %c1_60 = arith.constant 1 : index
    %c0_61 = arith.constant 0 : index
    %c0_62 = arith.constant 0 : index
    %129 = vector.load %arg2[%c1_60, %c0_61, %c0_62] : memref<7x1x128xf32, #tpu.memory_space<vmem>>, vector<1x1x128xf32>
    %130 = vector.shape_cast %129 : vector<1x1x128xf32> to vector<1x128xf32>
    %cst_63 = arith.constant 9.99999974E-6 : f32
    %131 = vector.broadcast %cst_63 : f32 to vector<1x128xf32>
    %132 = arith.addf %128, %131 : vector<1x128xf32>
    %133 = math.rsqrt %132 : vector<1x128xf32>
    %134 = arith.mulf %130, %133 : vector<1x128xf32>
    %135 = vector.broadcast %134 : vector<1x128xf32> to vector<32x128xf32>
    %136 = arith.mulf %123, %135 : vector<32x128xf32>
    %c1_64 = arith.constant 1 : index
    %c0_65 = arith.constant 0 : index
    %c0_66 = arith.constant 0 : index
    %137 = vector.load %arg3[%c1_64, %c0_65, %c0_66] : memref<7x1x128xf32, #tpu.memory_space<vmem>>, vector<1x1x128xf32>
    %138 = vector.shape_cast %137 : vector<1x1x128xf32> to vector<1x128xf32>
    %139 = vector.broadcast %138 : vector<1x128xf32> to vector<32x128xf32>
    %140 = arith.addf %136, %139 : vector<32x128xf32>
    %cst_67 = arith.constant 0.000000e+00 : f32
    %141 = vector.broadcast %cst_67 : f32 to vector<32x128xf32>
    %142 = arith.maximumf %140, %141 : vector<32x128xf32>
    %143 = tpu.iota {dimensions = array<i32: 0>} : vector<32x1xi32>
    %c16_i32_68 = arith.constant 16 : i32
    %c0_i32_69 = arith.constant 0 : i32
    %144 = arith.cmpi eq, %c16_i32_68, %c0_i32_69 : i32
    %c1_i32_70 = arith.constant 1 : i32
    %145 = arith.select %144, %c1_i32_70, %c16_i32_68 : i32
    %146 = vector.broadcast %145 : i32 to vector<32x1xi32>
    %147 = arith.remsi %143, %146 : vector<32x1xi32>
    %c0_i32_71 = arith.constant 0 : i32
    %148 = vector.broadcast %c0_i32_71 : i32 to vector<32x1xi32>
    %149 = arith.cmpi ne, %147, %148 : vector<32x1xi32>
    %c0_i32_72 = arith.constant 0 : i32
    %150 = vector.broadcast %c0_i32_72 : i32 to vector<32x1xi32>
    %151 = arith.cmpi slt, %147, %150 : vector<32x1xi32>
    %c0_i32_73 = arith.constant 0 : i32
    %152 = arith.cmpi slt, %145, %c0_i32_73 : i32
    %153 = vector.broadcast %152 : i1 to vector<32x1xi1>
    %154 = vector.broadcast %153 : vector<32x1xi1> to vector<32x1xi1>
    %155 = arith.xori %151, %154 : vector<32x1xi1>
    %156 = arith.andi %155, %149 : vector<32x1xi1>
    %157 = vector.broadcast %145 : i32 to vector<32x1xi32>
    %158 = arith.addi %147, %157 : vector<32x1xi32>
    %159 = arith.select %156, %158, %147 : vector<32x1xi1>, vector<32x1xi32>
    %c0_i32_74 = arith.constant 0 : i32
    %160 = vector.broadcast %c0_i32_74 : i32 to vector<32x1xi32>
    %161 = arith.cmpi ne, %159, %160 : vector<32x1xi32>
    %162 = arith.extui %161 : vector<32x1xi1> to vector<32x1xi32>
    %163 = arith.sitofp %162 : vector<32x1xi32> to vector<32x1xf32>
    %c15_i32_75 = arith.constant 15 : i32
    %164 = vector.broadcast %c15_i32_75 : i32 to vector<32x1xi32>
    %165 = arith.cmpi ne, %159, %164 : vector<32x1xi32>
    %166 = arith.extui %165 : vector<32x1xi1> to vector<32x1xi32>
    %167 = arith.sitofp %166 : vector<32x1xi32> to vector<32x1xf32>
    %c1_i32_76 = arith.constant 1 : i32
    %168 = tpu.dynamic_rotate %142 by %c1_i32_76 dim 0 : vector<32x128xf32>, i32 -> vector<32x128xf32>
    %169 = vector.broadcast %163 : vector<32x1xf32> to vector<32x128xf32>
    %170 = arith.mulf %168, %169 : vector<32x128xf32>
    %171 = arith.truncf %170 : vector<32x128xf32> to vector<32x128xbf16>
    %172 = arith.truncf %142 : vector<32x128xf32> to vector<32x128xbf16>
    %c31_i32_77 = arith.constant 31 : i32
    %173 = tpu.dynamic_rotate %142 by %c31_i32_77 dim 0 : vector<32x128xf32>, i32 -> vector<32x128xf32>
    %174 = vector.broadcast %167 : vector<32x1xf32> to vector<32x128xf32>
    %175 = arith.mulf %173, %174 : vector<32x128xf32>
    %176 = arith.truncf %175 : vector<32x128xf32> to vector<32x128xbf16>
    %c2_78 = arith.constant 2 : index
    %c0_79 = arith.constant 0 : index
    %c0_80 = arith.constant 0 : index
    %c0_81 = arith.constant 0 : index
    %177 = vector.load %arg1[%c2_78, %c0_79, %c0_80, %c0_81] : memref<7x3x128x128xbf16, #tpu.memory_space<vmem>>, vector<1x1x128x128xbf16>
    %178 = vector.shape_cast %177 : vector<1x1x128x128xbf16> to vector<128x128xbf16>
    %cst_82 = arith.constant dense<0.000000e+00> : vector<32x128xf32>
    %179 = tpu.matmul %171, %178, %cst_82 {dimension_numbers = #tpu.dot_dimension_numbers<[1], [0], [0], [1], [0, 0, 1, 1], [], []>} : vector<32x128xbf16>, vector<128x128xbf16>, vector<32x128xf32> -> vector<32x128xf32>
    %c2_83 = arith.constant 2 : index
    %c1_84 = arith.constant 1 : index
    %c0_85 = arith.constant 0 : index
    %c0_86 = arith.constant 0 : index
    %180 = vector.load %arg1[%c2_83, %c1_84, %c0_85, %c0_86] : memref<7x3x128x128xbf16, #tpu.memory_space<vmem>>, vector<1x1x128x128xbf16>
    %181 = vector.shape_cast %180 : vector<1x1x128x128xbf16> to vector<128x128xbf16>
    %cst_87 = arith.constant dense<0.000000e+00> : vector<32x128xf32>
    %182 = tpu.matmul %172, %181, %cst_87 {dimension_numbers = #tpu.dot_dimension_numbers<[1], [0], [0], [1], [0, 0, 1, 1], [], []>} : vector<32x128xbf16>, vector<128x128xbf16>, vector<32x128xf32> -> vector<32x128xf32>
    %183 = arith.addf %179, %182 : vector<32x128xf32>
    %c2_88 = arith.constant 2 : index
    %c2_89 = arith.constant 2 : index
    %c0_90 = arith.constant 0 : index
    %c0_91 = arith.constant 0 : index
    %184 = vector.load %arg1[%c2_88, %c2_89, %c0_90, %c0_91] : memref<7x3x128x128xbf16, #tpu.memory_space<vmem>>, vector<1x1x128x128xbf16>
    %185 = vector.shape_cast %184 : vector<1x1x128x128xbf16> to vector<128x128xbf16>
    %cst_92 = arith.constant dense<0.000000e+00> : vector<32x128xf32>
    %186 = tpu.matmul %176, %185, %cst_92 {dimension_numbers = #tpu.dot_dimension_numbers<[1], [0], [0], [1], [0, 0, 1, 1], [], []>} : vector<32x128xbf16>, vector<128x128xbf16>, vector<32x128xf32> -> vector<32x128xf32>
    %187 = arith.addf %183, %186 : vector<32x128xf32>
    %cst_93 = arith.constant dense<0.000000e+00> : vector<128xf32>
    %188 = vector.multi_reduction <add>, %187, %cst_93 [0] : vector<32x128xf32> to vector<128xf32>
    %189 = vector.shape_cast %188 : vector<128xf32> to vector<1x128xf32>
    %cst_94 = arith.constant 3.125000e-02 : f32
    %190 = vector.broadcast %cst_94 : f32 to vector<1x128xf32>
    %191 = arith.mulf %189, %190 : vector<1x128xf32>
    %192 = vector.broadcast %191 : vector<1x128xf32> to vector<32x128xf32>
    %193 = arith.subf %187, %192 : vector<32x128xf32>
    %194 = arith.mulf %193, %193 : vector<32x128xf32>
    %cst_95 = arith.constant dense<0.000000e+00> : vector<128xf32>
    %195 = vector.multi_reduction <add>, %194, %cst_95 [0] : vector<32x128xf32> to vector<128xf32>
    %196 = vector.shape_cast %195 : vector<128xf32> to vector<1x128xf32>
    %cst_96 = arith.constant 3.125000e-02 : f32
    %197 = vector.broadcast %cst_96 : f32 to vector<1x128xf32>
    %198 = arith.mulf %196, %197 : vector<1x128xf32>
    %c2_97 = arith.constant 2 : index
    %c0_98 = arith.constant 0 : index
    %c0_99 = arith.constant 0 : index
    %199 = vector.load %arg2[%c2_97, %c0_98, %c0_99] : memref<7x1x128xf32, #tpu.memory_space<vmem>>, vector<1x1x128xf32>
    %200 = vector.shape_cast %199 : vector<1x1x128xf32> to vector<1x128xf32>
    %cst_100 = arith.constant 9.99999974E-6 : f32
    %201 = vector.broadcast %cst_100 : f32 to vector<1x128xf32>
    %202 = arith.addf %198, %201 : vector<1x128xf32>
    %203 = math.rsqrt %202 : vector<1x128xf32>
    %204 = arith.mulf %200, %203 : vector<1x128xf32>
    %205 = vector.broadcast %204 : vector<1x128xf32> to vector<32x128xf32>
    %206 = arith.mulf %193, %205 : vector<32x128xf32>
    %c2_101 = arith.constant 2 : index
    %c0_102 = arith.constant 0 : index
    %c0_103 = arith.constant 0 : index
    %207 = vector.load %arg3[%c2_101, %c0_102, %c0_103] : memref<7x1x128xf32, #tpu.memory_space<vmem>>, vector<1x1x128xf32>
    %208 = vector.shape_cast %207 : vector<1x1x128xf32> to vector<1x128xf32>
    %209 = vector.broadcast %208 : vector<1x128xf32> to vector<32x128xf32>
    %210 = arith.addf %206, %209 : vector<32x128xf32>
    %211 = arith.addf %210, %72 : vector<32x128xf32>
    %cst_104 = arith.constant 0.000000e+00 : f32
    %212 = vector.broadcast %cst_104 : f32 to vector<32x128xf32>
    %213 = arith.maximumf %211, %212 : vector<32x128xf32>
    %214 = tpu.iota {dimensions = array<i32: 0>} : vector<32x1xi32>
    %c16_i32_105 = arith.constant 16 : i32
    %c0_i32_106 = arith.constant 0 : i32
    %215 = arith.cmpi eq, %c16_i32_105, %c0_i32_106 : i32
    %c1_i32_107 = arith.constant 1 : i32
    %216 = arith.select %215, %c1_i32_107, %c16_i32_105 : i32
    %217 = vector.broadcast %216 : i32 to vector<32x1xi32>
    %218 = arith.remsi %214, %217 : vector<32x1xi32>
    %c0_i32_108 = arith.constant 0 : i32
    %219 = vector.broadcast %c0_i32_108 : i32 to vector<32x1xi32>
    %220 = arith.cmpi ne, %218, %219 : vector<32x1xi32>
    %c0_i32_109 = arith.constant 0 : i32
    %221 = vector.broadcast %c0_i32_109 : i32 to vector<32x1xi32>
    %222 = arith.cmpi slt, %218, %221 : vector<32x1xi32>
    %c0_i32_110 = arith.constant 0 : i32
    %223 = arith.cmpi slt, %216, %c0_i32_110 : i32
    %224 = vector.broadcast %223 : i1 to vector<32x1xi1>
    %225 = vector.broadcast %224 : vector<32x1xi1> to vector<32x1xi1>
    %226 = arith.xori %222, %225 : vector<32x1xi1>
    %227 = arith.andi %226, %220 : vector<32x1xi1>
    %228 = vector.broadcast %216 : i32 to vector<32x1xi32>
    %229 = arith.addi %218, %228 : vector<32x1xi32>
    %230 = arith.select %227, %229, %218 : vector<32x1xi1>, vector<32x1xi32>
    %c0_i32_111 = arith.constant 0 : i32
    %231 = vector.broadcast %c0_i32_111 : i32 to vector<32x1xi32>
    %232 = arith.cmpi ne, %230, %231 : vector<32x1xi32>
    %233 = arith.extui %232 : vector<32x1xi1> to vector<32x1xi32>
    %234 = arith.sitofp %233 : vector<32x1xi32> to vector<32x1xf32>
    %c15_i32_112 = arith.constant 15 : i32
    %235 = vector.broadcast %c15_i32_112 : i32 to vector<32x1xi32>
    %236 = arith.cmpi ne, %230, %235 : vector<32x1xi32>
    %237 = arith.extui %236 : vector<32x1xi1> to vector<32x1xi32>
    %238 = arith.sitofp %237 : vector<32x1xi32> to vector<32x1xf32>
    %c1_i32_113 = arith.constant 1 : i32
    %239 = tpu.dynamic_rotate %213 by %c1_i32_113 dim 0 : vector<32x128xf32>, i32 -> vector<32x128xf32>
    %240 = vector.broadcast %234 : vector<32x1xf32> to vector<32x128xf32>
    %241 = arith.mulf %239, %240 : vector<32x128xf32>
    %242 = arith.truncf %241 : vector<32x128xf32> to vector<32x128xbf16>
    %243 = arith.truncf %213 : vector<32x128xf32> to vector<32x128xbf16>
    %c31_i32_114 = arith.constant 31 : i32
    %244 = tpu.dynamic_rotate %213 by %c31_i32_114 dim 0 : vector<32x128xf32>, i32 -> vector<32x128xf32>
    %245 = vector.broadcast %238 : vector<32x1xf32> to vector<32x128xf32>
    %246 = arith.mulf %244, %245 : vector<32x128xf32>
    %247 = arith.truncf %246 : vector<32x128xf32> to vector<32x128xbf16>
    %c3 = arith.constant 3 : index
    %c0_115 = arith.constant 0 : index
    %c0_116 = arith.constant 0 : index
    %c0_117 = arith.constant 0 : index
    %248 = vector.load %arg1[%c3, %c0_115, %c0_116, %c0_117] : memref<7x3x128x128xbf16, #tpu.memory_space<vmem>>, vector<1x1x128x128xbf16>
    %249 = vector.shape_cast %248 : vector<1x1x128x128xbf16> to vector<128x128xbf16>
    %cst_118 = arith.constant dense<0.000000e+00> : vector<32x128xf32>
    %250 = tpu.matmul %242, %249, %cst_118 {dimension_numbers = #tpu.dot_dimension_numbers<[1], [0], [0], [1], [0, 0, 1, 1], [], []>} : vector<32x128xbf16>, vector<128x128xbf16>, vector<32x128xf32> -> vector<32x128xf32>
    %c3_119 = arith.constant 3 : index
    %c1_120 = arith.constant 1 : index
    %c0_121 = arith.constant 0 : index
    %c0_122 = arith.constant 0 : index
    %251 = vector.load %arg1[%c3_119, %c1_120, %c0_121, %c0_122] : memref<7x3x128x128xbf16, #tpu.memory_space<vmem>>, vector<1x1x128x128xbf16>
    %252 = vector.shape_cast %251 : vector<1x1x128x128xbf16> to vector<128x128xbf16>
    %cst_123 = arith.constant dense<0.000000e+00> : vector<32x128xf32>
    %253 = tpu.matmul %243, %252, %cst_123 {dimension_numbers = #tpu.dot_dimension_numbers<[1], [0], [0], [1], [0, 0, 1, 1], [], []>} : vector<32x128xbf16>, vector<128x128xbf16>, vector<32x128xf32> -> vector<32x128xf32>
    %254 = arith.addf %250, %253 : vector<32x128xf32>
    %c3_124 = arith.constant 3 : index
    %c2_125 = arith.constant 2 : index
    %c0_126 = arith.constant 0 : index
    %c0_127 = arith.constant 0 : index
    %255 = vector.load %arg1[%c3_124, %c2_125, %c0_126, %c0_127] : memref<7x3x128x128xbf16, #tpu.memory_space<vmem>>, vector<1x1x128x128xbf16>
    %256 = vector.shape_cast %255 : vector<1x1x128x128xbf16> to vector<128x128xbf16>
    %cst_128 = arith.constant dense<0.000000e+00> : vector<32x128xf32>
    %257 = tpu.matmul %247, %256, %cst_128 {dimension_numbers = #tpu.dot_dimension_numbers<[1], [0], [0], [1], [0, 0, 1, 1], [], []>} : vector<32x128xbf16>, vector<128x128xbf16>, vector<32x128xf32> -> vector<32x128xf32>
    %258 = arith.addf %254, %257 : vector<32x128xf32>
    %c0_129 = arith.constant 0 : index
    %c0_130 = arith.constant 0 : index
    %259 = vector.load %arg5[%c0_129, %c0_130] : memref<32x128xf32, #tpu.memory_space<vmem>>, vector<32x128xf32>
    tpu.vector_store %arg5[%c0_129, %c0_130], %258 {strides = array<i32>} : memref<32x128xf32, #tpu.memory_space<vmem>>, vector<32x128xf32>,
    %c0_131 = arith.constant 0 : index
    %c0_132 = arith.constant 0 : index
    %260 = tpu.strided_load %arg5[%c0_131, %c0_132] {strides = array<i32: 2, 1>} : memref<32x128xf32, #tpu.memory_space<vmem>>, vector<16x128xf32>
    %cst_133 = arith.constant dense<0.000000e+00> : vector<128xf32>
    %261 = vector.multi_reduction <add>, %260, %cst_133 [0] : vector<16x128xf32> to vector<128xf32>
    %262 = vector.shape_cast %261 : vector<128xf32> to vector<1x128xf32>
    %cst_134 = arith.constant 6.250000e-02 : f32
    %263 = vector.broadcast %cst_134 : f32 to vector<1x128xf32>
    %264 = arith.mulf %262, %263 : vector<1x128xf32>
    %265 = vector.broadcast %264 : vector<1x128xf32> to vector<16x128xf32>
    %266 = arith.subf %260, %265 : vector<16x128xf32>
    %267 = arith.mulf %266, %266 : vector<16x128xf32>
    %cst_135 = arith.constant dense<0.000000e+00> : vector<128xf32>
    %268 = vector.multi_reduction <add>, %267, %cst_135 [0] : vector<16x128xf32> to vector<128xf32>
    %269 = vector.shape_cast %268 : vector<128xf32> to vector<1x128xf32>
    %cst_136 = arith.constant 6.250000e-02 : f32
    %270 = vector.broadcast %cst_136 : f32 to vector<1x128xf32>
    %271 = arith.mulf %269, %270 : vector<1x128xf32>
    %c3_137 = arith.constant 3 : index
    %c0_138 = arith.constant 0 : index
    %c0_139 = arith.constant 0 : index
    %272 = vector.load %arg2[%c3_137, %c0_138, %c0_139] : memref<7x1x128xf32, #tpu.memory_space<vmem>>, vector<1x1x128xf32>
    %273 = vector.shape_cast %272 : vector<1x1x128xf32> to vector<1x128xf32>
    %cst_140 = arith.constant 9.99999974E-6 : f32
    %274 = vector.broadcast %cst_140 : f32 to vector<1x128xf32>
    %275 = arith.addf %271, %274 : vector<1x128xf32>
    %276 = math.rsqrt %275 : vector<1x128xf32>
    %277 = arith.mulf %273, %276 : vector<1x128xf32>
    %278 = vector.broadcast %277 : vector<1x128xf32> to vector<16x128xf32>
    %279 = arith.mulf %266, %278 : vector<16x128xf32>
    %c3_141 = arith.constant 3 : index
    %c0_142 = arith.constant 0 : index
    %c0_143 = arith.constant 0 : index
    %280 = vector.load %arg3[%c3_141, %c0_142, %c0_143] : memref<7x1x128xf32, #tpu.memory_space<vmem>>, vector<1x1x128xf32>
    %281 = vector.shape_cast %280 : vector<1x1x128xf32> to vector<1x128xf32>
    %282 = vector.broadcast %281 : vector<1x128xf32> to vector<16x128xf32>
    %283 = arith.addf %279, %282 : vector<16x128xf32>
    %cst_144 = arith.constant 0.000000e+00 : f32
    %284 = vector.broadcast %cst_144 : f32 to vector<16x128xf32>
    %285 = arith.maximumf %283, %284 : vector<16x128xf32>
    %286 = tpu.iota {dimensions = array<i32: 0>} : vector<16x1xi32>
    %c8_i32 = arith.constant 8 : i32
    %c0_i32_145 = arith.constant 0 : i32
    %287 = arith.cmpi eq, %c8_i32, %c0_i32_145 : i32
    %c1_i32_146 = arith.constant 1 : i32
    %288 = arith.select %287, %c1_i32_146, %c8_i32 : i32
    %289 = vector.broadcast %288 : i32 to vector<16x1xi32>
    %290 = arith.remsi %286, %289 : vector<16x1xi32>
    %c0_i32_147 = arith.constant 0 : i32
    %291 = vector.broadcast %c0_i32_147 : i32 to vector<16x1xi32>
    %292 = arith.cmpi ne, %290, %291 : vector<16x1xi32>
    %c0_i32_148 = arith.constant 0 : i32
    %293 = vector.broadcast %c0_i32_148 : i32 to vector<16x1xi32>
    %294 = arith.cmpi slt, %290, %293 : vector<16x1xi32>
    %c0_i32_149 = arith.constant 0 : i32
    %295 = arith.cmpi slt, %288, %c0_i32_149 : i32
    %296 = vector.broadcast %295 : i1 to vector<16x1xi1>
    %297 = vector.broadcast %296 : vector<16x1xi1> to vector<16x1xi1>
    %298 = arith.xori %294, %297 : vector<16x1xi1>
    %299 = arith.andi %298, %292 : vector<16x1xi1>
    %300 = vector.broadcast %288 : i32 to vector<16x1xi32>
    %301 = arith.addi %290, %300 : vector<16x1xi32>
    %302 = arith.select %299, %301, %290 : vector<16x1xi1>, vector<16x1xi32>
    %c0_i32_150 = arith.constant 0 : i32
    %303 = vector.broadcast %c0_i32_150 : i32 to vector<16x1xi32>
    %304 = arith.cmpi ne, %302, %303 : vector<16x1xi32>
    %305 = arith.extui %304 : vector<16x1xi1> to vector<16x1xi32>
    %306 = arith.sitofp %305 : vector<16x1xi32> to vector<16x1xf32>
    %c7_i32 = arith.constant 7 : i32
    %307 = vector.broadcast %c7_i32 : i32 to vector<16x1xi32>
    %308 = arith.cmpi ne, %302, %307 : vector<16x1xi32>
    %309 = arith.extui %308 : vector<16x1xi1> to vector<16x1xi32>
    %310 = arith.sitofp %309 : vector<16x1xi32> to vector<16x1xf32>
    %c1_i32_151 = arith.constant 1 : i32
    %311 = tpu.dynamic_rotate %285 by %c1_i32_151 dim 0 : vector<16x128xf32>, i32 -> vector<16x128xf32>
    %312 = vector.broadcast %306 : vector<16x1xf32> to vector<16x128xf32>
    %313 = arith.mulf %311, %312 : vector<16x128xf32>
    %314 = arith.truncf %313 : vector<16x128xf32> to vector<16x128xbf16>
    %315 = arith.truncf %285 : vector<16x128xf32> to vector<16x128xbf16>
    %c15_i32_152 = arith.constant 15 : i32
    %316 = tpu.dynamic_rotate %285 by %c15_i32_152 dim 0 : vector<16x128xf32>, i32 -> vector<16x128xf32>
    %317 = vector.broadcast %310 : vector<16x1xf32> to vector<16x128xf32>
    %318 = arith.mulf %316, %317 : vector<16x128xf32>
    %319 = arith.truncf %318 : vector<16x128xf32> to vector<16x128xbf16>
    %c4 = arith.constant 4 : index
    %c0_153 = arith.constant 0 : index
    %c0_154 = arith.constant 0 : index
    %c0_155 = arith.constant 0 : index
    %320 = vector.load %arg1[%c4, %c0_153, %c0_154, %c0_155] : memref<7x3x128x128xbf16, #tpu.memory_space<vmem>>, vector<1x1x128x128xbf16>
    %321 = vector.shape_cast %320 : vector<1x1x128x128xbf16> to vector<128x128xbf16>
    %cst_156 = arith.constant dense<0.000000e+00> : vector<16x128xf32>
    %322 = tpu.matmul %314, %321, %cst_156 {dimension_numbers = #tpu.dot_dimension_numbers<[1], [0], [0], [1], [0, 0, 1, 1], [], []>} : vector<16x128xbf16>, vector<128x128xbf16>, vector<16x128xf32> -> vector<16x128xf32>
    %c4_157 = arith.constant 4 : index
    %c1_158 = arith.constant 1 : index
    %c0_159 = arith.constant 0 : index
    %c0_160 = arith.constant 0 : index
    %323 = vector.load %arg1[%c4_157, %c1_158, %c0_159, %c0_160] : memref<7x3x128x128xbf16, #tpu.memory_space<vmem>>, vector<1x1x128x128xbf16>
    %324 = vector.shape_cast %323 : vector<1x1x128x128xbf16> to vector<128x128xbf16>
    %cst_161 = arith.constant dense<0.000000e+00> : vector<16x128xf32>
    %325 = tpu.matmul %315, %324, %cst_161 {dimension_numbers = #tpu.dot_dimension_numbers<[1], [0], [0], [1], [0, 0, 1, 1], [], []>} : vector<16x128xbf16>, vector<128x128xbf16>, vector<16x128xf32> -> vector<16x128xf32>
    %326 = arith.addf %322, %325 : vector<16x128xf32>
    %c4_162 = arith.constant 4 : index
    %c2_163 = arith.constant 2 : index
    %c0_164 = arith.constant 0 : index
    %c0_165 = arith.constant 0 : index
    %327 = vector.load %arg1[%c4_162, %c2_163, %c0_164, %c0_165] : memref<7x3x128x128xbf16, #tpu.memory_space<vmem>>, vector<1x1x128x128xbf16>
    %328 = vector.shape_cast %327 : vector<1x1x128x128xbf16> to vector<128x128xbf16>
    %cst_166 = arith.constant dense<0.000000e+00> : vector<16x128xf32>
    %329 = tpu.matmul %319, %328, %cst_166 {dimension_numbers = #tpu.dot_dimension_numbers<[1], [0], [0], [1], [0, 0, 1, 1], [], []>} : vector<16x128xbf16>, vector<128x128xbf16>, vector<16x128xf32> -> vector<16x128xf32>
    %330 = arith.addf %326, %329 : vector<16x128xf32>
    %cst_167 = arith.constant dense<0.000000e+00> : vector<128xf32>
    %331 = vector.multi_reduction <add>, %330, %cst_167 [0] : vector<16x128xf32> to vector<128xf32>
    %332 = vector.shape_cast %331 : vector<128xf32> to vector<1x128xf32>
    %cst_168 = arith.constant 6.250000e-02 : f32
    %333 = vector.broadcast %cst_168 : f32 to vector<1x128xf32>
    %334 = arith.mulf %332, %333 : vector<1x128xf32>
    %335 = vector.broadcast %334 : vector<1x128xf32> to vector<16x128xf32>
    %336 = arith.subf %330, %335 : vector<16x128xf32>
    %337 = arith.mulf %336, %336 : vector<16x128xf32>
    %cst_169 = arith.constant dense<0.000000e+00> : vector<128xf32>
    %338 = vector.multi_reduction <add>, %337, %cst_169 [0] : vector<16x128xf32> to vector<128xf32>
    %339 = vector.shape_cast %338 : vector<128xf32> to vector<1x128xf32>
    %cst_170 = arith.constant 6.250000e-02 : f32
    %340 = vector.broadcast %cst_170 : f32 to vector<1x128xf32>
    %341 = arith.mulf %339, %340 : vector<1x128xf32>
    %c4_171 = arith.constant 4 : index
    %c0_172 = arith.constant 0 : index
    %c0_173 = arith.constant 0 : index
    %342 = vector.load %arg2[%c4_171, %c0_172, %c0_173] : memref<7x1x128xf32, #tpu.memory_space<vmem>>, vector<1x1x128xf32>
    %343 = vector.shape_cast %342 : vector<1x1x128xf32> to vector<1x128xf32>
    %cst_174 = arith.constant 9.99999974E-6 : f32
    %344 = vector.broadcast %cst_174 : f32 to vector<1x128xf32>
    %345 = arith.addf %341, %344 : vector<1x128xf32>
    %346 = math.rsqrt %345 : vector<1x128xf32>
    %347 = arith.mulf %343, %346 : vector<1x128xf32>
    %348 = vector.broadcast %347 : vector<1x128xf32> to vector<16x128xf32>
    %349 = arith.mulf %336, %348 : vector<16x128xf32>
    %c4_175 = arith.constant 4 : index
    %c0_176 = arith.constant 0 : index
    %c0_177 = arith.constant 0 : index
    %350 = vector.load %arg3[%c4_175, %c0_176, %c0_177] : memref<7x1x128xf32, #tpu.memory_space<vmem>>, vector<1x1x128xf32>
    %351 = vector.shape_cast %350 : vector<1x1x128xf32> to vector<1x128xf32>
    %352 = vector.broadcast %351 : vector<1x128xf32> to vector<16x128xf32>
    %353 = arith.addf %349, %352 : vector<16x128xf32>
    %c0_178 = arith.constant 0 : index
    %c0_179 = arith.constant 0 : index
    %354 = vector.load %arg5[%c0_178, %c0_179] : memref<32x128xf32, #tpu.memory_space<vmem>>, vector<32x128xf32>
    tpu.vector_store %arg5[%c0_178, %c0_179], %213 {strides = array<i32>} : memref<32x128xf32, #tpu.memory_space<vmem>>, vector<32x128xf32>,
    %c0_180 = arith.constant 0 : index
    %c0_181 = arith.constant 0 : index
    %355 = tpu.strided_load %arg5[%c0_180, %c0_181] {strides = array<i32: 2, 1>} : memref<32x128xf32, #tpu.memory_space<vmem>>, vector<16x128xf32>
    %c8_i32_182 = arith.constant 8 : i32
    %356 = tpu.dynamic_rotate %355 by %c8_i32_182 dim 1 : vector<16x128xf32>, i32 -> vector<16x128xf32>
    %357 = arith.addf %353, %356 : vector<16x128xf32>
    %cst_183 = arith.constant 0.000000e+00 : f32
    %358 = vector.broadcast %cst_183 : f32 to vector<16x128xf32>
    %359 = arith.maximumf %357, %358 : vector<16x128xf32>
    %360 = tpu.iota {dimensions = array<i32: 0>} : vector<16x1xi32>
    %c8_i32_184 = arith.constant 8 : i32
    %c0_i32_185 = arith.constant 0 : i32
    %361 = arith.cmpi eq, %c8_i32_184, %c0_i32_185 : i32
    %c1_i32_186 = arith.constant 1 : i32
    %362 = arith.select %361, %c1_i32_186, %c8_i32_184 : i32
    %363 = vector.broadcast %362 : i32 to vector<16x1xi32>
    %364 = arith.remsi %360, %363 : vector<16x1xi32>
    %c0_i32_187 = arith.constant 0 : i32
    %365 = vector.broadcast %c0_i32_187 : i32 to vector<16x1xi32>
    %366 = arith.cmpi ne, %364, %365 : vector<16x1xi32>
    %c0_i32_188 = arith.constant 0 : i32
    %367 = vector.broadcast %c0_i32_188 : i32 to vector<16x1xi32>
    %368 = arith.cmpi slt, %364, %367 : vector<16x1xi32>
    %c0_i32_189 = arith.constant 0 : i32
    %369 = arith.cmpi slt, %362, %c0_i32_189 : i32
    %370 = vector.broadcast %369 : i1 to vector<16x1xi1>
    %371 = vector.broadcast %370 : vector<16x1xi1> to vector<16x1xi1>
    %372 = arith.xori %368, %371 : vector<16x1xi1>
    %373 = arith.andi %372, %366 : vector<16x1xi1>
    %374 = vector.broadcast %362 : i32 to vector<16x1xi32>
    %375 = arith.addi %364, %374 : vector<16x1xi32>
    %376 = arith.select %373, %375, %364 : vector<16x1xi1>, vector<16x1xi32>
    %c0_i32_190 = arith.constant 0 : i32
    %377 = vector.broadcast %c0_i32_190 : i32 to vector<16x1xi32>
    %378 = arith.cmpi ne, %376, %377 : vector<16x1xi32>
    %379 = arith.extui %378 : vector<16x1xi1> to vector<16x1xi32>
    %380 = arith.sitofp %379 : vector<16x1xi32> to vector<16x1xf32>
    %c7_i32_191 = arith.constant 7 : i32
    %381 = vector.broadcast %c7_i32_191 : i32 to vector<16x1xi32>
    %382 = arith.cmpi ne, %376, %381 : vector<16x1xi32>
    %383 = arith.extui %382 : vector<16x1xi1> to vector<16x1xi32>
    %384 = arith.sitofp %383 : vector<16x1xi32> to vector<16x1xf32>
    %c1_i32_192 = arith.constant 1 : i32
    %385 = tpu.dynamic_rotate %359 by %c1_i32_192 dim 0 : vector<16x128xf32>, i32 -> vector<16x128xf32>
    %386 = vector.broadcast %380 : vector<16x1xf32> to vector<16x128xf32>
    %387 = arith.mulf %385, %386 : vector<16x128xf32>
    %388 = arith.truncf %387 : vector<16x128xf32> to vector<16x128xbf16>
    %389 = arith.truncf %359 : vector<16x128xf32> to vector<16x128xbf16>
    %c15_i32_193 = arith.constant 15 : i32
    %390 = tpu.dynamic_rotate %359 by %c15_i32_193 dim 0 : vector<16x128xf32>, i32 -> vector<16x128xf32>
    %391 = vector.broadcast %384 : vector<16x1xf32> to vector<16x128xf32>
    %392 = arith.mulf %390, %391 : vector<16x128xf32>
    %393 = arith.truncf %392 : vector<16x128xf32> to vector<16x128xbf16>
    %c5 = arith.constant 5 : index
    %c0_194 = arith.constant 0 : index
    %c0_195 = arith.constant 0 : index
    %c0_196 = arith.constant 0 : index
    %394 = vector.load %arg1[%c5, %c0_194, %c0_195, %c0_196] : memref<7x3x128x128xbf16, #tpu.memory_space<vmem>>, vector<1x1x128x128xbf16>
    %395 = vector.shape_cast %394 : vector<1x1x128x128xbf16> to vector<128x128xbf16>
    %cst_197 = arith.constant dense<0.000000e+00> : vector<16x128xf32>
    %396 = tpu.matmul %388, %395, %cst_197 {dimension_numbers = #tpu.dot_dimension_numbers<[1], [0], [0], [1], [0, 0, 1, 1], [], []>} : vector<16x128xbf16>, vector<128x128xbf16>, vector<16x128xf32> -> vector<16x128xf32>
    %c5_198 = arith.constant 5 : index
    %c1_199 = arith.constant 1 : index
    %c0_200 = arith.constant 0 : index
    %c0_201 = arith.constant 0 : index
    %397 = vector.load %arg1[%c5_198, %c1_199, %c0_200, %c0_201] : memref<7x3x128x128xbf16, #tpu.memory_space<vmem>>, vector<1x1x128x128xbf16>
    %398 = vector.shape_cast %397 : vector<1x1x128x128xbf16> to vector<128x128xbf16>
    %cst_202 = arith.constant dense<0.000000e+00> : vector<16x128xf32>
    %399 = tpu.matmul %389, %398, %cst_202 {dimension_numbers = #tpu.dot_dimension_numbers<[1], [0], [0], [1], [0, 0, 1, 1], [], []>} : vector<16x128xbf16>, vector<128x128xbf16>, vector<16x128xf32> -> vector<16x128xf32>
    %400 = arith.addf %396, %399 : vector<16x128xf32>
    %c5_203 = arith.constant 5 : index
    %c2_204 = arith.constant 2 : index
    %c0_205 = arith.constant 0 : index
    %c0_206 = arith.constant 0 : index
    %401 = vector.load %arg1[%c5_203, %c2_204, %c0_205, %c0_206] : memref<7x3x128x128xbf16, #tpu.memory_space<vmem>>, vector<1x1x128x128xbf16>
    %402 = vector.shape_cast %401 : vector<1x1x128x128xbf16> to vector<128x128xbf16>
    %cst_207 = arith.constant dense<0.000000e+00> : vector<16x128xf32>
    %403 = tpu.matmul %393, %402, %cst_207 {dimension_numbers = #tpu.dot_dimension_numbers<[1], [0], [0], [1], [0, 0, 1, 1], [], []>} : vector<16x128xbf16>, vector<128x128xbf16>, vector<16x128xf32> -> vector<16x128xf32>
    %404 = arith.addf %400, %403 : vector<16x128xf32>
    %c0_208 = arith.constant 0 : index
    %c0_209 = arith.constant 0 : index
    %405 = vector.load %arg5[%c0_208, %c0_209] : memref<32x128xf32, #tpu.memory_space<vmem>>, vector<16x128xf32>
    tpu.vector_store %arg5[%c0_208, %c0_209], %404 {strides = array<i32>} : memref<32x128xf32, #tpu.memory_space<vmem>>, vector<16x128xf32>,
    %c0_210 = arith.constant 0 : index
    %c0_211 = arith.constant 0 : index
    %406 = tpu.strided_load %arg5[%c0_210, %c0_211] {strides = array<i32: 2, 1>} : memref<32x128xf32, #tpu.memory_space<vmem>>, vector<8x128xf32>
    %cst_212 = arith.constant dense<0.000000e+00> : vector<128xf32>
    %407 = vector.multi_reduction <add>, %406, %cst_212 [0] : vector<8x128xf32> to vector<128xf32>
    %408 = vector.shape_cast %407 : vector<128xf32> to vector<1x128xf32>
    %cst_213 = arith.constant 1.250000e-01 : f32
    %409 = vector.broadcast %cst_213 : f32 to vector<1x128xf32>
    %410 = arith.mulf %408, %409 : vector<1x128xf32>
    %411 = vector.broadcast %410 : vector<1x128xf32> to vector<8x128xf32>
    %412 = arith.subf %406, %411 : vector<8x128xf32>
    %413 = arith.mulf %412, %412 : vector<8x128xf32>
    %cst_214 = arith.constant dense<0.000000e+00> : vector<128xf32>
    %414 = vector.multi_reduction <add>, %413, %cst_214 [0] : vector<8x128xf32> to vector<128xf32>
    %415 = vector.shape_cast %414 : vector<128xf32> to vector<1x128xf32>
    %cst_215 = arith.constant 1.250000e-01 : f32
    %416 = vector.broadcast %cst_215 : f32 to vector<1x128xf32>
    %417 = arith.mulf %415, %416 : vector<1x128xf32>
    %c5_216 = arith.constant 5 : index
    %c0_217 = arith.constant 0 : index
    %c0_218 = arith.constant 0 : index
    %418 = vector.load %arg2[%c5_216, %c0_217, %c0_218] : memref<7x1x128xf32, #tpu.memory_space<vmem>>, vector<1x1x128xf32>
    %419 = vector.shape_cast %418 : vector<1x1x128xf32> to vector<1x128xf32>
    %cst_219 = arith.constant 9.99999974E-6 : f32
    %420 = vector.broadcast %cst_219 : f32 to vector<1x128xf32>
    %421 = arith.addf %417, %420 : vector<1x128xf32>
    %422 = math.rsqrt %421 : vector<1x128xf32>
    %423 = arith.mulf %419, %422 : vector<1x128xf32>
    %424 = vector.broadcast %423 : vector<1x128xf32> to vector<8x128xf32>
    %425 = arith.mulf %412, %424 : vector<8x128xf32>
    %c5_220 = arith.constant 5 : index
    %c0_221 = arith.constant 0 : index
    %c0_222 = arith.constant 0 : index
    %426 = vector.load %arg3[%c5_220, %c0_221, %c0_222] : memref<7x1x128xf32, #tpu.memory_space<vmem>>, vector<1x1x128xf32>
    %427 = vector.shape_cast %426 : vector<1x1x128xf32> to vector<1x128xf32>
    %428 = vector.broadcast %427 : vector<1x128xf32> to vector<8x128xf32>
    %429 = arith.addf %425, %428 : vector<8x128xf32>
    %cst_223 = arith.constant 0.000000e+00 : f32
    %430 = vector.broadcast %cst_223 : f32 to vector<8x128xf32>
    %431 = arith.maximumf %429, %430 : vector<8x128xf32>
    %432 = tpu.iota {dimensions = array<i32: 0>} : vector<8x1xi32>
    %c4_i32 = arith.constant 4 : i32
    %c0_i32_224 = arith.constant 0 : i32
    %433 = arith.cmpi eq, %c4_i32, %c0_i32_224 : i32
    %c1_i32_225 = arith.constant 1 : i32
    %434 = arith.select %433, %c1_i32_225, %c4_i32 : i32
    %435 = vector.broadcast %434 : i32 to vector<8x1xi32>
    %436 = arith.remsi %432, %435 : vector<8x1xi32>
    %c0_i32_226 = arith.constant 0 : i32
    %437 = vector.broadcast %c0_i32_226 : i32 to vector<8x1xi32>
    %438 = arith.cmpi ne, %436, %437 : vector<8x1xi32>
    %c0_i32_227 = arith.constant 0 : i32
    %439 = vector.broadcast %c0_i32_227 : i32 to vector<8x1xi32>
    %440 = arith.cmpi slt, %436, %439 : vector<8x1xi32>
    %c0_i32_228 = arith.constant 0 : i32
    %441 = arith.cmpi slt, %434, %c0_i32_228 : i32
    %442 = vector.broadcast %441 : i1 to vector<8x1xi1>
    %443 = vector.broadcast %442 : vector<8x1xi1> to vector<8x1xi1>
    %444 = arith.xori %440, %443 : vector<8x1xi1>
    %445 = arith.andi %444, %438 : vector<8x1xi1>
    %446 = vector.broadcast %434 : i32 to vector<8x1xi32>
    %447 = arith.addi %436, %446 : vector<8x1xi32>
    %448 = arith.select %445, %447, %436 : vector<8x1xi1>, vector<8x1xi32>
    %c0_i32_229 = arith.constant 0 : i32
    %449 = vector.broadcast %c0_i32_229 : i32 to vector<8x1xi32>
    %450 = arith.cmpi ne, %448, %449 : vector<8x1xi32>
    %451 = arith.extui %450 : vector<8x1xi1> to vector<8x1xi32>
    %452 = arith.sitofp %451 : vector<8x1xi32> to vector<8x1xf32>
    %c3_i32 = arith.constant 3 : i32
    %453 = vector.broadcast %c3_i32 : i32 to vector<8x1xi32>
    %454 = arith.cmpi ne, %448, %453 : vector<8x1xi32>
    %455 = arith.extui %454 : vector<8x1xi1> to vector<8x1xi32>
    %456 = arith.sitofp %455 : vector<8x1xi32> to vector<8x1xf32>
    %c1_i32_230 = arith.constant 1 : i32
    %457 = tpu.dynamic_rotate %431 by %c1_i32_230 dim 0 : vector<8x128xf32>, i32 -> vector<8x128xf32>
    %458 = vector.broadcast %452 : vector<8x1xf32> to vector<8x128xf32>
    %459 = arith.mulf %457, %458 : vector<8x128xf32>
    %460 = arith.truncf %459 : vector<8x128xf32> to vector<8x128xbf16>
    %461 = arith.truncf %431 : vector<8x128xf32> to vector<8x128xbf16>
    %c7_i32_231 = arith.constant 7 : i32
    %462 = tpu.dynamic_rotate %431 by %c7_i32_231 dim 0 : vector<8x128xf32>, i32 -> vector<8x128xf32>
    %463 = vector.broadcast %456 : vector<8x1xf32> to vector<8x128xf32>
    %464 = arith.mulf %462, %463 : vector<8x128xf32>
    %465 = arith.truncf %464 : vector<8x128xf32> to vector<8x128xbf16>
    %c6 = arith.constant 6 : index
    %c0_232 = arith.constant 0 : index
    %c0_233 = arith.constant 0 : index
    %c0_234 = arith.constant 0 : index
    %466 = vector.load %arg1[%c6, %c0_232, %c0_233, %c0_234] : memref<7x3x128x128xbf16, #tpu.memory_space<vmem>>, vector<1x1x128x128xbf16>
    %467 = vector.shape_cast %466 : vector<1x1x128x128xbf16> to vector<128x128xbf16>
    %cst_235 = arith.constant dense<0.000000e+00> : vector<8x128xf32>
    %468 = tpu.matmul %460, %467, %cst_235 {dimension_numbers = #tpu.dot_dimension_numbers<[1], [0], [0], [1], [0, 0, 1, 1], [], []>} : vector<8x128xbf16>, vector<128x128xbf16>, vector<8x128xf32> -> vector<8x128xf32>
    %c6_236 = arith.constant 6 : index
    %c1_237 = arith.constant 1 : index
    %c0_238 = arith.constant 0 : index
    %c0_239 = arith.constant 0 : index
    %469 = vector.load %arg1[%c6_236, %c1_237, %c0_238, %c0_239] : memref<7x3x128x128xbf16, #tpu.memory_space<vmem>>, vector<1x1x128x128xbf16>
    %470 = vector.shape_cast %469 : vector<1x1x128x128xbf16> to vector<128x128xbf16>
    %cst_240 = arith.constant dense<0.000000e+00> : vector<8x128xf32>
    %471 = tpu.matmul %461, %470, %cst_240 {dimension_numbers = #tpu.dot_dimension_numbers<[1], [0], [0], [1], [0, 0, 1, 1], [], []>} : vector<8x128xbf16>, vector<128x128xbf16>, vector<8x128xf32> -> vector<8x128xf32>
    %472 = arith.addf %468, %471 : vector<8x128xf32>
    %c6_241 = arith.constant 6 : index
    %c2_242 = arith.constant 2 : index
    %c0_243 = arith.constant 0 : index
    %c0_244 = arith.constant 0 : index
    %473 = vector.load %arg1[%c6_241, %c2_242, %c0_243, %c0_244] : memref<7x3x128x128xbf16, #tpu.memory_space<vmem>>, vector<1x1x128x128xbf16>
    %474 = vector.shape_cast %473 : vector<1x1x128x128xbf16> to vector<128x128xbf16>
    %cst_245 = arith.constant dense<0.000000e+00> : vector<8x128xf32>
    %475 = tpu.matmul %465, %474, %cst_245 {dimension_numbers = #tpu.dot_dimension_numbers<[1], [0], [0], [1], [0, 0, 1, 1], [], []>} : vector<8x128xbf16>, vector<128x128xbf16>, vector<8x128xf32> -> vector<8x128xf32>
    %476 = arith.addf %472, %475 : vector<8x128xf32>
    %cst_246 = arith.constant dense<0.000000e+00> : vector<128xf32>
    %477 = vector.multi_reduction <add>, %476, %cst_246 [0] : vector<8x128xf32> to vector<128xf32>
    %478 = vector.shape_cast %477 : vector<128xf32> to vector<1x128xf32>
    %cst_247 = arith.constant 1.250000e-01 : f32
    %479 = vector.broadcast %cst_247 : f32 to vector<1x128xf32>
    %480 = arith.mulf %478, %479 : vector<1x128xf32>
    %481 = vector.broadcast %480 : vector<1x128xf32> to vector<8x128xf32>
    %482 = arith.subf %476, %481 : vector<8x128xf32>
    %483 = arith.mulf %482, %482 : vector<8x128xf32>
    %cst_248 = arith.constant dense<0.000000e+00> : vector<128xf32>
    %484 = vector.multi_reduction <add>, %483, %cst_248 [0] : vector<8x128xf32> to vector<128xf32>
    %485 = vector.shape_cast %484 : vector<128xf32> to vector<1x128xf32>
    %cst_249 = arith.constant 1.250000e-01 : f32
    %486 = vector.broadcast %cst_249 : f32 to vector<1x128xf32>
    %487 = arith.mulf %485, %486 : vector<1x128xf32>
    %c6_250 = arith.constant 6 : index
    %c0_251 = arith.constant 0 : index
    %c0_252 = arith.constant 0 : index
    %488 = vector.load %arg2[%c6_250, %c0_251, %c0_252] : memref<7x1x128xf32, #tpu.memory_space<vmem>>, vector<1x1x128xf32>
    %489 = vector.shape_cast %488 : vector<1x1x128xf32> to vector<1x128xf32>
    %cst_253 = arith.constant 9.99999974E-6 : f32
    %490 = vector.broadcast %cst_253 : f32 to vector<1x128xf32>
    %491 = arith.addf %487, %490 : vector<1x128xf32>
    %492 = math.rsqrt %491 : vector<1x128xf32>
    %493 = arith.mulf %489, %492 : vector<1x128xf32>
    %494 = vector.broadcast %493 : vector<1x128xf32> to vector<8x128xf32>
    %495 = arith.mulf %482, %494 : vector<8x128xf32>
    %c6_254 = arith.constant 6 : index
    %c0_255 = arith.constant 0 : index
    %c0_256 = arith.constant 0 : index
    %496 = vector.load %arg3[%c6_254, %c0_255, %c0_256] : memref<7x1x128xf32, #tpu.memory_space<vmem>>, vector<1x1x128xf32>
    %497 = vector.shape_cast %496 : vector<1x1x128xf32> to vector<1x128xf32>
    %498 = vector.broadcast %497 : vector<1x128xf32> to vector<8x128xf32>
    %499 = arith.addf %495, %498 : vector<8x128xf32>
    %c0_257 = arith.constant 0 : index
    %c0_258 = arith.constant 0 : index
    %500 = vector.load %arg5[%c0_257, %c0_258] : memref<32x128xf32, #tpu.memory_space<vmem>>, vector<16x128xf32>
    tpu.vector_store %arg5[%c0_257, %c0_258], %359 {strides = array<i32>} : memref<32x128xf32, #tpu.memory_space<vmem>>, vector<16x128xf32>,
    %c0_259 = arith.constant 0 : index
    %c0_260 = arith.constant 0 : index
    %501 = tpu.strided_load %arg5[%c0_259, %c0_260] {strides = array<i32: 2, 1>} : memref<32x128xf32, #tpu.memory_space<vmem>>, vector<8x128xf32>
    %c16_i32_261 = arith.constant 16 : i32
    %502 = tpu.dynamic_rotate %501 by %c16_i32_261 dim 1 : vector<8x128xf32>, i32 -> vector<8x128xf32>
    %503 = arith.addf %499, %502 : vector<8x128xf32>
    %cst_262 = arith.constant 0.000000e+00 : f32
    %504 = vector.broadcast %cst_262 : f32 to vector<8x128xf32>
    %505 = arith.maximumf %503, %504 : vector<8x128xf32>
    %506 = vector.shape_cast %505 : vector<8x128xf32> to vector<2x4x128xf32>
    %cst_263 = arith.constant dense<0.000000e+00> : vector<2x128xf32>
    %507 = vector.multi_reduction <add>, %506, %cst_263 [1] : vector<2x4x128xf32> to vector<2x128xf32>
    %cst_264 = arith.constant 4.000000e+00 : f32
    %508 = vector.broadcast %cst_264 : f32 to vector<2x128xf32>
    %509 = arith.divf %507, %508 : vector<2x128xf32>
    %c0_265 = arith.constant 0 : index
    %c0_266 = arith.constant 0 : index
    %510 = vector.load %arg4[%c0_265, %c0_266] : memref<2x128xf32, #tpu.memory_space<vmem>>, vector<2x128xf32>
    tpu.vector_store %arg4[%c0_265, %c0_266], %509 {strides = array<i32>} : memref<2x128xf32, #tpu.memory_space<vmem>>, vector<2x128xf32>,
    return
  }
}

</mosaic_0001>

<llo_original>
// kernel: tpu_custom_call.1
$region0: #{tpu_custom_call.1}
  #allocation0 [shape = 'u32[]', space=smem, size = 0x4, offset = 0x4, fixed_abs, tag = 'smem constant byte address 0x4 - core index']
  #allocation1 [shape = 'u32[144,128]{1,0:T(1,128)}', space=vmem, size = 0x12000, scoped, tag = 'internal scratch']
  #allocation2 [shape = 'f32[32,128]{1,0:T(8,128)}', space=vmem, size = 0x4000, scoped, tag = 'scratch operand']
  %s0 = inlined_call_operand.hbm [shape: bf16[2,16,128], index: 0, kind: input, shape index: {}]
  %s1 = inlined_call_operand.hbm [shape: bf16[7,3,128,128], index: 1, kind: input, shape index: {}]
  %s2 = inlined_call_operand.vmem [shape: f32[7,1,128], index: 2, kind: input, shape index: {}]
  %s3 = inlined_call_operand.hbm [shape: f32[7,1,128], index: 3, kind: input, shape index: {}]
  %s4 = inlined_call_operand.hbm [shape: f32[2,128], index: 4, kind: output, shape index: {}]
  %s5 = sld [smem:[#allocation0]]
  $region38: #{tpu_custom_call.1} parent=0
    _
  %s7 = ssub.s32 1, %s5
  %s8 = scalar_select 0, %s7, %s5
  $region1: #{tpu_custom_call.1} parent=0
    #allocation3 [shape = 'u8[8192]{0}', space=vmem, size = 0x2000, scoped, tag = 'input window, operand 0, single buffered']
    #allocation4 [shape = 's32[1]{0}', space=sflag, size = 0x4, scoped, tag = 'scoped memory for tpu_custom_call.1']
    #allocation5 [shape = 's32[1]{0}', space=sflag, size = 0x4, scoped, tag = 'scoped memory for tpu_custom_call.1']
    #allocation6 [shape = 'u8[688128]{0}', space=vmem, size = 0xa8000, scoped, tag = 'input window, operand 1, single buffered']
    #allocation7 [shape = 's32[1]{0}', space=sflag, size = 0x4, scoped, tag = 'scoped memory for tpu_custom_call.1']
    #allocation8 [shape = 'u8[3584]{0}', space=vmem, size = 0x1000, scoped, tag = 'input window, operand 3, single buffered']
    #allocation9 [shape = 'u8[1024]{0}', space=vmem, size = 0x400, scoped, tag = 'output window, operand 0, single buffered']
    %9 = vsyncpa [#allocation4], 0
    %10 = vsyncpa [#allocation7], 0
    %11 = vsyncpa [#allocation5], 0
    // Predicated region
    $region2: #{tpu_custom_call.1} parent=1 // pred_check
      _
    $region3: #{tpu_custom_call.1} parent=1 // pred_check_branch
      %13 = sbr.rel (0) target = $region5
    $region4: #{tpu_custom_call.1} parent=1 // pred_region
      %s15 = ssub.s32 256, 256
      %16 = vsyncadd [#allocation4], %s15
      %s17 = sshll.u32 [#allocation3], 4
      %s18 = int_to_ptr.vmem [resolvable:$true] %s17
      %23 = dma.hbm_to_vmem [thread:$0]  %s0, 256, %s18, [#allocation4], 64, 64, 4
    $region5: #{tpu_custom_call.1} parent=1 // pred_fallthru
      _
    // Predicated region
    $region6: #{tpu_custom_call.1} parent=1 // pred_check
      _
    $region7: #{tpu_custom_call.1} parent=1 // pred_check_branch
      %25 = sbr.rel (0) target = $region9
    $region8: #{tpu_custom_call.1} parent=1 // pred_region
      %s27 = ssub.s32 21504, 21504
      %28 = vsyncadd [#allocation7], %s27
      %s29 = sshll.u32 [#allocation6], 4
      %s30 = int_to_ptr.vmem [resolvable:$true] %s29
      %35 = dma.hbm_to_vmem [thread:$0]  %s1, 21504, %s30, [#allocation7], 64, 64, 4
    $region9: #{tpu_custom_call.1} parent=1 // pred_fallthru
      _
    // Predicated region
    $region10: #{tpu_custom_call.1} parent=1 // pred_check
      _
    $region11: #{tpu_custom_call.1} parent=1 // pred_check_branch
      %37 = sbr.rel (0) target = $region13
    $region12: #{tpu_custom_call.1} parent=1 // pred_region
      _
    $region13: #{tpu_custom_call.1} parent=1 // pred_fallthru
      _
    // Predicated region
    $region14: #{tpu_custom_call.1} parent=1 // pred_check
      _
    $region15: #{tpu_custom_call.1} parent=1 // pred_check_branch
      %39 = sbr.rel (0) target = $region17
    $region16: #{tpu_custom_call.1} parent=1 // pred_region
      %s41 = ssub.s32 112, 112
      %42 = vsyncadd [#allocation7], %s41
      %s43 = sshll.u32 [#allocation8], 4
      %s44 = int_to_ptr.vmem [resolvable:$true] %s43
      %49 = dma.hbm_to_vmem [thread:$0]  %s3, 112, %s44, [#allocation7], 16, 16, 1
    $region17: #{tpu_custom_call.1} parent=1 // pred_fallthru
      _
    // Predicated region
    $region18: #{tpu_custom_call.1} parent=1 // pred_check
      _
    $region19: #{tpu_custom_call.1} parent=1 // pred_check_branch
      %51 = sbr.rel (0) target = $region21
    $region20: #{tpu_custom_call.1} parent=1 // pred_region
      %52 = dma.done [#allocation4], 256
    $region21: #{tpu_custom_call.1} parent=1 // pred_fallthru
      _
    // Predicated region
    $region22: #{tpu_custom_call.1} parent=1 // pred_check
      _
    $region23: #{tpu_custom_call.1} parent=1 // pred_check_branch
      %54 = sbr.rel (0) target = $region25
    $region24: #{tpu_custom_call.1} parent=1 // pred_region
      %55 = dma.done [#allocation7], 21504
    $region25: #{tpu_custom_call.1} parent=1 // pred_fallthru
      _
    // Predicated region
    $region26: #{tpu_custom_call.1} parent=1 // pred_check
      _
    $region27: #{tpu_custom_call.1} parent=1 // pred_check_branch
      %57 = sbr.rel (0) target = $region29
    $region28: #{tpu_custom_call.1} parent=1 // pred_region
      %58 = dma.done [#allocation7], 112
    $region29: #{tpu_custom_call.1} parent=1 // pred_fallthru
      _
    %v60 = vld [vmem:[#allocation3] sm:$0xf]
    %v61 = vld [vmem:[#allocation3 + $0x4] sm:$0xf]
    %v62 = vld [vmem:[#allocation3 + $0x8] sm:$0xf]
    %v63 = vld [vmem:[#allocation3 + $0xc] sm:$0xf]
    %v64 = vunpack.c.l.bf16 %v60
    %v65 = vunpack.c.l.bf16 %v61
    %v66 = vunpack.c.l.bf16 %v62
    %v67 = vunpack.c.l.bf16 %v63
    %v68 = vlaneseq
    %v69 = vshrl.u32 %v68, 7
    %v70 = vadd.s32 %v69, 8
    %v71 = vadd.s32 %v69, 16
    %v72 = vadd.s32 %v69, 24
    %vm73 = vcmp.lt.s32.totalorder %v69, 0
    %v74 = vsub.s32 0, %v69
    %v75 = vsel %vm73, %v74, %v69
    %v76 = vshrl.u32 %v75, 4
    %v77 = vand.u32 %v75, 15
    %v78 = vsub.s32 0, %v77
    %v79 = vsel %vm73, %v78, %v77
    %vm80 = vcmp.lt.s32.totalorder %v70, 0
    %v81 = vsub.s32 0, %v70
    %v82 = vsel %vm80, %v81, %v70
    %v83 = vshrl.u32 %v82, 4
    %v84 = vand.u32 %v82, 15
    %v85 = vsub.s32 0, %v84
    %v86 = vsel %vm80, %v85, %v84
    %vm87 = vcmp.lt.s32.totalorder %v71, 0
    %v88 = vsub.s32 0, %v71
    %v89 = vsel %vm87, %v88, %v71
    %v90 = vshrl.u32 %v89, 4
    %v91 = vand.u32 %v89, 15
    %v92 = vsub.s32 0, %v91
    %v93 = vsel %vm87, %v92, %v91
    %vm94 = vcmp.lt.s32.totalorder %v72, 0
    %v95 = vsub.s32 0, %v72
    %v96 = vsel %vm94, %v95, %v72
    %v97 = vshrl.u32 %v96, 4
    %v98 = vand.u32 %v96, 15
    %v99 = vsub.s32 0, %v98
    %v100 = vsel %vm94, %v99, %v98
    %vm101 = vcmp.ne.s32.totalorder %v79, 0
    %vm102 = vcmp.ne.s32.totalorder %v86, 0
    %vm103 = vcmp.ne.s32.totalorder %v93, 0
    %vm104 = vcmp.ne.s32.totalorder %v100, 0
    %vm105 = vcmp.lt.s32.totalorder %v79, 0
    %vm106 = vcmp.lt.s32.totalorder %v86, 0
    %vm107 = vcmp.lt.s32.totalorder %v93, 0
    %vm108 = vcmp.lt.s32.totalorder %v100, 0
    %vm109 = vmand %vm105, %vm101
    %vm110 = vmand %vm106, %vm102
    %vm111 = vmand %vm107, %vm103
    %vm112 = vmand %vm108, %vm104
    %v113 = vadd.s32 %v79, 16
    %v114 = vadd.s32 %v86, 16
    %v115 = vadd.s32 %v93, 16
    %v116 = vadd.s32 %v100, 16
    %v117 = vsel %vm109, %v113, %v79
    %v118 = vsel %vm110, %v114, %v86
    %v119 = vsel %vm111, %v115, %v93
    %v120 = vsel %vm112, %v116, %v100
    %vm121 = vcmp.ne.s32.totalorder %v117, 0
    %vm122 = vcmp.ne.s32.totalorder %v118, 0
    %vm123 = vcmp.ne.s32.totalorder %v119, 0
    %vm124 = vcmp.ne.s32.totalorder %v120, 0
    %v125 = vsel %vm121, 1, 0
    %v126 = vsel %vm122, 1, 0
    %v127 = vsel %vm123, 1, 0
    %v128 = vsel %vm124, 1, 0
    %v129 = vcvt.s32.f32 %v125
    %v130 = vcvt.s32.f32 %v126
    %v131 = vcvt.s32.f32 %v127
    %v132 = vcvt.s32.f32 %v128
    %vm133 = vcmp.ne.s32.totalorder %v117, 15
    %vm134 = vcmp.ne.s32.totalorder %v118, 15
    %vm135 = vcmp.ne.s32.totalorder %v119, 15
    %vm136 = vcmp.ne.s32.totalorder %v120, 15
    %v137 = vsel %vm133, 1, 0
    %v138 = vsel %vm134, 1, 0
    %v139 = vsel %vm135, 1, 0
    %v140 = vsel %vm136, 1, 0
    %v141 = vcvt.s32.f32 %v137
    %v142 = vcvt.s32.f32 %v138
    %v143 = vcvt.s32.f32 %v139
    %v144 = vcvt.s32.f32 %v140
    %v145 = vrot.slane %v64, 7
    %v146 = vrot.slane %v65, 7
    %v147 = vrot.slane %v66, 7
    %v148 = vrot.slane %v67, 7
    %vm149 = vcmp.lt.s32.totalorder %v69, 1
    %v150 = vsel %vm149, %v147, %v148
    %v151 = vsel %vm149, %v146, %v147
    %v152 = vsel %vm149, %v145, %v146
    %v153 = vsel %vm149, %v148, %v145
    %v154 = vmul.f32 %v153, %v129
    %v155 = vmul.f32 %v152, %v130
    %v156 = vmul.f32 %v151, %v131
    %v157 = vmul.f32 %v150, %v132
    %v158 = vpack.c.bf16 %v155, %v154
    %v159 = vpack.c.bf16 %v157, %v156
    %v160 = vrot.slane %v64, 1
    %v161 = vrot.slane %v65, 1
    %v162 = vrot.slane %v66, 1
    %v163 = vrot.slane %v67, 1
    %vm164 = vcmp.lt.s32.totalorder %v69, 7
    %v165 = vsel %vm164, %v162, %v163
    %v166 = vsel %vm164, %v161, %v162
    %v167 = vsel %vm164, %v160, %v161
    %v168 = vsel %vm164, %v163, %v160
    %v169 = vmul.f32 %v167, %v141
    %v170 = vmul.f32 %v166, %v142
    %v171 = vmul.f32 %v165, %v143
    %v172 = vmul.f32 %v168, %v144
    %v173 = vpack.c.bf16 %v170, %v169
    %v174 = vpack.c.bf16 %v172, %v171
    %v175 = vld [vmem:[#allocation6] sm:$0xf]
    %v176 = vld [vmem:[#allocation6 + $0x4] sm:$0xf]
    %v177 = vld [vmem:[#allocation6 + $0x8] sm:$0xf]
    %v178 = vld [vmem:[#allocation6 + $0xc] sm:$0xf]
    %v179 = vld [vmem:[#allocation6 + $0x10] sm:$0xf]
    %v180 = vld [vmem:[#allocation6 + $0x14] sm:$0xf]
    %v181 = vld [vmem:[#allocation6 + $0x18] sm:$0xf]
    %v182 = vld [vmem:[#allocation6 + $0x1c] sm:$0xf]
    %v183 = vld [vmem:[#allocation6 + $0x20] sm:$0xf]
    %v184 = vld [vmem:[#allocation6 + $0x24] sm:$0xf]
    %v185 = vld [vmem:[#allocation6 + $0x28] sm:$0xf]
    %v186 = vld [vmem:[#allocation6 + $0x2c] sm:$0xf]
    %v187 = vld [vmem:[#allocation6 + $0x30] sm:$0xf]
    %v188 = vld [vmem:[#allocation6 + $0x34] sm:$0xf]
    %v189 = vld [vmem:[#allocation6 + $0x38] sm:$0xf]
    %v190 = vld [vmem:[#allocation6 + $0x3c] sm:$0xf]
    %s191 = scalar_lea.vmem [#allocation6], 64
    %v192 = vld [vmem:[%s191] sm:$0xf]
    %v193 = vld [vmem:[%s191 + $0x4] sm:$0xf]
    %v194 = vld [vmem:[%s191 + $0x8] sm:$0xf]
    %v195 = vld [vmem:[%s191 + $0xc] sm:$0xf]
    %v196 = vld [vmem:[%s191 + $0x10] sm:$0xf]
    %v197 = vld [vmem:[%s191 + $0x14] sm:$0xf]
    %v198 = vld [vmem:[%s191 + $0x18] sm:$0xf]
    %v199 = vld [vmem:[%s191 + $0x1c] sm:$0xf]
    %v200 = vld [vmem:[%s191 + $0x20] sm:$0xf]
    %v201 = vld [vmem:[%s191 + $0x24] sm:$0xf]
    %v202 = vld [vmem:[%s191 + $0x28] sm:$0xf]
    %v203 = vld [vmem:[%s191 + $0x2c] sm:$0xf]
    %v204 = vld [vmem:[%s191 + $0x30] sm:$0xf]
    %v205 = vld [vmem:[%s191 + $0x34] sm:$0xf]
    %v206 = vld [vmem:[%s191 + $0x38] sm:$0xf]
    %v207 = vld [vmem:[%s191 + $0x3c] sm:$0xf]
    %v212 = vunpack.c.l.b16 %v60
    %v213 = vunpack.c.l.b16 %v61
    %v214 = vunpack.c.l.b16 %v62
    %v215 = vunpack.c.l.b16 %v63
    %v216 = vpack.c.b16 %v213, %v212
    %v217 = vpack.c.b16 %v215, %v214
    %v236 = vunpack.c.l.b16 %v192
    %v237 = vunpack.c.l.b16 %v193
    %v238 = vunpack.c.l.b16 %v194
    %v239 = vunpack.c.l.b16 %v195
    %v240 = vunpack.c.l.b16 %v196
    %v241 = vunpack.c.l.b16 %v197
    %v242 = vunpack.c.l.b16 %v198
    %v243 = vunpack.c.l.b16 %v199
    %v244 = vunpack.c.l.b16 %v200
    %v245 = vunpack.c.l.b16 %v201
    %v246 = vunpack.c.l.b16 %v202
    %v247 = vunpack.c.l.b16 %v203
    %v248 = vunpack.c.l.b16 %v204
    %v249 = vunpack.c.l.b16 %v205
    %v250 = vunpack.c.l.b16 %v206
    %v251 = vunpack.c.l.b16 %v207
    %v252 = vpack.c.b16 %v237, %v236
    %v253 = vpack.c.b16 %v239, %v238
    %v254 = vpack.c.b16 %v241, %v240
    %v255 = vpack.c.b16 %v243, %v242
    %v256 = vpack.c.b16 %v245, %v244
    %v257 = vpack.c.b16 %v247, %v246
    %v258 = vpack.c.b16 %v249, %v248
    %v259 = vpack.c.b16 %v251, %v250
    %268 = vmatprep.subr.bf16.mxu0 0
    %269 = vmatpush1.bf16.msra.mxu0 %v252
    %270 = vmatprep.subr.bf16.mxu0 0
    %271 = vmatpush1.bf16.msra.mxu0 %v253
    %272 = vmatprep.subr.bf16.mxu0 0
    %273 = vmatpush1.bf16.msra.mxu0 %v254
    %274 = vmatprep.subr.bf16.mxu0 0
    %275 = vmatpush1.bf16.msra.mxu0 %v255
    %276 = vmatprep.subr.bf16.mxu0 0
    %277 = vmatpush1.bf16.msra.mxu0 %v256
    %278 = vmatprep.subr.bf16.mxu0 0
    %279 = vmatpush1.bf16.msra.mxu0 %v257
    %280 = vmatprep.subr.bf16.mxu0 0
    %281 = vmatpush1.bf16.msra.mxu0 %v258
    %282 = vmatprep.subr.bf16.mxu0 0
    %283 = vmatpush1.bf16.msra.mxu0 %v259
    %284 = vmatprep.subr.bf16.mxu0 0
    %285 = vmatpush1.bf16.msra.mxu0 0
    %286 = vmatprep.subr.bf16.mxu0 0
    %287 = vmatpush1.bf16.msra.mxu0 0
    %288 = vmatprep.subr.bf16.mxu0 0
    %289 = vmatpush1.bf16.msra.mxu0 0
    %290 = vmatprep.subr.bf16.mxu0 0
    %291 = vmatpush1.bf16.msra.mxu0 0
    %292 = vmatprep.subr.bf16.mxu0 0
    %293 = vmatpush1.bf16.msra.mxu0 0
    %294 = vmatprep.subr.bf16.mxu0 0
    %295 = vmatpush1.bf16.msra.mxu0 0
    %296 = vmatprep.subr.bf16.mxu0 0
    %297 = vmatpush1.bf16.msra.mxu0 0
    %298 = vmatprep.subr.bf16.mxu0 0
    %299 = vmatpush1.bf16.msra.mxu0 0
    %300 = vmatprep.mubr.bf16.mxu0 0
    %301 = vmatmul.mubr.bf16.gmra.mrb[0].mxu0 %v216
    %v302 = vpop.f32.mrb[0].mxu0
    %v303 = vadd.f32 0.0, %v302
    %v304 = vpop.f32.mrb[0].mxu0
    %v305 = vpop.f32.mrb[0].mxu0
    %v306 = vadd.f32 0.0, %v305
    %v307 = vpop.f32.mrb[0].mxu0
    %308 = vmatprep.mubr.bf16.mxu0 0
    %309 = vmatmul.mubr.bf16.gmra.mrb[0].mxu0 %v217
    %v310 = vpop.f32.mrb[0].mxu0
    %v311 = vadd.f32 0.0, %v310
    %v312 = vpop.f32.mrb[0].mxu0
    %v313 = vpop.f32.mrb[0].mxu0
    %v314 = vadd.f32 0.0, %v313
    %v315 = vpop.f32.mrb[0].mxu0
    %316 = vdwg.mxu0
    %v333 = vunpack.c.l.b16 %v175
    %v334 = vunpack.c.l.b16 %v176
    %v335 = vunpack.c.l.b16 %v177
    %v336 = vunpack.c.l.b16 %v178
    %v337 = vunpack.c.l.b16 %v179
    %v338 = vunpack.c.l.b16 %v180
    %v339 = vunpack.c.l.b16 %v181
    %v340 = vunpack.c.l.b16 %v182
    %v341 = vunpack.c.l.b16 %v183
    %v342 = vunpack.c.l.b16 %v184
    %v343 = vunpack.c.l.b16 %v185
    %v344 = vunpack.c.l.b16 %v186
    %v345 = vunpack.c.l.b16 %v187
    %v346 = vunpack.c.l.b16 %v188
    %v347 = vunpack.c.l.b16 %v189
    %v348 = vunpack.c.l.b16 %v190
    %v349 = vpack.c.b16 %v334, %v333
    %v350 = vpack.c.b16 %v336, %v335
    %v351 = vpack.c.b16 %v338, %v337
    %v352 = vpack.c.b16 %v340, %v339
    %v353 = vpack.c.b16 %v342, %v341
    %v354 = vpack.c.b16 %v344, %v343
    %v355 = vpack.c.b16 %v346, %v345
    %v356 = vpack.c.b16 %v348, %v347
    %365 = vmatprep.subr.bf16.mxu0 0
    %366 = vmatpush1.bf16.msra.mxu0 %v349
    %367 = vmatprep.subr.bf16.mxu0 0
    %368 = vmatpush1.bf16.msra.mxu0 %v350
    %369 = vmatprep.subr.bf16.mxu0 0
    %370 = vmatpush1.bf16.msra.mxu0 %v351
    %371 = vmatprep.subr.bf16.mxu0 0
    %372 = vmatpush1.bf16.msra.mxu0 %v352
    %373 = vmatprep.subr.bf16.mxu0 0
    %374 = vmatpush1.bf16.msra.mxu0 %v353
    %375 = vmatprep.subr.bf16.mxu0 0
    %376 = vmatpush1.bf16.msra.mxu0 %v354
    %377 = vmatprep.subr.bf16.mxu0 0
    %378 = vmatpush1.bf16.msra.mxu0 %v355
    %379 = vmatprep.subr.bf16.mxu0 0
    %380 = vmatpush1.bf16.msra.mxu0 %v356
    %381 = vmatprep.subr.bf16.mxu0 0
    %382 = vmatpush1.bf16.msra.mxu0 0
    %383 = vmatprep.subr.bf16.mxu0 0
    %384 = vmatpush1.bf16.msra.mxu0 0
    %385 = vmatprep.subr.bf16.mxu0 0
    %386 = vmatpush1.bf16.msra.mxu0 0
    %387 = vmatprep.subr.bf16.mxu0 0
    %388 = vmatpush1.bf16.msra.mxu0 0
    %389 = vmatprep.subr.bf16.mxu0 0
    %390 = vmatpush1.bf16.msra.mxu0 0
    %391 = vmatprep.subr.bf16.mxu0 0
    %392 = vmatpush1.bf16.msra.mxu0 0
    %393 = vmatprep.subr.bf16.mxu0 0
    %394 = vmatpush1.bf16.msra.mxu0 0
    %395 = vmatprep.subr.bf16.mxu0 0
    %396 = vmatpush1.bf16.msra.mxu0 0
    %397 = vmatprep.mubr.bf16.mxu0 0
    %398 = vmatmul.mubr.bf16.gmra.mrb[0].mxu0 %v158
    %v399 = vpop.f32.mrb[0].mxu0
    %v400 = vadd.f32 %v303, %v399
    %v401 = vpop.f32.mrb[0].mxu0
    %v402 = vpop.f32.mrb[0].mxu0
    %v403 = vadd.f32 %v306, %v402
    %v404 = vpop.f32.mrb[0].mxu0
    %405 = vmatprep.mubr.bf16.mxu0 0
    %406 = vmatmul.mubr.bf16.gmra.mrb[0].mxu0 %v159
    %v407 = vpop.f32.mrb[0].mxu0
    %v408 = vadd.f32 %v311, %v407
    %v409 = vpop.f32.mrb[0].mxu0
    %v410 = vpop.f32.mrb[0].mxu0
    %v411 = vadd.f32 %v314, %v410
    %v412 = vpop.f32.mrb[0].mxu0
    %413 = vdwg.mxu0
    %s414 = scalar_lea.vmem [#allocation6], 128
    %v415 = vld [vmem:[%s414] sm:$0xf]
    %v416 = vld [vmem:[%s414 + $0x4] sm:$0xf]
    %v417 = vld [vmem:[%s414 + $0x8] sm:$0xf]
    %v418 = vld [vmem:[%s414 + $0xc] sm:$0xf]
    %v419 = vld [vmem:[%s414 + $0x10] sm:$0xf]
    %v420 = vld [vmem:[%s414 + $0x14] sm:$0xf]
    %v421 = vld [vmem:[%s414 + $0x18] sm:$0xf]
    %v422 = vld [vmem:[%s414 + $0x1c] sm:$0xf]
    %v423 = vld [vmem:[%s414 + $0x20] sm:$0xf]
    %v424 = vld [vmem:[%s414 + $0x24] sm:$0xf]
    %v425 = vld [vmem:[%s414 + $0x28] sm:$0xf]
    %v426 = vld [vmem:[%s414 + $0x2c] sm:$0xf]
    %v427 = vld [vmem:[%s414 + $0x30] sm:$0xf]
    %v428 = vld [vmem:[%s414 + $0x34] sm:$0xf]
    %v429 = vld [vmem:[%s414 + $0x38] sm:$0xf]
    %v430 = vld [vmem:[%s414 + $0x3c] sm:$0xf]
    %v447 = vunpack.c.l.b16 %v415
    %v448 = vunpack.c.l.b16 %v416
    %v449 = vunpack.c.l.b16 %v417
    %v450 = vunpack.c.l.b16 %v418
    %v451 = vunpack.c.l.b16 %v419
    %v452 = vunpack.c.l.b16 %v420
    %v453 = vunpack.c.l.b16 %v421
    %v454 = vunpack.c.l.b16 %v422
    %v455 = vunpack.c.l.b16 %v423
    %v456 = vunpack.c.l.b16 %v424
    %v457 = vunpack.c.l.b16 %v425
    %v458 = vunpack.c.l.b16 %v426
    %v459 = vunpack.c.l.b16 %v427
    %v460 = vunpack.c.l.b16 %v428
    %v461 = vunpack.c.l.b16 %v429
    %v462 = vunpack.c.l.b16 %v430
    %v463 = vpack.c.b16 %v448, %v447
    %v464 = vpack.c.b16 %v450, %v449
    %v465 = vpack.c.b16 %v452, %v451
    %v466 = vpack.c.b16 %v454, %v453
    %v467 = vpack.c.b16 %v456, %v455
    %v468 = vpack.c.b16 %v458, %v457
    %v469 = vpack.c.b16 %v460, %v459
    %v470 = vpack.c.b16 %v462, %v461
    %479 = vmatprep.subr.bf16.mxu0 0
    %480 = vmatpush1.bf16.msra.mxu0 %v463
    %481 = vmatprep.subr.bf16.mxu0 0
    %482 = vmatpush1.bf16.msra.mxu0 %v464
    %483 = vmatprep.subr.bf16.mxu0 0
    %484 = vmatpush1.bf16.msra.mxu0 %v465
    %485 = vmatprep.subr.bf16.mxu0 0
    %486 = vmatpush1.bf16.msra.mxu0 %v466
    %487 = vmatprep.subr.bf16.mxu0 0
    %488 = vmatpush1.bf16.msra.mxu0 %v467
    %489 = vmatprep.subr.bf16.mxu0 0
    %490 = vmatpush1.bf16.msra.mxu0 %v468
    %491 = vmatprep.subr.bf16.mxu0 0
    %492 = vmatpush1.bf16.msra.mxu0 %v469
    %493 = vmatprep.subr.bf16.mxu0 0
    %494 = vmatpush1.bf16.msra.mxu0 %v470
    %495 = vmatprep.subr.bf16.mxu0 0
    %496 = vmatpush1.bf16.msra.mxu0 0
    %497 = vmatprep.subr.bf16.mxu0 0
    %498 = vmatpush1.bf16.msra.mxu0 0
    %499 = vmatprep.subr.bf16.mxu0 0
    %500 = vmatpush1.bf16.msra.mxu0 0
    %501 = vmatprep.subr.bf16.mxu0 0
    %502 = vmatpush1.bf16.msra.mxu0 0
    %503 = vmatprep.subr.bf16.mxu0 0
    %504 = vmatpush1.bf16.msra.mxu0 0
    %505 = vmatprep.subr.bf16.mxu0 0
    %506 = vmatpush1.bf16.msra.mxu0 0
    %507 = vmatprep.subr.bf16.mxu0 0
    %508 = vmatpush1.bf16.msra.mxu0 0
    %509 = vmatprep.subr.bf16.mxu0 0
    %510 = vmatpush1.bf16.msra.mxu0 0
    %511 = vmatprep.mubr.bf16.mxu0 0
    %512 = vmatmul.mubr.bf16.gmra.mrb[0].mxu0 %v173
    %v513 = vpop.f32.mrb[0].mxu0
    %v514 = vadd.f32 0.0, %v513
    %v515 = vpop.f32.mrb[0].mxu0
    %v516 = vpop.f32.mrb[0].mxu0
    %v517 = vadd.f32 0.0, %v516
    %v518 = vpop.f32.mrb[0].mxu0
    %519 = vmatprep.mubr.bf16.mxu0 0
    %520 = vmatmul.mubr.bf16.gmra.mrb[0].mxu0 %v174
    %v521 = vpop.f32.mrb[0].mxu0
    %v522 = vadd.f32 0.0, %v521
    %v523 = vpop.f32.mrb[0].mxu0
    %v524 = vpop.f32.mrb[0].mxu0
    %v525 = vadd.f32 0.0, %v524
    %v526 = vpop.f32.mrb[0].mxu0
    %527 = vdwg.mxu0
    %v528 = vadd.f32 %v400, %v514
    %v529 = vadd.f32 %v403, %v517
    %v530 = vadd.f32 %v408, %v522
    %v531 = vadd.f32 %v411, %v525
    %v532 = vadd.f32 %v528, %v529
    %v533 = vadd.f32 %v532, %v530
    %v534 = vadd.f32 %v533, %v531
    %v535 = vrot.slane %v534, 4
    %v536 = vadd.f32 %v534, %v535
    %v537 = vrot.slane %v536, 2
    %v538 = vadd.f32 %v536, %v537
    %v539 = vrot.slane %v538, 1
    %v540 = vadd.f32 %v538, %v539
    %v541 = vmul.f32 %v540, 0.03125
    %v542 = vsub.f32 %v528, %v541
    %v543 = vsub.f32 %v529, %v541
    %v544 = vsub.f32 %v530, %v541
    %v545 = vsub.f32 %v531, %v541
    %v546 = vmul.f32 %v542, %v542
    %v547 = vmul.f32 %v543, %v543
    %v548 = vmul.f32 %v544, %v544
    %v549 = vmul.f32 %v545, %v545
    %v550 = vadd.f32 %v546, %v547
    %v551 = vadd.f32 %v550, %v548
    %v552 = vadd.f32 %v551, %v549
    %v553 = vrot.slane %v552, 4
    %v554 = vadd.f32 %v552, %v553
    %v555 = vrot.slane %v554, 2
    %v556 = vadd.f32 %v554, %v555
    %v557 = vrot.slane %v556, 1
    %v558 = vadd.f32 %v556, %v557
    %v559 = vmul.f32 %v558, 0.03125
    %v560 = vld [vmem:[%s2] sm:$0x1]
    %v561 = vadd.f32 %v559, 1e-05
    %v562 = vrsqrt.pop %v561
    %v563 = vmul.f32 %v560, %v562
    %v565 = vlaneseq
    %v566 = vshrl.u32 %v565, 7
    %v567 = vsub.s32 0, %v566
    %v568 = vrot.slane %v563, %v567
    %v570 = vmul.f32 %v542, %v568
    %v571 = vmul.f32 %v543, %v568
    %v572 = vmul.f32 %v544, %v568
    %v573 = vmul.f32 %v545, %v568
    %v574 = vld [vmem:[#allocation8] sm:$0x1]
    %v576 = vlaneseq
    %v577 = vshrl.u32 %v576, 7
    %v578 = vsub.s32 0, %v577
    %v579 = vrot.slane %v574, %v578
    %v581 = vadd.f32 %v570, %v579
    %v582 = vadd.f32 %v571, %v579
    %v583 = vadd.f32 %v572, %v579
    %v584 = vadd.f32 %v573, %v579
    %v585 = vmax.f32 %v581, 0.0
    %v586 = vmax.f32 %v582, 0.0
    %v587 = vmax.f32 %v583, 0.0
    %v588 = vmax.f32 %v584, 0.0
    %v589 = vrot.slane %v585, 7
    %v590 = vrot.slane %v586, 7
    %v591 = vrot.slane %v587, 7
    %v592 = vrot.slane %v588, 7
    %v593 = vsel %vm149, %v591, %v592
    %v594 = vsel %vm149, %v590, %v591
    %v595 = vsel %vm149, %v589, %v590
    %v596 = vsel %vm149, %v592, %v589
    %v597 = vmul.f32 %v596, %v129
    %v598 = vmul.f32 %v595, %v130
    %v599 = vmul.f32 %v594, %v131
    %v600 = vmul.f32 %v593, %v132
    %v601 = vpack.c.bf16 %v598, %v597
    %v602 = vpack.c.bf16 %v600, %v599
    %v603 = vpack.c.bf16 %v586, %v585
    %v604 = vpack.c.bf16 %v588, %v587
    %v605 = vrot.slane %v585, 1
    %v606 = vrot.slane %v586, 1
    %v607 = vrot.slane %v587, 1
    %v608 = vrot.slane %v588, 1
    %v609 = vsel %vm164, %v607, %v608
    %v610 = vsel %vm164, %v606, %v607
    %v611 = vsel %vm164, %v605, %v606
    %v612 = vsel %vm164, %v608, %v605
    %v613 = vmul.f32 %v611, %v141
    %v614 = vmul.f32 %v610, %v142
    %v615 = vmul.f32 %v609, %v143
    %v616 = vmul.f32 %v612, %v144
    %v617 = vpack.c.bf16 %v614, %v613
    %v618 = vpack.c.bf16 %v616, %v615
    %s619 = scalar_lea.vmem [#allocation6], 192
    %v620 = vld [vmem:[%s619] sm:$0xf]
    %v621 = vld [vmem:[%s619 + $0x4] sm:$0xf]
    %v622 = vld [vmem:[%s619 + $0x8] sm:$0xf]
    %v623 = vld [vmem:[%s619 + $0xc] sm:$0xf]
    %v624 = vld [vmem:[%s619 + $0x10] sm:$0xf]
    %v625 = vld [vmem:[%s619 + $0x14] sm:$0xf]
    %v626 = vld [vmem:[%s619 + $0x18] sm:$0xf]
    %v627 = vld [vmem:[%s619 + $0x1c] sm:$0xf]
    %v628 = vld [vmem:[%s619 + $0x20] sm:$0xf]
    %v629 = vld [vmem:[%s619 + $0x24] sm:$0xf]
    %v630 = vld [vmem:[%s619 + $0x28] sm:$0xf]
    %v631 = vld [vmem:[%s619 + $0x2c] sm:$0xf]
    %v632 = vld [vmem:[%s619 + $0x30] sm:$0xf]
    %v633 = vld [vmem:[%s619 + $0x34] sm:$0xf]
    %v634 = vld [vmem:[%s619 + $0x38] sm:$0xf]
    %v635 = vld [vmem:[%s619 + $0x3c] sm:$0xf]
    %s636 = scalar_lea.vmem [#allocation6], 256
    %v637 = vld [vmem:[%s636] sm:$0xf]
    %v638 = vld [vmem:[%s636 + $0x4] sm:$0xf]
    %v639 = vld [vmem:[%s636 + $0x8] sm:$0xf]
    %v640 = vld [vmem:[%s636 + $0xc] sm:$0xf]
    %v641 = vld [vmem:[%s636 + $0x10] sm:$0xf]
    %v642 = vld [vmem:[%s636 + $0x14] sm:$0xf]
    %v643 = vld [vmem:[%s636 + $0x18] sm:$0xf]
    %v644 = vld [vmem:[%s636 + $0x1c] sm:$0xf]
    %v645 = vld [vmem:[%s636 + $0x20] sm:$0xf]
    %v646 = vld [vmem:[%s636 + $0x24] sm:$0xf]
    %v647 = vld [vmem:[%s636 + $0x28] sm:$0xf]
    %v648 = vld [vmem:[%s636 + $0x2c] sm:$0xf]
    %v649 = vld [vmem:[%s636 + $0x30] sm:$0xf]
    %v650 = vld [vmem:[%s636 + $0x34] sm:$0xf]
    %v651 = vld [vmem:[%s636 + $0x38] sm:$0xf]
    %v652 = vld [vmem:[%s636 + $0x3c] sm:$0xf]
    %v669 = vunpack.c.l.b16 %v637
    %v670 = vunpack.c.l.b16 %v638
    %v671 = vunpack.c.l.b16 %v639
    %v672 = vunpack.c.l.b16 %v640
    %v673 = vunpack.c.l.b16 %v641
    %v674 = vunpack.c.l.b16 %v642
    %v675 = vunpack.c.l.b16 %v643
    %v676 = vunpack.c.l.b16 %v644
    %v677 = vunpack.c.l.b16 %v645
    %v678 = vunpack.c.l.b16 %v646
    %v679 = vunpack.c.l.b16 %v647
    %v680 = vunpack.c.l.b16 %v648
    %v681 = vunpack.c.l.b16 %v649
    %v682 = vunpack.c.l.b16 %v650
    %v683 = vunpack.c.l.b16 %v651
    %v684 = vunpack.c.l.b16 %v652
    %v685 = vpack.c.b16 %v670, %v669
    %v686 = vpack.c.b16 %v672, %v671
    %v687 = vpack.c.b16 %v674, %v673
    %v688 = vpack.c.b16 %v676, %v675
    %v689 = vpack.c.b16 %v678, %v677
    %v690 = vpack.c.b16 %v680, %v679
    %v691 = vpack.c.b16 %v682, %v681
    %v692 = vpack.c.b16 %v684, %v683
    %701 = vmatprep.subr.bf16.mxu0 0
    %702 = vmatpush1.bf16.msra.mxu0 %v685
    %703 = vmatprep.subr.bf16.mxu0 0
    %704 = vmatpush1.bf16.msra.mxu0 %v686
    %705 = vmatprep.subr.bf16.mxu0 0
    %706 = vmatpush1.bf16.msra.mxu0 %v687
    %707 = vmatprep.subr.bf16.mxu0 0
    %708 = vmatpush1.bf16.msra.mxu0 %v688
    %709 = vmatprep.subr.bf16.mxu0 0
    %710 = vmatpush1.bf16.msra.mxu0 %v689
    %711 = vmatprep.subr.bf16.mxu0 0
    %712 = vmatpush1.bf16.msra.mxu0 %v690
    %713 = vmatprep.subr.bf16.mxu0 0
    %714 = vmatpush1.bf16.msra.mxu0 %v691
    %715 = vmatprep.subr.bf16.mxu0 0
    %716 = vmatpush1.bf16.msra.mxu0 %v692
    %717 = vmatprep.subr.bf16.mxu0 0
    %718 = vmatpush1.bf16.msra.mxu0 0
    %719 = vmatprep.subr.bf16.mxu0 0
    %720 = vmatpush1.bf16.msra.mxu0 0
    %721 = vmatprep.subr.bf16.mxu0 0
    %722 = vmatpush1.bf16.msra.mxu0 0
    %723 = vmatprep.subr.bf16.mxu0 0
    %724 = vmatpush1.bf16.msra.mxu0 0
    %725 = vmatprep.subr.bf16.mxu0 0
    %726 = vmatpush1.bf16.msra.mxu0 0
    %727 = vmatprep.subr.bf16.mxu0 0
    %728 = vmatpush1.bf16.msra.mxu0 0
    %729 = vmatprep.subr.bf16.mxu0 0
    %730 = vmatpush1.bf16.msra.mxu0 0
    %731 = vmatprep.subr.bf16.mxu0 0
    %732 = vmatpush1.bf16.msra.mxu0 0
    %733 = vmatprep.mubr.bf16.mxu0 0
    %734 = vmatmul.mubr.bf16.gmra.mrb[0].mxu0 %v603
    %v735 = vpop.f32.mrb[0].mxu0
    %v736 = vadd.f32 0.0, %v735
    %v737 = vpop.f32.mrb[0].mxu0
    %v738 = vpop.f32.mrb[0].mxu0
    %v739 = vadd.f32 0.0, %v738
    %v740 = vpop.f32.mrb[0].mxu0
    %741 = vmatprep.mubr.bf16.mxu0 0
    %742 = vmatmul.mubr.bf16.gmra.mrb[0].mxu0 %v604
    %v743 = vpop.f32.mrb[0].mxu0
    %v744 = vadd.f32 0.0, %v743
    %v745 = vpop.f32.mrb[0].mxu0
    %v746 = vpop.f32.mrb[0].mxu0
    %v747 = vadd.f32 0.0, %v746
    %v748 = vpop.f32.mrb[0].mxu0
    %749 = vdwg.mxu0
    %v766 = vunpack.c.l.b16 %v620
    %v767 = vunpack.c.l.b16 %v621
    %v768 = vunpack.c.l.b16 %v622
    %v769 = vunpack.c.l.b16 %v623
    %v770 = vunpack.c.l.b16 %v624
    %v771 = vunpack.c.l.b16 %v625
    %v772 = vunpack.c.l.b16 %v626
    %v773 = vunpack.c.l.b16 %v627
    %v774 = vunpack.c.l.b16 %v628
    %v775 = vunpack.c.l.b16 %v629
    %v776 = vunpack.c.l.b16 %v630
    %v777 = vunpack.c.l.b16 %v631
    %v778 = vunpack.c.l.b16 %v632
    %v779 = vunpack.c.l.b16 %v633
    %v780 = vunpack.c.l.b16 %v634
    %v781 = vunpack.c.l.b16 %v635
    %v782 = vpack.c.b16 %v767, %v766
    %v783 = vpack.c.b16 %v769, %v768
    %v784 = vpack.c.b16 %v771, %v770
    %v785 = vpack.c.b16 %v773, %v772
    %v786 = vpack.c.b16 %v775, %v774
    %v787 = vpack.c.b16 %v777, %v776
    %v788 = vpack.c.b16 %v779, %v778
    %v789 = vpack.c.b16 %v781, %v780
    %798 = vmatprep.subr.bf16.mxu0 0
    %799 = vmatpush1.bf16.msra.mxu0 %v782
    %800 = vmatprep.subr.bf16.mxu0 0
    %801 = vmatpush1.bf16.msra.mxu0 %v783
    %802 = vmatprep.subr.bf16.mxu0 0
    %803 = vmatpush1.bf16.msra.mxu0 %v784
    %804 = vmatprep.subr.bf16.mxu0 0
    %805 = vmatpush1.bf16.msra.mxu0 %v785
    %806 = vmatprep.subr.bf16.mxu0 0
    %807 = vmatpush1.bf16.msra.mxu0 %v786
    %808 = vmatprep.subr.bf16.mxu0 0
    %809 = vmatpush1.bf16.msra.mxu0 %v787
    %810 = vmatprep.subr.bf16.mxu0 0
    %811 = vmatpush1.bf16.msra.mxu0 %v788
    %812 = vmatprep.subr.bf16.mxu0 0
    %813 = vmatpush1.bf16.msra.mxu0 %v789
    %814 = vmatprep.subr.bf16.mxu0 0
    %815 = vmatpush1.bf16.msra.mxu0 0
    %816 = vmatprep.subr.bf16.mxu0 0
    %817 = vmatpush1.bf16.msra.mxu0 0
    %818 = vmatprep.subr.bf16.mxu0 0
    %819 = vmatpush1.bf16.msra.mxu0 0
    %820 = vmatprep.subr.bf16.mxu0 0
    %821 = vmatpush1.bf16.msra.mxu0 0
    %822 = vmatprep.subr.bf16.mxu0 0
    %823 = vmatpush1.bf16.msra.mxu0 0
    %824 = vmatprep.subr.bf16.mxu0 0
    %825 = vmatpush1.bf16.msra.mxu0 0
    %826 = vmatprep.subr.bf16.mxu0 0
    %827 = vmatpush1.bf16.msra.mxu0 0
    %828 = vmatprep.subr.bf16.mxu0 0
    %829 = vmatpush1.bf16.msra.mxu0 0
    %830 = vmatprep.mubr.bf16.mxu0 0
    %831 = vmatmul.mubr.bf16.gmra.mrb[0].mxu0 %v601
    %v832 = vpop.f32.mrb[0].mxu0
    %v833 = vadd.f32 %v736, %v832
    %v834 = vpop.f32.mrb[0].mxu0
    %v835 = vpop.f32.mrb[0].mxu0
    %v836 = vadd.f32 %v739, %v835
    %v837 = vpop.f32.mrb[0].mxu0
    %838 = vmatprep.mubr.bf16.mxu0 0
    %839 = vmatmul.mubr.bf16.gmra.mrb[0].mxu0 %v602
    %v840 = vpop.f32.mrb[0].mxu0
    %v841 = vadd.f32 %v744, %v840
    %v842 = vpop.f32.mrb[0].mxu0
    %v843 = vpop.f32.mrb[0].mxu0
    %v844 = vadd.f32 %v747, %v843
    %v845 = vpop.f32.mrb[0].mxu0
    %846 = vdwg.mxu0
    %s847 = scalar_lea.vmem [#allocation6], 320
    %v848 = vld [vmem:[%s847] sm:$0xf]
    %v849 = vld [vmem:[%s847 + $0x4] sm:$0xf]
    %v850 = vld [vmem:[%s847 + $0x8] sm:$0xf]
    %v851 = vld [vmem:[%s847 + $0xc] sm:$0xf]
    %v852 = vld [vmem:[%s847 + $0x10] sm:$0xf]
    %v853 = vld [vmem:[%s847 + $0x14] sm:$0xf]
    %v854 = vld [vmem:[%s847 + $0x18] sm:$0xf]
    %v855 = vld [vmem:[%s847 + $0x1c] sm:$0xf]
    %v856 = vld [vmem:[%s847 + $0x20] sm:$0xf]
    %v857 = vld [vmem:[%s847 + $0x24] sm:$0xf]
    %v858 = vld [vmem:[%s847 + $0x28] sm:$0xf]
    %v859 = vld [vmem:[%s847 + $0x2c] sm:$0xf]
    %v860 = vld [vmem:[%s847 + $0x30] sm:$0xf]
    %v861 = vld [vmem:[%s847 + $0x34] sm:$0xf]
    %v862 = vld [vmem:[%s847 + $0x38] sm:$0xf]
    %v863 = vld [vmem:[%s847 + $0x3c] sm:$0xf]
    %v880 = vunpack.c.l.b16 %v848
    %v881 = vunpack.c.l.b16 %v849
    %v882 = vunpack.c.l.b16 %v850
    %v883 = vunpack.c.l.b16 %v851
    %v884 = vunpack.c.l.b16 %v852
    %v885 = vunpack.c.l.b16 %v853
    %v886 = vunpack.c.l.b16 %v854
    %v887 = vunpack.c.l.b16 %v855
    %v888 = vunpack.c.l.b16 %v856
    %v889 = vunpack.c.l.b16 %v857
    %v890 = vunpack.c.l.b16 %v858
    %v891 = vunpack.c.l.b16 %v859
    %v892 = vunpack.c.l.b16 %v860
    %v893 = vunpack.c.l.b16 %v861
    %v894 = vunpack.c.l.b16 %v862
    %v895 = vunpack.c.l.b16 %v863
    %v896 = vpack.c.b16 %v881, %v880
    %v897 = vpack.c.b16 %v883, %v882
    %v898 = vpack.c.b16 %v885, %v884
    %v899 = vpack.c.b16 %v887, %v886
    %v900 = vpack.c.b16 %v889, %v888
    %v901 = vpack.c.b16 %v891, %v890
    %v902 = vpack.c.b16 %v893, %v892
    %v903 = vpack.c.b16 %v895, %v894
    %912 = vmatprep.subr.bf16.mxu0 0
    %913 = vmatpush1.bf16.msra.mxu0 %v896
    %914 = vmatprep.subr.bf16.mxu0 0
    %915 = vmatpush1.bf16.msra.mxu0 %v897
    %916 = vmatprep.subr.bf16.mxu0 0
    %917 = vmatpush1.bf16.msra.mxu0 %v898
    %918 = vmatprep.subr.bf16.mxu0 0
    %919 = vmatpush1.bf16.msra.mxu0 %v899
    %920 = vmatprep.subr.bf16.mxu0 0
    %921 = vmatpush1.bf16.msra.mxu0 %v900
    %922 = vmatprep.subr.bf16.mxu0 0
    %923 = vmatpush1.bf16.msra.mxu0 %v901
    %924 = vmatprep.subr.bf16.mxu0 0
    %925 = vmatpush1.bf16.msra.mxu0 %v902
    %926 = vmatprep.subr.bf16.mxu0 0
    %927 = vmatpush1.bf16.msra.mxu0 %v903
    %928 = vmatprep.subr.bf16.mxu0 0
    %929 = vmatpush1.bf16.msra.mxu0 0
    %930 = vmatprep.subr.bf16.mxu0 0
    %931 = vmatpush1.bf16.msra.mxu0 0
    %932 = vmatprep.subr.bf16.mxu0 0
    %933 = vmatpush1.bf16.msra.mxu0 0
    %934 = vmatprep.subr.bf16.mxu0 0
    %935 = vmatpush1.bf16.msra.mxu0 0
    %936 = vmatprep.subr.bf16.mxu0 0
    %937 = vmatpush1.bf16.msra.mxu0 0
    %938 = vmatprep.subr.bf16.mxu0 0
    %939 = vmatpush1.bf16.msra.mxu0 0
    %940 = vmatprep.subr.bf16.mxu0 0
    %941 = vmatpush1.bf16.msra.mxu0 0
    %942 = vmatprep.subr.bf16.mxu0 0
    %943 = vmatpush1.bf16.msra.mxu0 0
    %944 = vmatprep.mubr.bf16.mxu0 0
    %945 = vmatmul.mubr.bf16.gmra.mrb[0].mxu0 %v617
    %v946 = vpop.f32.mrb[0].mxu0
    %v947 = vadd.f32 0.0, %v946
    %v948 = vpop.f32.mrb[0].mxu0
    %v949 = vpop.f32.mrb[0].mxu0
    %v950 = vadd.f32 0.0, %v949
    %v951 = vpop.f32.mrb[0].mxu0
    %952 = vmatprep.mubr.bf16.mxu0 0
    %953 = vmatmul.mubr.bf16.gmra.mrb[0].mxu0 %v618
    %v954 = vpop.f32.mrb[0].mxu0
    %v955 = vadd.f32 0.0, %v954
    %v956 = vpop.f32.mrb[0].mxu0
    %v957 = vpop.f32.mrb[0].mxu0
    %v958 = vadd.f32 0.0, %v957
    %v959 = vpop.f32.mrb[0].mxu0
    %960 = vdwg.mxu0
    %v961 = vadd.f32 %v833, %v947
    %v962 = vadd.f32 %v836, %v950
    %v963 = vadd.f32 %v841, %v955
    %v964 = vadd.f32 %v844, %v958
    %v965 = vadd.f32 %v961, %v962
    %v966 = vadd.f32 %v965, %v963
    %v967 = vadd.f32 %v966, %v964
    %v968 = vrot.slane %v967, 4
    %v969 = vadd.f32 %v967, %v968
    %v970 = vrot.slane %v969, 2
    %v971 = vadd.f32 %v969, %v970
    %v972 = vrot.slane %v971, 1
    %v973 = vadd.f32 %v971, %v972
    %v974 = vmul.f32 %v973, 0.03125
    %v975 = vsub.f32 %v961, %v974
    %v976 = vsub.f32 %v962, %v974
    %v977 = vsub.f32 %v963, %v974
    %v978 = vsub.f32 %v964, %v974
    %v979 = vmul.f32 %v975, %v975
    %v980 = vmul.f32 %v976, %v976
    %v981 = vmul.f32 %v977, %v977
    %v982 = vmul.f32 %v978, %v978
    %v983 = vadd.f32 %v979, %v980
    %v984 = vadd.f32 %v983, %v981
    %v985 = vadd.f32 %v984, %v982
    %v986 = vrot.slane %v985, 4
    %v987 = vadd.f32 %v985, %v986
    %v988 = vrot.slane %v987, 2
    %v989 = vadd.f32 %v987, %v988
    %v990 = vrot.slane %v989, 1
    %v991 = vadd.f32 %v989, %v990
    %v992 = vmul.f32 %v991, 0.03125
    %s993 = scalar_lea.vmem %s2, 1
    %v994 = vld [vmem:[%s993] sm:$0x1]
    %v995 = vadd.f32 %v992, 1e-05
    %v996 = vrsqrt.pop %v995
    %v997 = vmul.f32 %v994, %v996
    %v999 = vlaneseq
    %v1000 = vshrl.u32 %v999, 7
    %v1001 = vsub.s32 0, %v1000
    %v1002 = vrot.slane %v997, %v1001
    %v1004 = vmul.f32 %v975, %v1002
    %v1005 = vmul.f32 %v976, %v1002
    %v1006 = vmul.f32 %v977, %v1002
    %v1007 = vmul.f32 %v978, %v1002
    %s1008 = scalar_lea.vmem [#allocation8], 1
    %v1009 = vld [vmem:[%s1008] sm:$0x1]
    %v1011 = vlaneseq
    %v1012 = vshrl.u32 %v1011, 7
    %v1013 = vsub.s32 0, %v1012
    %v1014 = vrot.slane %v1009, %v1013
    %v1016 = vadd.f32 %v1004, %v1014
    %v1017 = vadd.f32 %v1005, %v1014
    %v1018 = vadd.f32 %v1006, %v1014
    %v1019 = vadd.f32 %v1007, %v1014
    %v1020 = vmax.f32 %v1016, 0.0
    %v1021 = vmax.f32 %v1017, 0.0
    %v1022 = vmax.f32 %v1018, 0.0
    %v1023 = vmax.f32 %v1019, 0.0
    %v1024 = vrot.slane %v1020, 7
    %v1025 = vrot.slane %v1021, 7
    %v1026 = vrot.slane %v1022, 7
    %v1027 = vrot.slane %v1023, 7
    %v1028 = vsel %vm149, %v1026, %v1027
    %v1029 = vsel %vm149, %v1025, %v1026
    %v1030 = vsel %vm149, %v1024, %v1025
    %v1031 = vsel %vm149, %v1027, %v1024
    %v1032 = vmul.f32 %v1031, %v129
    %v1033 = vmul.f32 %v1030, %v130
    %v1034 = vmul.f32 %v1029, %v131
    %v1035 = vmul.f32 %v1028, %v132
    %v1036 = vpack.c.bf16 %v1033, %v1032
    %v1037 = vpack.c.bf16 %v1035, %v1034
    %v1038 = vpack.c.bf16 %v1021, %v1020
    %v1039 = vpack.c.bf16 %v1023, %v1022
    %v1040 = vrot.slane %v1020, 1
    %v1041 = vrot.slane %v1021, 1
    %v1042 = vrot.slane %v1022, 1
    %v1043 = vrot.slane %v1023, 1
    %v1044 = vsel %vm164, %v1042, %v1043
    %v1045 = vsel %vm164, %v1041, %v1042
    %v1046 = vsel %vm164, %v1040, %v1041
    %v1047 = vsel %vm164, %v1043, %v1040
    %v1048 = vmul.f32 %v1046, %v141
    %v1049 = vmul.f32 %v1045, %v142
    %v1050 = vmul.f32 %v1044, %v143
    %v1051 = vmul.f32 %v1047, %v144
    %v1052 = vpack.c.bf16 %v1049, %v1048
    %v1053 = vpack.c.bf16 %v1051, %v1050
    %s1054 = scalar_lea.vmem [#allocation6], 384
    %v1055 = vld [vmem:[%s1054] sm:$0xf]
    %v1056 = vld [vmem:[%s1054 + $0x4] sm:$0xf]
    %v1057 = vld [vmem:[%s1054 + $0x8] sm:$0xf]
    %v1058 = vld [vmem:[%s1054 + $0xc] sm:$0xf]
    %v1059 = vld [vmem:[%s1054 + $0x10] sm:$0xf]
    %v1060 = vld [vmem:[%s1054 + $0x14] sm:$0xf]
    %v1061 = vld [vmem:[%s1054 + $0x18] sm:$0xf]
    %v1062 = vld [vmem:[%s1054 + $0x1c] sm:$0xf]
    %v1063 = vld [vmem:[%s1054 + $0x20] sm:$0xf]
    %v1064 = vld [vmem:[%s1054 + $0x24] sm:$0xf]
    %v1065 = vld [vmem:[%s1054 + $0x28] sm:$0xf]
    %v1066 = vld [vmem:[%s1054 + $0x2c] sm:$0xf]
    %v1067 = vld [vmem:[%s1054 + $0x30] sm:$0xf]
    %v1068 = vld [vmem:[%s1054 + $0x34] sm:$0xf]
    %v1069 = vld [vmem:[%s1054 + $0x38] sm:$0xf]
    %v1070 = vld [vmem:[%s1054 + $0x3c] sm:$0xf]
    %s1071 = scalar_lea.vmem [#allocation6], 448
    %v1072 = vld [vmem:[%s1071] sm:$0xf]
    %v1073 = vld [vmem:[%s1071 + $0x4] sm:$0xf]
    %v1074 = vld [vmem:[%s1071 + $0x8] sm:$0xf]
    %v1075 = vld [vmem:[%s1071 + $0xc] sm:$0xf]
    %v1076 = vld [vmem:[%s1071 + $0x10] sm:$0xf]
    %v1077 = vld [vmem:[%s1071 + $0x14] sm:$0xf]
    %v1078 = vld [vmem:[%s1071 + $0x18] sm:$0xf]
    %v1079 = vld [vmem:[%s1071 + $0x1c] sm:$0xf]
    %v1080 = vld [vmem:[%s1071 + $0x20] sm:$0xf]
    %v1081 = vld [vmem:[%s1071 + $0x24] sm:$0xf]
    %v1082 = vld [vmem:[%s1071 + $0x28] sm:$0xf]
    %v1083 = vld [vmem:[%s1071 + $0x2c] sm:$0xf]
    %v1084 = vld [vmem:[%s1071 + $0x30] sm:$0xf]
    %v1085 = vld [vmem:[%s1071 + $0x34] sm:$0xf]
    %v1086 = vld [vmem:[%s1071 + $0x38] sm:$0xf]
    %v1087 = vld [vmem:[%s1071 + $0x3c] sm:$0xf]
    %v1104 = vunpack.c.l.b16 %v1072
    %v1105 = vunpack.c.l.b16 %v1073
    %v1106 = vunpack.c.l.b16 %v1074
    %v1107 = vunpack.c.l.b16 %v1075
    %v1108 = vunpack.c.l.b16 %v1076
    %v1109 = vunpack.c.l.b16 %v1077
    %v1110 = vunpack.c.l.b16 %v1078
    %v1111 = vunpack.c.l.b16 %v1079
    %v1112 = vunpack.c.l.b16 %v1080
    %v1113 = vunpack.c.l.b16 %v1081
    %v1114 = vunpack.c.l.b16 %v1082
    %v1115 = vunpack.c.l.b16 %v1083
    %v1116 = vunpack.c.l.b16 %v1084
    %v1117 = vunpack.c.l.b16 %v1085
    %v1118 = vunpack.c.l.b16 %v1086
    %v1119 = vunpack.c.l.b16 %v1087
    %v1120 = vpack.c.b16 %v1105, %v1104
    %v1121 = vpack.c.b16 %v1107, %v1106
    %v1122 = vpack.c.b16 %v1109, %v1108
    %v1123 = vpack.c.b16 %v1111, %v1110
    %v1124 = vpack.c.b16 %v1113, %v1112
    %v1125 = vpack.c.b16 %v1115, %v1114
    %v1126 = vpack.c.b16 %v1117, %v1116
    %v1127 = vpack.c.b16 %v1119, %v1118
    %1136 = vmatprep.subr.bf16.mxu0 0
    %1137 = vmatpush1.bf16.msra.mxu0 %v1120
    %1138 = vmatprep.subr.bf16.mxu0 0
    %1139 = vmatpush1.bf16.msra.mxu0 %v1121
    %1140 = vmatprep.subr.bf16.mxu0 0
    %1141 = vmatpush1.bf16.msra.mxu0 %v1122
    %1142 = vmatprep.subr.bf16.mxu0 0
    %1143 = vmatpush1.bf16.msra.mxu0 %v1123
    %1144 = vmatprep.subr.bf16.mxu0 0
    %1145 = vmatpush1.bf16.msra.mxu0 %v1124
    %1146 = vmatprep.subr.bf16.mxu0 0
    %1147 = vmatpush1.bf16.msra.mxu0 %v1125
    %1148 = vmatprep.subr.bf16.mxu0 0
    %1149 = vmatpush1.bf16.msra.mxu0 %v1126
    %1150 = vmatprep.subr.bf16.mxu0 0
    %1151 = vmatpush1.bf16.msra.mxu0 %v1127
    %1152 = vmatprep.subr.bf16.mxu0 0
    %1153 = vmatpush1.bf16.msra.mxu0 0
    %1154 = vmatprep.subr.bf16.mxu0 0
    %1155 = vmatpush1.bf16.msra.mxu0 0
    %1156 = vmatprep.subr.bf16.mxu0 0
    %1157 = vmatpush1.bf16.msra.mxu0 0
    %1158 = vmatprep.subr.bf16.mxu0 0
    %1159 = vmatpush1.bf16.msra.mxu0 0
    %1160 = vmatprep.subr.bf16.mxu0 0
    %1161 = vmatpush1.bf16.msra.mxu0 0
    %1162 = vmatprep.subr.bf16.mxu0 0
    %1163 = vmatpush1.bf16.msra.mxu0 0
    %1164 = vmatprep.subr.bf16.mxu0 0
    %1165 = vmatpush1.bf16.msra.mxu0 0
    %1166 = vmatprep.subr.bf16.mxu0 0
    %1167 = vmatpush1.bf16.msra.mxu0 0
    %1168 = vmatprep.mubr.bf16.mxu0 0
    %1169 = vmatmul.mubr.bf16.gmra.mrb[0].mxu0 %v1038
    %v1170 = vpop.f32.mrb[0].mxu0
    %v1171 = vadd.f32 0.0, %v1170
    %v1172 = vpop.f32.mrb[0].mxu0
    %v1173 = vpop.f32.mrb[0].mxu0
    %v1174 = vadd.f32 0.0, %v1173
    %v1175 = vpop.f32.mrb[0].mxu0
    %1176 = vmatprep.mubr.bf16.mxu0 0
    %1177 = vmatmul.mubr.bf16.gmra.mrb[0].mxu0 %v1039
    %v1178 = vpop.f32.mrb[0].mxu0
    %v1179 = vadd.f32 0.0, %v1178
    %v1180 = vpop.f32.mrb[0].mxu0
    %v1181 = vpop.f32.mrb[0].mxu0
    %v1182 = vadd.f32 0.0, %v1181
    %v1183 = vpop.f32.mrb[0].mxu0
    %1184 = vdwg.mxu0
    %v1201 = vunpack.c.l.b16 %v1055
    %v1202 = vunpack.c.l.b16 %v1056
    %v1203 = vunpack.c.l.b16 %v1057
    %v1204 = vunpack.c.l.b16 %v1058
    %v1205 = vunpack.c.l.b16 %v1059
    %v1206 = vunpack.c.l.b16 %v1060
    %v1207 = vunpack.c.l.b16 %v1061
    %v1208 = vunpack.c.l.b16 %v1062
    %v1209 = vunpack.c.l.b16 %v1063
    %v1210 = vunpack.c.l.b16 %v1064
    %v1211 = vunpack.c.l.b16 %v1065
    %v1212 = vunpack.c.l.b16 %v1066
    %v1213 = vunpack.c.l.b16 %v1067
    %v1214 = vunpack.c.l.b16 %v1068
    %v1215 = vunpack.c.l.b16 %v1069
    %v1216 = vunpack.c.l.b16 %v1070
    %v1217 = vpack.c.b16 %v1202, %v1201
    %v1218 = vpack.c.b16 %v1204, %v1203
    %v1219 = vpack.c.b16 %v1206, %v1205
    %v1220 = vpack.c.b16 %v1208, %v1207
    %v1221 = vpack.c.b16 %v1210, %v1209
    %v1222 = vpack.c.b16 %v1212, %v1211
    %v1223 = vpack.c.b16 %v1214, %v1213
    %v1224 = vpack.c.b16 %v1216, %v1215
    %1233 = vmatprep.subr.bf16.mxu0 0
    %1234 = vmatpush1.bf16.msra.mxu0 %v1217
    %1235 = vmatprep.subr.bf16.mxu0 0
    %1236 = vmatpush1.bf16.msra.mxu0 %v1218
    %1237 = vmatprep.subr.bf16.mxu0 0
    %1238 = vmatpush1.bf16.msra.mxu0 %v1219
    %1239 = vmatprep.subr.bf16.mxu0 0
    %1240 = vmatpush1.bf16.msra.mxu0 %v1220
    %1241 = vmatprep.subr.bf16.mxu0 0
    %1242 = vmatpush1.bf16.msra.mxu0 %v1221
    %1243 = vmatprep.subr.bf16.mxu0 0
    %1244 = vmatpush1.bf16.msra.mxu0 %v1222
    %1245 = vmatprep.subr.bf16.mxu0 0
    %1246 = vmatpush1.bf16.msra.mxu0 %v1223
    %1247 = vmatprep.subr.bf16.mxu0 0
    %1248 = vmatpush1.bf16.msra.mxu0 %v1224
    %1249 = vmatprep.subr.bf16.mxu0 0
    %1250 = vmatpush1.bf16.msra.mxu0 0
    %1251 = vmatprep.subr.bf16.mxu0 0
    %1252 = vmatpush1.bf16.msra.mxu0 0
    %1253 = vmatprep.subr.bf16.mxu0 0
    %1254 = vmatpush1.bf16.msra.mxu0 0
    %1255 = vmatprep.subr.bf16.mxu0 0
    %1256 = vmatpush1.bf16.msra.mxu0 0
    %1257 = vmatprep.subr.bf16.mxu0 0
    %1258 = vmatpush1.bf16.msra.mxu0 0
    %1259 = vmatprep.subr.bf16.mxu0 0
    %1260 = vmatpush1.bf16.msra.mxu0 0
    %1261 = vmatprep.subr.bf16.mxu0 0
    %1262 = vmatpush1.bf16.msra.mxu0 0
    %1263 = vmatprep.subr.bf16.mxu0 0
    %1264 = vmatpush1.bf16.msra.mxu0 0
    %1265 = vmatprep.mubr.bf16.mxu0 0
    %1266 = vmatmul.mubr.bf16.gmra.mrb[0].mxu0 %v1036
    %v1267 = vpop.f32.mrb[0].mxu0
    %v1268 = vadd.f32 %v1171, %v1267
    %v1269 = vpop.f32.mrb[0].mxu0
    %v1270 = vpop.f32.mrb[0].mxu0
    %v1271 = vadd.f32 %v1174, %v1270
    %v1272 = vpop.f32.mrb[0].mxu0
    %1273 = vmatprep.mubr.bf16.mxu0 0
    %1274 = vmatmul.mubr.bf16.gmra.mrb[0].mxu0 %v1037
    %v1275 = vpop.f32.mrb[0].mxu0
    %v1276 = vadd.f32 %v1179, %v1275
    %v1277 = vpop.f32.mrb[0].mxu0
    %v1278 = vpop.f32.mrb[0].mxu0
    %v1279 = vadd.f32 %v1182, %v1278
    %v1280 = vpop.f32.mrb[0].mxu0
    %1281 = vdwg.mxu0
    %s1282 = scalar_lea.vmem [#allocation6], 512
    %v1283 = vld [vmem:[%s1282] sm:$0xf]
    %v1284 = vld [vmem:[%s1282 + $0x4] sm:$0xf]
    %v1285 = vld [vmem:[%s1282 + $0x8] sm:$0xf]
    %v1286 = vld [vmem:[%s1282 + $0xc] sm:$0xf]
    %v1287 = vld [vmem:[%s1282 + $0x10] sm:$0xf]
    %v1288 = vld [vmem:[%s1282 + $0x14] sm:$0xf]
    %v1289 = vld [vmem:[%s1282 + $0x18] sm:$0xf]
    %v1290 = vld [vmem:[%s1282 + $0x1c] sm:$0xf]
    %v1291 = vld [vmem:[%s1282 + $0x20] sm:$0xf]
    %v1292 = vld [vmem:[%s1282 + $0x24] sm:$0xf]
    %v1293 = vld [vmem:[%s1282 + $0x28] sm:$0xf]
    %v1294 = vld [vmem:[%s1282 + $0x2c] sm:$0xf]
    %v1295 = vld [vmem:[%s1282 + $0x30] sm:$0xf]
    %v1296 = vld [vmem:[%s1282 + $0x34] sm:$0xf]
    %v1297 = vld [vmem:[%s1282 + $0x38] sm:$0xf]
    %v1298 = vld [vmem:[%s1282 + $0x3c] sm:$0xf]
    %v1315 = vunpack.c.l.b16 %v1283
    %v1316 = vunpack.c.l.b16 %v1284
    %v1317 = vunpack.c.l.b16 %v1285
    %v1318 = vunpack.c.l.b16 %v1286
    %v1319 = vunpack.c.l.b16 %v1287
    %v1320 = vunpack.c.l.b16 %v1288
    %v1321 = vunpack.c.l.b16 %v1289
    %v1322 = vunpack.c.l.b16 %v1290
    %v1323 = vunpack.c.l.b16 %v1291
    %v1324 = vunpack.c.l.b16 %v1292
    %v1325 = vunpack.c.l.b16 %v1293
    %v1326 = vunpack.c.l.b16 %v1294
    %v1327 = vunpack.c.l.b16 %v1295
    %v1328 = vunpack.c.l.b16 %v1296
    %v1329 = vunpack.c.l.b16 %v1297
    %v1330 = vunpack.c.l.b16 %v1298
    %v1331 = vpack.c.b16 %v1316, %v1315
    %v1332 = vpack.c.b16 %v1318, %v1317
    %v1333 = vpack.c.b16 %v1320, %v1319
    %v1334 = vpack.c.b16 %v1322, %v1321
    %v1335 = vpack.c.b16 %v1324, %v1323
    %v1336 = vpack.c.b16 %v1326, %v1325
    %v1337 = vpack.c.b16 %v1328, %v1327
    %v1338 = vpack.c.b16 %v1330, %v1329
    %1347 = vmatprep.subr.bf16.mxu0 0
    %1348 = vmatpush1.bf16.msra.mxu0 %v1331
    %1349 = vmatprep.subr.bf16.mxu0 0
    %1350 = vmatpush1.bf16.msra.mxu0 %v1332
    %1351 = vmatprep.subr.bf16.mxu0 0
    %1352 = vmatpush1.bf16.msra.mxu0 %v1333
    %1353 = vmatprep.subr.bf16.mxu0 0
    %1354 = vmatpush1.bf16.msra.mxu0 %v1334
    %1355 = vmatprep.subr.bf16.mxu0 0
    %1356 = vmatpush1.bf16.msra.mxu0 %v1335
    %1357 = vmatprep.subr.bf16.mxu0 0
    %1358 = vmatpush1.bf16.msra.mxu0 %v1336
    %1359 = vmatprep.subr.bf16.mxu0 0
    %1360 = vmatpush1.bf16.msra.mxu0 %v1337
    %1361 = vmatprep.subr.bf16.mxu0 0
    %1362 = vmatpush1.bf16.msra.mxu0 %v1338
    %1363 = vmatprep.subr.bf16.mxu0 0
    %1364 = vmatpush1.bf16.msra.mxu0 0
    %1365 = vmatprep.subr.bf16.mxu0 0
    %1366 = vmatpush1.bf16.msra.mxu0 0
    %1367 = vmatprep.subr.bf16.mxu0 0
    %1368 = vmatpush1.bf16.msra.mxu0 0
    %1369 = vmatprep.subr.bf16.mxu0 0
    %1370 = vmatpush1.bf16.msra.mxu0 0
    %1371 = vmatprep.subr.bf16.mxu0 0
    %1372 = vmatpush1.bf16.msra.mxu0 0
    %1373 = vmatprep.subr.bf16.mxu0 0
    %1374 = vmatpush1.bf16.msra.mxu0 0
    %1375 = vmatprep.subr.bf16.mxu0 0
    %1376 = vmatpush1.bf16.msra.mxu0 0
    %1377 = vmatprep.subr.bf16.mxu0 0
    %1378 = vmatpush1.bf16.msra.mxu0 0
    %1379 = vmatprep.mubr.bf16.mxu0 0
    %1380 = vmatmul.mubr.bf16.gmra.mrb[0].mxu0 %v1052
    %v1381 = vpop.f32.mrb[0].mxu0
    %v1382 = vadd.f32 0.0, %v1381
    %v1383 = vpop.f32.mrb[0].mxu0
    %v1384 = vpop.f32.mrb[0].mxu0
    %v1385 = vadd.f32 0.0, %v1384
    %v1386 = vpop.f32.mrb[0].mxu0
    %1387 = vmatprep.mubr.bf16.mxu0 0
    %1388 = vmatmul.mubr.bf16.gmra.mrb[0].mxu0 %v1053
    %v1389 = vpop.f32.mrb[0].mxu0
    %v1390 = vadd.f32 0.0, %v1389
    %v1391 = vpop.f32.mrb[0].mxu0
    %v1392 = vpop.f32.mrb[0].mxu0
    %v1393 = vadd.f32 0.0, %v1392
    %v1394 = vpop.f32.mrb[0].mxu0
    %1395 = vdwg.mxu0
    %v1396 = vadd.f32 %v1268, %v1382
    %v1397 = vadd.f32 %v1271, %v1385
    %v1398 = vadd.f32 %v1276, %v1390
    %v1399 = vadd.f32 %v1279, %v1393
    %v1400 = vadd.f32 %v1396, %v1397
    %v1401 = vadd.f32 %v1400, %v1398
    %v1402 = vadd.f32 %v1401, %v1399
    %v1403 = vrot.slane %v1402, 4
    %v1404 = vadd.f32 %v1402, %v1403
    %v1405 = vrot.slane %v1404, 2
    %v1406 = vadd.f32 %v1404, %v1405
    %v1407 = vrot.slane %v1406, 1
    %v1408 = vadd.f32 %v1406, %v1407
    %v1409 = vmul.f32 %v1408, 0.03125
    %v1410 = vsub.f32 %v1396, %v1409
    %v1411 = vsub.f32 %v1397, %v1409
    %v1412 = vsub.f32 %v1398, %v1409
    %v1413 = vsub.f32 %v1399, %v1409
    %v1414 = vmul.f32 %v1410, %v1410
    %v1415 = vmul.f32 %v1411, %v1411
    %v1416 = vmul.f32 %v1412, %v1412
    %v1417 = vmul.f32 %v1413, %v1413
    %v1418 = vadd.f32 %v1414, %v1415
    %v1419 = vadd.f32 %v1418, %v1416
    %v1420 = vadd.f32 %v1419, %v1417
    %v1421 = vrot.slane %v1420, 4
    %v1422 = vadd.f32 %v1420, %v1421
    %v1423 = vrot.slane %v1422, 2
    %v1424 = vadd.f32 %v1422, %v1423
    %v1425 = vrot.slane %v1424, 1
    %v1426 = vadd.f32 %v1424, %v1425
    %v1427 = vmul.f32 %v1426, 0.03125
    %s1428 = scalar_lea.vmem %s2, 2
    %v1429 = vld [vmem:[%s1428] sm:$0x1]
    %v1430 = vadd.f32 %v1427, 1e-05
    %v1431 = vrsqrt.pop %v1430
    %v1432 = vmul.f32 %v1429, %v1431
    %v1434 = vlaneseq
    %v1435 = vshrl.u32 %v1434, 7
    %v1436 = vsub.s32 0, %v1435
    %v1437 = vrot.slane %v1432, %v1436
    %v1439 = vmul.f32 %v1410, %v1437
    %v1440 = vmul.f32 %v1411, %v1437
    %v1441 = vmul.f32 %v1412, %v1437
    %v1442 = vmul.f32 %v1413, %v1437
    %s1443 = scalar_lea.vmem [#allocation8], 2
    %v1444 = vld [vmem:[%s1443] sm:$0x1]
    %v1446 = vlaneseq
    %v1447 = vshrl.u32 %v1446, 7
    %v1448 = vsub.s32 0, %v1447
    %v1449 = vrot.slane %v1444, %v1448
    %v1451 = vadd.f32 %v1439, %v1449
    %v1452 = vadd.f32 %v1440, %v1449
    %v1453 = vadd.f32 %v1441, %v1449
    %v1454 = vadd.f32 %v1442, %v1449
    %v1455 = vadd.f32 %v1451, %v585
    %v1456 = vadd.f32 %v1452, %v586
    %v1457 = vadd.f32 %v1453, %v587
    %v1458 = vadd.f32 %v1454, %v588
    %v1459 = vmax.f32 %v1455, 0.0
    %v1460 = vmax.f32 %v1456, 0.0
    %v1461 = vmax.f32 %v1457, 0.0
    %v1462 = vmax.f32 %v1458, 0.0
    %v1463 = vrot.slane %v1459, 7
    %v1464 = vrot.slane %v1460, 7
    %v1465 = vrot.slane %v1461, 7
    %v1466 = vrot.slane %v1462, 7
    %v1467 = vsel %vm149, %v1465, %v1466
    %v1468 = vsel %vm149, %v1464, %v1465
    %v1469 = vsel %vm149, %v1463, %v1464
    %v1470 = vsel %vm149, %v1466, %v1463
    %v1471 = vmul.f32 %v1470, %v129
    %v1472 = vmul.f32 %v1469, %v130
    %v1473 = vmul.f32 %v1468, %v131
    %v1474 = vmul.f32 %v1467, %v132
    %v1475 = vpack.c.bf16 %v1472, %v1471
    %v1476 = vpack.c.bf16 %v1474, %v1473
    %v1477 = vpack.c.bf16 %v1460, %v1459
    %v1478 = vpack.c.bf16 %v1462, %v1461
    %v1479 = vrot.slane %v1459, 1
    %v1480 = vrot.slane %v1460, 1
    %v1481 = vrot.slane %v1461, 1
    %v1482 = vrot.slane %v1462, 1
    %v1483 = vsel %vm164, %v1481, %v1482
    %v1484 = vsel %vm164, %v1480, %v1481
    %v1485 = vsel %vm164, %v1479, %v1480
    %v1486 = vsel %vm164, %v1482, %v1479
    %v1487 = vmul.f32 %v1485, %v141
    %v1488 = vmul.f32 %v1484, %v142
    %v1489 = vmul.f32 %v1483, %v143
    %v1490 = vmul.f32 %v1486, %v144
    %v1491 = vpack.c.bf16 %v1488, %v1487
    %v1492 = vpack.c.bf16 %v1490, %v1489
    %s1493 = scalar_lea.vmem [#allocation6], 576
    %v1494 = vld [vmem:[%s1493] sm:$0xf]
    %v1495 = vld [vmem:[%s1493 + $0x4] sm:$0xf]
    %v1496 = vld [vmem:[%s1493 + $0x8] sm:$0xf]
    %v1497 = vld [vmem:[%s1493 + $0xc] sm:$0xf]
    %v1498 = vld [vmem:[%s1493 + $0x10] sm:$0xf]
    %v1499 = vld [vmem:[%s1493 + $0x14] sm:$0xf]
    %v1500 = vld [vmem:[%s1493 + $0x18] sm:$0xf]
    %v1501 = vld [vmem:[%s1493 + $0x1c] sm:$0xf]
    %v1502 = vld [vmem:[%s1493 + $0x20] sm:$0xf]
    %v1503 = vld [vmem:[%s1493 + $0x24] sm:$0xf]
    %v1504 = vld [vmem:[%s1493 + $0x28] sm:$0xf]
    %v1505 = vld [vmem:[%s1493 + $0x2c] sm:$0xf]
    %v1506 = vld [vmem:[%s1493 + $0x30] sm:$0xf]
    %v1507 = vld [vmem:[%s1493 + $0x34] sm:$0xf]
    %v1508 = vld [vmem:[%s1493 + $0x38] sm:$0xf]
    %v1509 = vld [vmem:[%s1493 + $0x3c] sm:$0xf]
    %s1510 = scalar_lea.vmem [#allocation6], 640
    %v1511 = vld [vmem:[%s1510] sm:$0xf]
    %v1512 = vld [vmem:[%s1510 + $0x4] sm:$0xf]
    %v1513 = vld [vmem:[%s1510 + $0x8] sm:$0xf]
    %v1514 = vld [vmem:[%s1510 + $0xc] sm:$0xf]
    %v1515 = vld [vmem:[%s1510 + $0x10] sm:$0xf]
    %v1516 = vld [vmem:[%s1510 + $0x14] sm:$0xf]
    %v1517 = vld [vmem:[%s1510 + $0x18] sm:$0xf]
    %v1518 = vld [vmem:[%s1510 + $0x1c] sm:$0xf]
    %v1519 = vld [vmem:[%s1510 + $0x20] sm:$0xf]
    %v1520 = vld [vmem:[%s1510 + $0x24] sm:$0xf]
    %v1521 = vld [vmem:[%s1510 + $0x28] sm:$0xf]
    %v1522 = vld [vmem:[%s1510 + $0x2c] sm:$0xf]
    %v1523 = vld [vmem:[%s1510 + $0x30] sm:$0xf]
    %v1524 = vld [vmem:[%s1510 + $0x34] sm:$0xf]
    %v1525 = vld [vmem:[%s1510 + $0x38] sm:$0xf]
    %v1526 = vld [vmem:[%s1510 + $0x3c] sm:$0xf]
    %v1543 = vunpack.c.l.b16 %v1511
    %v1544 = vunpack.c.l.b16 %v1512
    %v1545 = vunpack.c.l.b16 %v1513
    %v1546 = vunpack.c.l.b16 %v1514
    %v1547 = vunpack.c.l.b16 %v1515
    %v1548 = vunpack.c.l.b16 %v1516
    %v1549 = vunpack.c.l.b16 %v1517
    %v1550 = vunpack.c.l.b16 %v1518
    %v1551 = vunpack.c.l.b16 %v1519
    %v1552 = vunpack.c.l.b16 %v1520
    %v1553 = vunpack.c.l.b16 %v1521
    %v1554 = vunpack.c.l.b16 %v1522
    %v1555 = vunpack.c.l.b16 %v1523
    %v1556 = vunpack.c.l.b16 %v1524
    %v1557 = vunpack.c.l.b16 %v1525
    %v1558 = vunpack.c.l.b16 %v1526
    %v1559 = vpack.c.b16 %v1544, %v1543
    %v1560 = vpack.c.b16 %v1546, %v1545
    %v1561 = vpack.c.b16 %v1548, %v1547
    %v1562 = vpack.c.b16 %v1550, %v1549
    %v1563 = vpack.c.b16 %v1552, %v1551
    %v1564 = vpack.c.b16 %v1554, %v1553
    %v1565 = vpack.c.b16 %v1556, %v1555
    %v1566 = vpack.c.b16 %v1558, %v1557
    %1575 = vmatprep.subr.bf16.mxu0 0
    %1576 = vmatpush1.bf16.msra.mxu0 %v1559
    %1577 = vmatprep.subr.bf16.mxu0 0
    %1578 = vmatpush1.bf16.msra.mxu0 %v1560
    %1579 = vmatprep.subr.bf16.mxu0 0
    %1580 = vmatpush1.bf16.msra.mxu0 %v1561
    %1581 = vmatprep.subr.bf16.mxu0 0
    %1582 = vmatpush1.bf16.msra.mxu0 %v1562
    %1583 = vmatprep.subr.bf16.mxu0 0
    %1584 = vmatpush1.bf16.msra.mxu0 %v1563
    %1585 = vmatprep.subr.bf16.mxu0 0
    %1586 = vmatpush1.bf16.msra.mxu0 %v1564
    %1587 = vmatprep.subr.bf16.mxu0 0
    %1588 = vmatpush1.bf16.msra.mxu0 %v1565
    %1589 = vmatprep.subr.bf16.mxu0 0
    %1590 = vmatpush1.bf16.msra.mxu0 %v1566
    %1591 = vmatprep.subr.bf16.mxu0 0
    %1592 = vmatpush1.bf16.msra.mxu0 0
    %1593 = vmatprep.subr.bf16.mxu0 0
    %1594 = vmatpush1.bf16.msra.mxu0 0
    %1595 = vmatprep.subr.bf16.mxu0 0
    %1596 = vmatpush1.bf16.msra.mxu0 0
    %1597 = vmatprep.subr.bf16.mxu0 0
    %1598 = vmatpush1.bf16.msra.mxu0 0
    %1599 = vmatprep.subr.bf16.mxu0 0
    %1600 = vmatpush1.bf16.msra.mxu0 0
    %1601 = vmatprep.subr.bf16.mxu0 0
    %1602 = vmatpush1.bf16.msra.mxu0 0
    %1603 = vmatprep.subr.bf16.mxu0 0
    %1604 = vmatpush1.bf16.msra.mxu0 0
    %1605 = vmatprep.subr.bf16.mxu0 0
    %1606 = vmatpush1.bf16.msra.mxu0 0
    %1607 = vmatprep.mubr.bf16.mxu0 0
    %1608 = vmatmul.mubr.bf16.gmra.mrb[0].mxu0 %v1477
    %v1609 = vpop.f32.mrb[0].mxu0
    %v1610 = vadd.f32 0.0, %v1609
    %v1611 = vpop.f32.mrb[0].mxu0
    %v1612 = vpop.f32.mrb[0].mxu0
    %v1613 = vadd.f32 0.0, %v1612
    %v1614 = vpop.f32.mrb[0].mxu0
    %1615 = vmatprep.mubr.bf16.mxu0 0
    %1616 = vmatmul.mubr.bf16.gmra.mrb[0].mxu0 %v1478
    %v1617 = vpop.f32.mrb[0].mxu0
    %v1618 = vadd.f32 0.0, %v1617
    %v1619 = vpop.f32.mrb[0].mxu0
    %v1620 = vpop.f32.mrb[0].mxu0
    %v1621 = vadd.f32 0.0, %v1620
    %v1622 = vpop.f32.mrb[0].mxu0
    %1623 = vdwg.mxu0
    %v1640 = vunpack.c.l.b16 %v1494
    %v1641 = vunpack.c.l.b16 %v1495
    %v1642 = vunpack.c.l.b16 %v1496
    %v1643 = vunpack.c.l.b16 %v1497
    %v1644 = vunpack.c.l.b16 %v1498
    %v1645 = vunpack.c.l.b16 %v1499
    %v1646 = vunpack.c.l.b16 %v1500
    %v1647 = vunpack.c.l.b16 %v1501
    %v1648 = vunpack.c.l.b16 %v1502
    %v1649 = vunpack.c.l.b16 %v1503
    %v1650 = vunpack.c.l.b16 %v1504
    %v1651 = vunpack.c.l.b16 %v1505
    %v1652 = vunpack.c.l.b16 %v1506
    %v1653 = vunpack.c.l.b16 %v1507
    %v1654 = vunpack.c.l.b16 %v1508
    %v1655 = vunpack.c.l.b16 %v1509
    %v1656 = vpack.c.b16 %v1641, %v1640
    %v1657 = vpack.c.b16 %v1643, %v1642
    %v1658 = vpack.c.b16 %v1645, %v1644
    %v1659 = vpack.c.b16 %v1647, %v1646
    %v1660 = vpack.c.b16 %v1649, %v1648
    %v1661 = vpack.c.b16 %v1651, %v1650
    %v1662 = vpack.c.b16 %v1653, %v1652
    %v1663 = vpack.c.b16 %v1655, %v1654
    %1672 = vmatprep.subr.bf16.mxu0 0
    %1673 = vmatpush1.bf16.msra.mxu0 %v1656
    %1674 = vmatprep.subr.bf16.mxu0 0
    %1675 = vmatpush1.bf16.msra.mxu0 %v1657
    %1676 = vmatprep.subr.bf16.mxu0 0
    %1677 = vmatpush1.bf16.msra.mxu0 %v1658
    %1678 = vmatprep.subr.bf16.mxu0 0
    %1679 = vmatpush1.bf16.msra.mxu0 %v1659
    %1680 = vmatprep.subr.bf16.mxu0 0
    %1681 = vmatpush1.bf16.msra.mxu0 %v1660
    %1682 = vmatprep.subr.bf16.mxu0 0
    %1683 = vmatpush1.bf16.msra.mxu0 %v1661
    %1684 = vmatprep.subr.bf16.mxu0 0
    %1685 = vmatpush1.bf16.msra.mxu0 %v1662
    %1686 = vmatprep.subr.bf16.mxu0 0
    %1687 = vmatpush1.bf16.msra.mxu0 %v1663
    %1688 = vmatprep.subr.bf16.mxu0 0
    %1689 = vmatpush1.bf16.msra.mxu0 0
    %1690 = vmatprep.subr.bf16.mxu0 0
    %1691 = vmatpush1.bf16.msra.mxu0 0
    %1692 = vmatprep.subr.bf16.mxu0 0
    %1693 = vmatpush1.bf16.msra.mxu0 0
    %1694 = vmatprep.subr.bf16.mxu0 0
    %1695 = vmatpush1.bf16.msra.mxu0 0
    %1696 = vmatprep.subr.bf16.mxu0 0
    %1697 = vmatpush1.bf16.msra.mxu0 0
    %1698 = vmatprep.subr.bf16.mxu0 0
    %1699 = vmatpush1.bf16.msra.mxu0 0
    %1700 = vmatprep.subr.bf16.mxu0 0
    %1701 = vmatpush1.bf16.msra.mxu0 0
    %1702 = vmatprep.subr.bf16.mxu0 0
    %1703 = vmatpush1.bf16.msra.mxu0 0
    %1704 = vmatprep.mubr.bf16.mxu0 0
    %1705 = vmatmul.mubr.bf16.gmra.mrb[0].mxu0 %v1475
    %v1706 = vpop.f32.mrb[0].mxu0
    %v1707 = vadd.f32 %v1610, %v1706
    %v1708 = vpop.f32.mrb[0].mxu0
    %v1709 = vpop.f32.mrb[0].mxu0
    %v1710 = vadd.f32 %v1613, %v1709
    %v1711 = vpop.f32.mrb[0].mxu0
    %1712 = vmatprep.mubr.bf16.mxu0 0
    %1713 = vmatmul.mubr.bf16.gmra.mrb[0].mxu0 %v1476
    %v1714 = vpop.f32.mrb[0].mxu0
    %v1715 = vadd.f32 %v1618, %v1714
    %v1716 = vpop.f32.mrb[0].mxu0
    %v1717 = vpop.f32.mrb[0].mxu0
    %v1718 = vadd.f32 %v1621, %v1717
    %v1719 = vpop.f32.mrb[0].mxu0
    %1720 = vdwg.mxu0
    %s1721 = scalar_lea.vmem [#allocation6], 704
    %v1722 = vld [vmem:[%s1721] sm:$0xf]
    %v1723 = vld [vmem:[%s1721 + $0x4] sm:$0xf]
    %v1724 = vld [vmem:[%s1721 + $0x8] sm:$0xf]
    %v1725 = vld [vmem:[%s1721 + $0xc] sm:$0xf]
    %v1726 = vld [vmem:[%s1721 + $0x10] sm:$0xf]
    %v1727 = vld [vmem:[%s1721 + $0x14] sm:$0xf]
    %v1728 = vld [vmem:[%s1721 + $0x18] sm:$0xf]
    %v1729 = vld [vmem:[%s1721 + $0x1c] sm:$0xf]
    %v1730 = vld [vmem:[%s1721 + $0x20] sm:$0xf]
    %v1731 = vld [vmem:[%s1721 + $0x24] sm:$0xf]
    %v1732 = vld [vmem:[%s1721 + $0x28] sm:$0xf]
    %v1733 = vld [vmem:[%s1721 + $0x2c] sm:$0xf]
    %v1734 = vld [vmem:[%s1721 + $0x30] sm:$0xf]
    %v1735 = vld [vmem:[%s1721 + $0x34] sm:$0xf]
    %v1736 = vld [vmem:[%s1721 + $0x38] sm:$0xf]
    %v1737 = vld [vmem:[%s1721 + $0x3c] sm:$0xf]
    %v1754 = vunpack.c.l.b16 %v1722
    %v1755 = vunpack.c.l.b16 %v1723
    %v1756 = vunpack.c.l.b16 %v1724
    %v1757 = vunpack.c.l.b16 %v1725
    %v1758 = vunpack.c.l.b16 %v1726
    %v1759 = vunpack.c.l.b16 %v1727
    %v1760 = vunpack.c.l.b16 %v1728
    %v1761 = vunpack.c.l.b16 %v1729
    %v1762 = vunpack.c.l.b16 %v1730
    %v1763 = vunpack.c.l.b16 %v1731
    %v1764 = vunpack.c.l.b16 %v1732
    %v1765 = vunpack.c.l.b16 %v1733
    %v1766 = vunpack.c.l.b16 %v1734
    %v1767 = vunpack.c.l.b16 %v1735
    %v1768 = vunpack.c.l.b16 %v1736
    %v1769 = vunpack.c.l.b16 %v1737
    %v1770 = vpack.c.b16 %v1755, %v1754
    %v1771 = vpack.c.b16 %v1757, %v1756
    %v1772 = vpack.c.b16 %v1759, %v1758
    %v1773 = vpack.c.b16 %v1761, %v1760
    %v1774 = vpack.c.b16 %v1763, %v1762
    %v1775 = vpack.c.b16 %v1765, %v1764
    %v1776 = vpack.c.b16 %v1767, %v1766
    %v1777 = vpack.c.b16 %v1769, %v1768
    %1786 = vmatprep.subr.bf16.mxu0 0
    %1787 = vmatpush1.bf16.msra.mxu0 %v1770
    %1788 = vmatprep.subr.bf16.mxu0 0
    %1789 = vmatpush1.bf16.msra.mxu0 %v1771
    %1790 = vmatprep.subr.bf16.mxu0 0
    %1791 = vmatpush1.bf16.msra.mxu0 %v1772
    %1792 = vmatprep.subr.bf16.mxu0 0
    %1793 = vmatpush1.bf16.msra.mxu0 %v1773
    %1794 = vmatprep.subr.bf16.mxu0 0
    %1795 = vmatpush1.bf16.msra.mxu0 %v1774
    %1796 = vmatprep.subr.bf16.mxu0 0
    %1797 = vmatpush1.bf16.msra.mxu0 %v1775
    %1798 = vmatprep.subr.bf16.mxu0 0
    %1799 = vmatpush1.bf16.msra.mxu0 %v1776
    %1800 = vmatprep.subr.bf16.mxu0 0
    %1801 = vmatpush1.bf16.msra.mxu0 %v1777
    %1802 = vmatprep.subr.bf16.mxu0 0
    %1803 = vmatpush1.bf16.msra.mxu0 0
    %1804 = vmatprep.subr.bf16.mxu0 0
    %1805 = vmatpush1.bf16.msra.mxu0 0
    %1806 = vmatprep.subr.bf16.mxu0 0
    %1807 = vmatpush1.bf16.msra.mxu0 0
    %1808 = vmatprep.subr.bf16.mxu0 0
    %1809 = vmatpush1.bf16.msra.mxu0 0
    %1810 = vmatprep.subr.bf16.mxu0 0
    %1811 = vmatpush1.bf16.msra.mxu0 0
    %1812 = vmatprep.subr.bf16.mxu0 0
    %1813 = vmatpush1.bf16.msra.mxu0 0
    %1814 = vmatprep.subr.bf16.mxu0 0
    %1815 = vmatpush1.bf16.msra.mxu0 0
    %1816 = vmatprep.subr.bf16.mxu0 0
    %1817 = vmatpush1.bf16.msra.mxu0 0
    %1818 = vmatprep.mubr.bf16.mxu0 0
    %1819 = vmatmul.mubr.bf16.gmra.mrb[0].mxu0 %v1491
    %v1820 = vpop.f32.mrb[0].mxu0
    %v1821 = vadd.f32 0.0, %v1820
    %v1822 = vpop.f32.mrb[0].mxu0
    %v1823 = vpop.f32.mrb[0].mxu0
    %v1824 = vadd.f32 0.0, %v1823
    %v1825 = vpop.f32.mrb[0].mxu0
    %1826 = vmatprep.mubr.bf16.mxu0 0
    %1827 = vmatmul.mubr.bf16.gmra.mrb[0].mxu0 %v1492
    %v1828 = vpop.f32.mrb[0].mxu0
    %v1829 = vadd.f32 0.0, %v1828
    %v1830 = vpop.f32.mrb[0].mxu0
    %v1831 = vpop.f32.mrb[0].mxu0
    %v1832 = vadd.f32 0.0, %v1831
    %v1833 = vpop.f32.mrb[0].mxu0
    %1834 = vdwg.mxu0
    %v1835 = vadd.f32 %v1707, %v1821
    %v1836 = vadd.f32 %v1710, %v1824
    %v1837 = vadd.f32 %v1715, %v1829
    %v1838 = vadd.f32 %v1718, %v1832
    %1839 = vst [vmem:[#allocation2] sm:$0xff] %v1835
    %1840 = vst [vmem:[#allocation2 + $0x8] sm:$0xff] %v1836
    %1841 = vst [vmem:[#allocation2 + $0x10] sm:$0xff] %v1837
    %1842 = vst [vmem:[#allocation2 + $0x18] sm:$0xff] %v1838
    %v1843 = vld [vmem:[#allocation2] ss:$2 sm:$0xff]
    %s1844 = scalar_lea.vmem [#allocation2], 16
    %v1845 = vld [vmem:[%s1844] ss:$2 sm:$0xff]
    %v1846 = vadd.f32 %v1843, %v1845
    %v1847 = vrot.slane %v1846, 4
    %v1848 = vadd.f32 %v1846, %v1847
    %v1849 = vrot.slane %v1848, 2
    %v1850 = vadd.f32 %v1848, %v1849
    %v1851 = vrot.slane %v1850, 1
    %v1852 = vadd.f32 %v1850, %v1851
    %v1853 = vmul.f32 %v1852, 0.0625
    %v1854 = vsub.f32 %v1843, %v1853
    %v1855 = vsub.f32 %v1845, %v1853
    %v1856 = vmul.f32 %v1854, %v1854
    %v1857 = vmul.f32 %v1855, %v1855
    %v1858 = vadd.f32 %v1856, %v1857
    %v1859 = vrot.slane %v1858, 4
    %v1860 = vadd.f32 %v1858, %v1859
    %v1861 = vrot.slane %v1860, 2
    %v1862 = vadd.f32 %v1860, %v1861
    %v1863 = vrot.slane %v1862, 1
    %v1864 = vadd.f32 %v1862, %v1863
    %v1865 = vmul.f32 %v1864, 0.0625
    %s1866 = scalar_lea.vmem %s2, 3
    %v1867 = vld [vmem:[%s1866] sm:$0x1]
    %v1868 = vadd.f32 %v1865, 1e-05
    %v1869 = vrsqrt.pop %v1868
    %v1870 = vmul.f32 %v1867, %v1869
    %v1872 = vlaneseq
    %v1873 = vshrl.u32 %v1872, 7
    %v1874 = vsub.s32 0, %v1873
    %v1875 = vrot.slane %v1870, %v1874
    %v1877 = vmul.f32 %v1854, %v1875
    %v1878 = vmul.f32 %v1855, %v1875
    %s1879 = scalar_lea.vmem [#allocation8], 3
    %v1880 = vld [vmem:[%s1879] sm:$0x1]
    %v1882 = vlaneseq
    %v1883 = vshrl.u32 %v1882, 7
    %v1884 = vsub.s32 0, %v1883
    %v1885 = vrot.slane %v1880, %v1884
    %v1887 = vadd.f32 %v1877, %v1885
    %v1888 = vadd.f32 %v1878, %v1885
    %v1889 = vmax.f32 %v1887, 0.0
    %v1890 = vmax.f32 %v1888, 0.0
    %vm1891 = vcmp.lt.s32.totalorder %v69, 0
    %v1892 = vsub.s32 0, %v69
    %v1893 = vsel %vm1891, %v1892, %v69
    %v1894 = vshrl.u32 %v1893, 3
    %v1895 = vand.u32 %v1893, 7
    %v1896 = vsub.s32 0, %v1895
    %v1897 = vsel %vm1891, %v1896, %v1895
    %vm1898 = vcmp.lt.s32.totalorder %v70, 0
    %v1899 = vsub.s32 0, %v70
    %v1900 = vsel %vm1898, %v1899, %v70
    %v1901 = vshrl.u32 %v1900, 3
    %v1902 = vand.u32 %v1900, 7
    %v1903 = vsub.s32 0, %v1902
    %v1904 = vsel %vm1898, %v1903, %v1902
    %vm1905 = vcmp.ne.s32.totalorder %v1897, 0
    %vm1906 = vcmp.ne.s32.totalorder %v1904, 0
    %vm1907 = vcmp.lt.s32.totalorder %v1897, 0
    %vm1908 = vcmp.lt.s32.totalorder %v1904, 0
    %vm1909 = vmand %vm1907, %vm1905
    %vm1910 = vmand %vm1908, %vm1906
    %v1911 = vadd.s32 %v1897, 8
    %v1912 = vadd.s32 %v1904, 8
    %v1913 = vsel %vm1909, %v1911, %v1897
    %v1914 = vsel %vm1910, %v1912, %v1904
    %vm1915 = vcmp.ne.s32.totalorder %v1913, 0
    %vm1916 = vcmp.ne.s32.totalorder %v1914, 0
    %v1917 = vsel %vm1915, 1, 0
    %v1918 = vsel %vm1916, 1, 0
    %v1919 = vcvt.s32.f32 %v1917
    %v1920 = vcvt.s32.f32 %v1918
    %vm1921 = vcmp.ne.s32.totalorder %v1913, 7
    %vm1922 = vcmp.ne.s32.totalorder %v1914, 7
    %v1923 = vsel %vm1921, 1, 0
    %v1924 = vsel %vm1922, 1, 0
    %v1925 = vcvt.s32.f32 %v1923
    %v1926 = vcvt.s32.f32 %v1924
    %v1927 = vrot.slane %v1889, 7
    %v1928 = vrot.slane %v1890, 7
    %v1929 = vsel %vm149, %v1927, %v1928
    %v1930 = vsel %vm149, %v1928, %v1927
    %v1931 = vmul.f32 %v1930, %v1919
    %v1932 = vmul.f32 %v1929, %v1920
    %v1933 = vpack.c.bf16 %v1932, %v1931
    %v1934 = vpack.c.bf16 %v1890, %v1889
    %v1935 = vrot.slane %v1889, 1
    %v1936 = vrot.slane %v1890, 1
    %v1937 = vsel %vm164, %v1935, %v1936
    %v1938 = vsel %vm164, %v1936, %v1935
    %v1939 = vmul.f32 %v1937, %v1925
    %v1940 = vmul.f32 %v1938, %v1926
    %v1941 = vpack.c.bf16 %v1940, %v1939
    %s1942 = scalar_lea.vmem [#allocation6], 768
    %v1943 = vld [vmem:[%s1942] sm:$0xf]
    %v1944 = vld [vmem:[%s1942 + $0x4] sm:$0xf]
    %v1945 = vld [vmem:[%s1942 + $0x8] sm:$0xf]
    %v1946 = vld [vmem:[%s1942 + $0xc] sm:$0xf]
    %v1947 = vld [vmem:[%s1942 + $0x10] sm:$0xf]
    %v1948 = vld [vmem:[%s1942 + $0x14] sm:$0xf]
    %v1949 = vld [vmem:[%s1942 + $0x18] sm:$0xf]
    %v1950 = vld [vmem:[%s1942 + $0x1c] sm:$0xf]
    %v1951 = vld [vmem:[%s1942 + $0x20] sm:$0xf]
    %v1952 = vld [vmem:[%s1942 + $0x24] sm:$0xf]
    %v1953 = vld [vmem:[%s1942 + $0x28] sm:$0xf]
    %v1954 = vld [vmem:[%s1942 + $0x2c] sm:$0xf]
    %v1955 = vld [vmem:[%s1942 + $0x30] sm:$0xf]
    %v1956 = vld [vmem:[%s1942 + $0x34] sm:$0xf]
    %v1957 = vld [vmem:[%s1942 + $0x38] sm:$0xf]
    %v1958 = vld [vmem:[%s1942 + $0x3c] sm:$0xf]
    %s1959 = scalar_lea.vmem [#allocation6], 832
    %v1960 = vld [vmem:[%s1959] sm:$0xf]
    %v1961 = vld [vmem:[%s1959 + $0x4] sm:$0xf]
    %v1962 = vld [vmem:[%s1959 + $0x8] sm:$0xf]
    %v1963 = vld [vmem:[%s1959 + $0xc] sm:$0xf]
    %v1964 = vld [vmem:[%s1959 + $0x10] sm:$0xf]
    %v1965 = vld [vmem:[%s1959 + $0x14] sm:$0xf]
    %v1966 = vld [vmem:[%s1959 + $0x18] sm:$0xf]
    %v1967 = vld [vmem:[%s1959 + $0x1c] sm:$0xf]
    %v1968 = vld [vmem:[%s1959 + $0x20] sm:$0xf]
    %v1969 = vld [vmem:[%s1959 + $0x24] sm:$0xf]
    %v1970 = vld [vmem:[%s1959 + $0x28] sm:$0xf]
    %v1971 = vld [vmem:[%s1959 + $0x2c] sm:$0xf]
    %v1972 = vld [vmem:[%s1959 + $0x30] sm:$0xf]
    %v1973 = vld [vmem:[%s1959 + $0x34] sm:$0xf]
    %v1974 = vld [vmem:[%s1959 + $0x38] sm:$0xf]
    %v1975 = vld [vmem:[%s1959 + $0x3c] sm:$0xf]
    %v1992 = vunpack.c.l.b16 %v1960
    %v1993 = vunpack.c.l.b16 %v1961
    %v1994 = vunpack.c.l.b16 %v1962
    %v1995 = vunpack.c.l.b16 %v1963
    %v1996 = vunpack.c.l.b16 %v1964
    %v1997 = vunpack.c.l.b16 %v1965
    %v1998 = vunpack.c.l.b16 %v1966
    %v1999 = vunpack.c.l.b16 %v1967
    %v2000 = vunpack.c.l.b16 %v1968
    %v2001 = vunpack.c.l.b16 %v1969
    %v2002 = vunpack.c.l.b16 %v1970
    %v2003 = vunpack.c.l.b16 %v1971
    %v2004 = vunpack.c.l.b16 %v1972
    %v2005 = vunpack.c.l.b16 %v1973
    %v2006 = vunpack.c.l.b16 %v1974
    %v2007 = vunpack.c.l.b16 %v1975
    %v2008 = vpack.c.b16 %v1993, %v1992
    %v2009 = vpack.c.b16 %v1995, %v1994
    %v2010 = vpack.c.b16 %v1997, %v1996
    %v2011 = vpack.c.b16 %v1999, %v1998
    %v2012 = vpack.c.b16 %v2001, %v2000
    %v2013 = vpack.c.b16 %v2003, %v2002
    %v2014 = vpack.c.b16 %v2005, %v2004
    %v2015 = vpack.c.b16 %v2007, %v2006
    %2024 = vmatprep.subr.bf16.mxu0 0
    %2025 = vmatpush1.bf16.msra.mxu0 %v2008
    %2026 = vmatprep.subr.bf16.mxu0 0
    %2027 = vmatpush1.bf16.msra.mxu0 %v2009
    %2028 = vmatprep.subr.bf16.mxu0 0
    %2029 = vmatpush1.bf16.msra.mxu0 %v2010
    %2030 = vmatprep.subr.bf16.mxu0 0
    %2031 = vmatpush1.bf16.msra.mxu0 %v2011
    %2032 = vmatprep.subr.bf16.mxu0 0
    %2033 = vmatpush1.bf16.msra.mxu0 %v2012
    %2034 = vmatprep.subr.bf16.mxu0 0
    %2035 = vmatpush1.bf16.msra.mxu0 %v2013
    %2036 = vmatprep.subr.bf16.mxu0 0
    %2037 = vmatpush1.bf16.msra.mxu0 %v2014
    %2038 = vmatprep.subr.bf16.mxu0 0
    %2039 = vmatpush1.bf16.msra.mxu0 %v2015
    %2040 = vmatprep.subr.bf16.mxu0 0
    %2041 = vmatpush1.bf16.msra.mxu0 0
    %2042 = vmatprep.subr.bf16.mxu0 0
    %2043 = vmatpush1.bf16.msra.mxu0 0
    %2044 = vmatprep.subr.bf16.mxu0 0
    %2045 = vmatpush1.bf16.msra.mxu0 0
    %2046 = vmatprep.subr.bf16.mxu0 0
    %2047 = vmatpush1.bf16.msra.mxu0 0
    %2048 = vmatprep.subr.bf16.mxu0 0
    %2049 = vmatpush1.bf16.msra.mxu0 0
    %2050 = vmatprep.subr.bf16.mxu0 0
    %2051 = vmatpush1.bf16.msra.mxu0 0
    %2052 = vmatprep.subr.bf16.mxu0 0
    %2053 = vmatpush1.bf16.msra.mxu0 0
    %2054 = vmatprep.subr.bf16.mxu0 0
    %2055 = vmatpush1.bf16.msra.mxu0 0
    %2056 = vmatprep.mubr.bf16.mxu0 0
    %2057 = vmatmul.mubr.bf16.gmra.mrb[0].mxu0 %v1934
    %v2058 = vpop.f32.mrb[0].mxu0
    %v2059 = vadd.f32 0.0, %v2058
    %v2060 = vpop.f32.mrb[0].mxu0
    %v2061 = vpop.f32.mrb[0].mxu0
    %v2062 = vadd.f32 0.0, %v2061
    %v2063 = vpop.f32.mrb[0].mxu0
    %2064 = vdwg.mxu0
    %v2081 = vunpack.c.l.b16 %v1943
    %v2082 = vunpack.c.l.b16 %v1944
    %v2083 = vunpack.c.l.b16 %v1945
    %v2084 = vunpack.c.l.b16 %v1946
    %v2085 = vunpack.c.l.b16 %v1947
    %v2086 = vunpack.c.l.b16 %v1948
    %v2087 = vunpack.c.l.b16 %v1949
    %v2088 = vunpack.c.l.b16 %v1950
    %v2089 = vunpack.c.l.b16 %v1951
    %v2090 = vunpack.c.l.b16 %v1952
    %v2091 = vunpack.c.l.b16 %v1953
    %v2092 = vunpack.c.l.b16 %v1954
    %v2093 = vunpack.c.l.b16 %v1955
    %v2094 = vunpack.c.l.b16 %v1956
    %v2095 = vunpack.c.l.b16 %v1957
    %v2096 = vunpack.c.l.b16 %v1958
    %v2097 = vpack.c.b16 %v2082, %v2081
    %v2098 = vpack.c.b16 %v2084, %v2083
    %v2099 = vpack.c.b16 %v2086, %v2085
    %v2100 = vpack.c.b16 %v2088, %v2087
    %v2101 = vpack.c.b16 %v2090, %v2089
    %v2102 = vpack.c.b16 %v2092, %v2091
    %v2103 = vpack.c.b16 %v2094, %v2093
    %v2104 = vpack.c.b16 %v2096, %v2095
    %2113 = vmatprep.subr.bf16.mxu0 0
    %2114 = vmatpush1.bf16.msra.mxu0 %v2097
    %2115 = vmatprep.subr.bf16.mxu0 0
    %2116 = vmatpush1.bf16.msra.mxu0 %v2098
    %2117 = vmatprep.subr.bf16.mxu0 0
    %2118 = vmatpush1.bf16.msra.mxu0 %v2099
    %2119 = vmatprep.subr.bf16.mxu0 0
    %2120 = vmatpush1.bf16.msra.mxu0 %v2100
    %2121 = vmatprep.subr.bf16.mxu0 0
    %2122 = vmatpush1.bf16.msra.mxu0 %v2101
    %2123 = vmatprep.subr.bf16.mxu0 0
    %2124 = vmatpush1.bf16.msra.mxu0 %v2102
    %2125 = vmatprep.subr.bf16.mxu0 0
    %2126 = vmatpush1.bf16.msra.mxu0 %v2103
    %2127 = vmatprep.subr.bf16.mxu0 0
    %2128 = vmatpush1.bf16.msra.mxu0 %v2104
    %2129 = vmatprep.subr.bf16.mxu0 0
    %2130 = vmatpush1.bf16.msra.mxu0 0
    %2131 = vmatprep.subr.bf16.mxu0 0
    %2132 = vmatpush1.bf16.msra.mxu0 0
    %2133 = vmatprep.subr.bf16.mxu0 0
    %2134 = vmatpush1.bf16.msra.mxu0 0
    %2135 = vmatprep.subr.bf16.mxu0 0
    %2136 = vmatpush1.bf16.msra.mxu0 0
    %2137 = vmatprep.subr.bf16.mxu0 0
    %2138 = vmatpush1.bf16.msra.mxu0 0
    %2139 = vmatprep.subr.bf16.mxu0 0
    %2140 = vmatpush1.bf16.msra.mxu0 0
    %2141 = vmatprep.subr.bf16.mxu0 0
    %2142 = vmatpush1.bf16.msra.mxu0 0
    %2143 = vmatprep.subr.bf16.mxu0 0
    %2144 = vmatpush1.bf16.msra.mxu0 0
    %2145 = vmatprep.mubr.bf16.mxu0 0
    %2146 = vmatmul.mubr.bf16.gmra.mrb[0].mxu0 %v1933
    %v2147 = vpop.f32.mrb[0].mxu0
    %v2148 = vadd.f32 %v2059, %v2147
    %v2149 = vpop.f32.mrb[0].mxu0
    %v2150 = vpop.f32.mrb[0].mxu0
    %v2151 = vadd.f32 %v2062, %v2150
    %v2152 = vpop.f32.mrb[0].mxu0
    %2153 = vdwg.mxu0
    %s2154 = scalar_lea.vmem [#allocation6], 896
    %v2155 = vld [vmem:[%s2154] sm:$0xf]
    %v2156 = vld [vmem:[%s2154 + $0x4] sm:$0xf]
    %v2157 = vld [vmem:[%s2154 + $0x8] sm:$0xf]
    %v2158 = vld [vmem:[%s2154 + $0xc] sm:$0xf]
    %v2159 = vld [vmem:[%s2154 + $0x10] sm:$0xf]
    %v2160 = vld [vmem:[%s2154 + $0x14] sm:$0xf]
    %v2161 = vld [vmem:[%s2154 + $0x18] sm:$0xf]
    %v2162 = vld [vmem:[%s2154 + $0x1c] sm:$0xf]
    %v2163 = vld [vmem:[%s2154 + $0x20] sm:$0xf]
    %v2164 = vld [vmem:[%s2154 + $0x24] sm:$0xf]
    %v2165 = vld [vmem:[%s2154 + $0x28] sm:$0xf]
    %v2166 = vld [vmem:[%s2154 + $0x2c] sm:$0xf]
    %v2167 = vld [vmem:[%s2154 + $0x30] sm:$0xf]
    %v2168 = vld [vmem:[%s2154 + $0x34] sm:$0xf]
    %v2169 = vld [vmem:[%s2154 + $0x38] sm:$0xf]
    %v2170 = vld [vmem:[%s2154 + $0x3c] sm:$0xf]
    %v2187 = vunpack.c.l.b16 %v2155
    %v2188 = vunpack.c.l.b16 %v2156
    %v2189 = vunpack.c.l.b16 %v2157
    %v2190 = vunpack.c.l.b16 %v2158
    %v2191 = vunpack.c.l.b16 %v2159
    %v2192 = vunpack.c.l.b16 %v2160
    %v2193 = vunpack.c.l.b16 %v2161
    %v2194 = vunpack.c.l.b16 %v2162
    %v2195 = vunpack.c.l.b16 %v2163
    %v2196 = vunpack.c.l.b16 %v2164
    %v2197 = vunpack.c.l.b16 %v2165
    %v2198 = vunpack.c.l.b16 %v2166
    %v2199 = vunpack.c.l.b16 %v2167
    %v2200 = vunpack.c.l.b16 %v2168
    %v2201 = vunpack.c.l.b16 %v2169
    %v2202 = vunpack.c.l.b16 %v2170
    %v2203 = vpack.c.b16 %v2188, %v2187
    %v2204 = vpack.c.b16 %v2190, %v2189
    %v2205 = vpack.c.b16 %v2192, %v2191
    %v2206 = vpack.c.b16 %v2194, %v2193
    %v2207 = vpack.c.b16 %v2196, %v2195
    %v2208 = vpack.c.b16 %v2198, %v2197
    %v2209 = vpack.c.b16 %v2200, %v2199
    %v2210 = vpack.c.b16 %v2202, %v2201
    %2219 = vmatprep.subr.bf16.mxu0 0
    %2220 = vmatpush1.bf16.msra.mxu0 %v2203
    %2221 = vmatprep.subr.bf16.mxu0 0
    %2222 = vmatpush1.bf16.msra.mxu0 %v2204
    %2223 = vmatprep.subr.bf16.mxu0 0
    %2224 = vmatpush1.bf16.msra.mxu0 %v2205
    %2225 = vmatprep.subr.bf16.mxu0 0
    %2226 = vmatpush1.bf16.msra.mxu0 %v2206
    %2227 = vmatprep.subr.bf16.mxu0 0
    %2228 = vmatpush1.bf16.msra.mxu0 %v2207
    %2229 = vmatprep.subr.bf16.mxu0 0
    %2230 = vmatpush1.bf16.msra.mxu0 %v2208
    %2231 = vmatprep.subr.bf16.mxu0 0
    %2232 = vmatpush1.bf16.msra.mxu0 %v2209
    %2233 = vmatprep.subr.bf16.mxu0 0
    %2234 = vmatpush1.bf16.msra.mxu0 %v2210
    %2235 = vmatprep.subr.bf16.mxu0 0
    %2236 = vmatpush1.bf16.msra.mxu0 0
    %2237 = vmatprep.subr.bf16.mxu0 0
    %2238 = vmatpush1.bf16.msra.mxu0 0
    %2239 = vmatprep.subr.bf16.mxu0 0
    %2240 = vmatpush1.bf16.msra.mxu0 0
    %2241 = vmatprep.subr.bf16.mxu0 0
    %2242 = vmatpush1.bf16.msra.mxu0 0
    %2243 = vmatprep.subr.bf16.mxu0 0
    %2244 = vmatpush1.bf16.msra.mxu0 0
    %2245 = vmatprep.subr.bf16.mxu0 0
    %2246 = vmatpush1.bf16.msra.mxu0 0
    %2247 = vmatprep.subr.bf16.mxu0 0
    %2248 = vmatpush1.bf16.msra.mxu0 0
    %2249 = vmatprep.subr.bf16.mxu0 0
    %2250 = vmatpush1.bf16.msra.mxu0 0
    %2251 = vmatprep.mubr.bf16.mxu0 0
    %2252 = vmatmul.mubr.bf16.gmra.mrb[0].mxu0 %v1941
    %v2253 = vpop.f32.mrb[0].mxu0
    %v2254 = vadd.f32 0.0, %v2253
    %v2255 = vpop.f32.mrb[0].mxu0
    %v2256 = vpop.f32.mrb[0].mxu0
    %v2257 = vadd.f32 0.0, %v2256
    %v2258 = vpop.f32.mrb[0].mxu0
    %2259 = vdwg.mxu0
    %v2260 = vadd.f32 %v2148, %v2254
    %v2261 = vadd.f32 %v2151, %v2257
    %v2262 = vadd.f32 %v2260, %v2261
    %v2263 = vrot.slane %v2262, 4
    %v2264 = vadd.f32 %v2262, %v2263
    %v2265 = vrot.slane %v2264, 2
    %v2266 = vadd.f32 %v2264, %v2265
    %v2267 = vrot.slane %v2266, 1
    %v2268 = vadd.f32 %v2266, %v2267
    %v2269 = vmul.f32 %v2268, 0.0625
    %v2270 = vsub.f32 %v2260, %v2269
    %v2271 = vsub.f32 %v2261, %v2269
    %v2272 = vmul.f32 %v2270, %v2270
    %v2273 = vmul.f32 %v2271, %v2271
    %v2274 = vadd.f32 %v2272, %v2273
    %v2275 = vrot.slane %v2274, 4
    %v2276 = vadd.f32 %v2274, %v2275
    %v2277 = vrot.slane %v2276, 2
    %v2278 = vadd.f32 %v2276, %v2277
    %v2279 = vrot.slane %v2278, 1
    %v2280 = vadd.f32 %v2278, %v2279
    %v2281 = vmul.f32 %v2280, 0.0625
    %s2282 = scalar_lea.vmem %s2, 4
    %v2283 = vld [vmem:[%s2282] sm:$0x1]
    %v2284 = vadd.f32 %v2281, 1e-05
    %v2285 = vrsqrt.pop %v2284
    %v2286 = vmul.f32 %v2283, %v2285
    %v2288 = vlaneseq
    %v2289 = vshrl.u32 %v2288, 7
    %v2290 = vsub.s32 0, %v2289
    %v2291 = vrot.slane %v2286, %v2290
    %v2293 = vmul.f32 %v2270, %v2291
    %v2294 = vmul.f32 %v2271, %v2291
    %s2295 = scalar_lea.vmem [#allocation8], 4
    %v2296 = vld [vmem:[%s2295] sm:$0x1]
    %v2298 = vlaneseq
    %v2299 = vshrl.u32 %v2298, 7
    %v2300 = vsub.s32 0, %v2299
    %v2301 = vrot.slane %v2296, %v2300
    %v2303 = vadd.f32 %v2293, %v2301
    %v2304 = vadd.f32 %v2294, %v2301
    %2305 = vst [vmem:[#allocation2] sm:$0xff] %v1459
    %2306 = vst [vmem:[#allocation2 + $0x8] sm:$0xff] %v1460
    %2307 = vst [vmem:[#allocation2 + $0x10] sm:$0xff] %v1461
    %2308 = vst [vmem:[#allocation2 + $0x18] sm:$0xff] %v1462
    %v2309 = vld [vmem:[#allocation2] ss:$2 sm:$0xff]
    %v2310 = vld [vmem:[%s1844] ss:$2 sm:$0xff]
    %2311 = vrot.lane.b32.xlu0 %v2309, 8
    %v2312 = vpop.permute.xlu0 %2311
    %2313 = vrot.lane.b32.xlu0 %v2310, 8
    %v2314 = vpop.permute.xlu0 %2313
    %v2315 = vadd.f32 %v2303, %v2312
    %v2316 = vadd.f32 %v2304, %v2314
    %v2317 = vmax.f32 %v2315, 0.0
    %v2318 = vmax.f32 %v2316, 0.0
    %v2319 = vrot.slane %v2317, 7
    %v2320 = vrot.slane %v2318, 7
    %v2321 = vsel %vm149, %v2319, %v2320
    %v2322 = vsel %vm149, %v2320, %v2319
    %v2323 = vmul.f32 %v2322, %v1919
    %v2324 = vmul.f32 %v2321, %v1920
    %v2325 = vpack.c.bf16 %v2324, %v2323
    %v2326 = vpack.c.bf16 %v2318, %v2317
    %v2327 = vrot.slane %v2317, 1
    %v2328 = vrot.slane %v2318, 1
    %v2329 = vsel %vm164, %v2327, %v2328
    %v2330 = vsel %vm164, %v2328, %v2327
    %v2331 = vmul.f32 %v2329, %v1925
    %v2332 = vmul.f32 %v2330, %v1926
    %v2333 = vpack.c.bf16 %v2332, %v2331
    %s2334 = scalar_lea.vmem [#allocation6], 960
    %v2335 = vld [vmem:[%s2334] sm:$0xf]
    %v2336 = vld [vmem:[%s2334 + $0x4] sm:$0xf]
    %v2337 = vld [vmem:[%s2334 + $0x8] sm:$0xf]
    %v2338 = vld [vmem:[%s2334 + $0xc] sm:$0xf]
    %v2339 = vld [vmem:[%s2334 + $0x10] sm:$0xf]
    %v2340 = vld [vmem:[%s2334 + $0x14] sm:$0xf]
    %v2341 = vld [vmem:[%s2334 + $0x18] sm:$0xf]
    %v2342 = vld [vmem:[%s2334 + $0x1c] sm:$0xf]
    %v2343 = vld [vmem:[%s2334 + $0x20] sm:$0xf]
    %v2344 = vld [vmem:[%s2334 + $0x24] sm:$0xf]
    %v2345 = vld [vmem:[%s2334 + $0x28] sm:$0xf]
    %v2346 = vld [vmem:[%s2334 + $0x2c] sm:$0xf]
    %v2347 = vld [vmem:[%s2334 + $0x30] sm:$0xf]
    %v2348 = vld [vmem:[%s2334 + $0x34] sm:$0xf]
    %v2349 = vld [vmem:[%s2334 + $0x38] sm:$0xf]
    %v2350 = vld [vmem:[%s2334 + $0x3c] sm:$0xf]
    %s2351 = scalar_lea.vmem [#allocation6], 1024
    %v2352 = vld [vmem:[%s2351] sm:$0xf]
    %v2353 = vld [vmem:[%s2351 + $0x4] sm:$0xf]
    %v2354 = vld [vmem:[%s2351 + $0x8] sm:$0xf]
    %v2355 = vld [vmem:[%s2351 + $0xc] sm:$0xf]
    %v2356 = vld [vmem:[%s2351 + $0x10] sm:$0xf]
    %v2357 = vld [vmem:[%s2351 + $0x14] sm:$0xf]
    %v2358 = vld [vmem:[%s2351 + $0x18] sm:$0xf]
    %v2359 = vld [vmem:[%s2351 + $0x1c] sm:$0xf]
    %v2360 = vld [vmem:[%s2351 + $0x20] sm:$0xf]
    %v2361 = vld [vmem:[%s2351 + $0x24] sm:$0xf]
    %v2362 = vld [vmem:[%s2351 + $0x28] sm:$0xf]
    %v2363 = vld [vmem:[%s2351 + $0x2c] sm:$0xf]
    %v2364 = vld [vmem:[%s2351 + $0x30] sm:$0xf]
    %v2365 = vld [vmem:[%s2351 + $0x34] sm:$0xf]
    %v2366 = vld [vmem:[%s2351 + $0x38] sm:$0xf]
    %v2367 = vld [vmem:[%s2351 + $0x3c] sm:$0xf]
    %v2384 = vunpack.c.l.b16 %v2352
    %v2385 = vunpack.c.l.b16 %v2353
    %v2386 = vunpack.c.l.b16 %v2354
    %v2387 = vunpack.c.l.b16 %v2355
    %v2388 = vunpack.c.l.b16 %v2356
    %v2389 = vunpack.c.l.b16 %v2357
    %v2390 = vunpack.c.l.b16 %v2358
    %v2391 = vunpack.c.l.b16 %v2359
    %v2392 = vunpack.c.l.b16 %v2360
    %v2393 = vunpack.c.l.b16 %v2361
    %v2394 = vunpack.c.l.b16 %v2362
    %v2395 = vunpack.c.l.b16 %v2363
    %v2396 = vunpack.c.l.b16 %v2364
    %v2397 = vunpack.c.l.b16 %v2365
    %v2398 = vunpack.c.l.b16 %v2366
    %v2399 = vunpack.c.l.b16 %v2367
    %v2400 = vpack.c.b16 %v2385, %v2384
    %v2401 = vpack.c.b16 %v2387, %v2386
    %v2402 = vpack.c.b16 %v2389, %v2388
    %v2403 = vpack.c.b16 %v2391, %v2390
    %v2404 = vpack.c.b16 %v2393, %v2392
    %v2405 = vpack.c.b16 %v2395, %v2394
    %v2406 = vpack.c.b16 %v2397, %v2396
    %v2407 = vpack.c.b16 %v2399, %v2398
    %2416 = vmatprep.subr.bf16.mxu0 0
    %2417 = vmatpush1.bf16.msra.mxu0 %v2400
    %2418 = vmatprep.subr.bf16.mxu0 0
    %2419 = vmatpush1.bf16.msra.mxu0 %v2401
    %2420 = vmatprep.subr.bf16.mxu0 0
    %2421 = vmatpush1.bf16.msra.mxu0 %v2402
    %2422 = vmatprep.subr.bf16.mxu0 0
    %2423 = vmatpush1.bf16.msra.mxu0 %v2403
    %2424 = vmatprep.subr.bf16.mxu0 0
    %2425 = vmatpush1.bf16.msra.mxu0 %v2404
    %2426 = vmatprep.subr.bf16.mxu0 0
    %2427 = vmatpush1.bf16.msra.mxu0 %v2405
    %2428 = vmatprep.subr.bf16.mxu0 0
    %2429 = vmatpush1.bf16.msra.mxu0 %v2406
    %2430 = vmatprep.subr.bf16.mxu0 0
    %2431 = vmatpush1.bf16.msra.mxu0 %v2407
    %2432 = vmatprep.subr.bf16.mxu0 0
    %2433 = vmatpush1.bf16.msra.mxu0 0
    %2434 = vmatprep.subr.bf16.mxu0 0
    %2435 = vmatpush1.bf16.msra.mxu0 0
    %2436 = vmatprep.subr.bf16.mxu0 0
    %2437 = vmatpush1.bf16.msra.mxu0 0
    %2438 = vmatprep.subr.bf16.mxu0 0
    %2439 = vmatpush1.bf16.msra.mxu0 0
    %2440 = vmatprep.subr.bf16.mxu0 0
    %2441 = vmatpush1.bf16.msra.mxu0 0
    %2442 = vmatprep.subr.bf16.mxu0 0
    %2443 = vmatpush1.bf16.msra.mxu0 0
    %2444 = vmatprep.subr.bf16.mxu0 0
    %2445 = vmatpush1.bf16.msra.mxu0 0
    %2446 = vmatprep.subr.bf16.mxu0 0
    %2447 = vmatpush1.bf16.msra.mxu0 0
    %2448 = vmatprep.mubr.bf16.mxu0 0
    %2449 = vmatmul.mubr.bf16.gmra.mrb[0].mxu0 %v2326
    %v2450 = vpop.f32.mrb[0].mxu0
    %v2451 = vadd.f32 0.0, %v2450
    %v2452 = vpop.f32.mrb[0].mxu0
    %v2453 = vpop.f32.mrb[0].mxu0
    %v2454 = vadd.f32 0.0, %v2453
    %v2455 = vpop.f32.mrb[0].mxu0
    %2456 = vdwg.mxu0
    %v2473 = vunpack.c.l.b16 %v2335
    %v2474 = vunpack.c.l.b16 %v2336
    %v2475 = vunpack.c.l.b16 %v2337
    %v2476 = vunpack.c.l.b16 %v2338
    %v2477 = vunpack.c.l.b16 %v2339
    %v2478 = vunpack.c.l.b16 %v2340
    %v2479 = vunpack.c.l.b16 %v2341
    %v2480 = vunpack.c.l.b16 %v2342
    %v2481 = vunpack.c.l.b16 %v2343
    %v2482 = vunpack.c.l.b16 %v2344
    %v2483 = vunpack.c.l.b16 %v2345
    %v2484 = vunpack.c.l.b16 %v2346
    %v2485 = vunpack.c.l.b16 %v2347
    %v2486 = vunpack.c.l.b16 %v2348
    %v2487 = vunpack.c.l.b16 %v2349
    %v2488 = vunpack.c.l.b16 %v2350
    %v2489 = vpack.c.b16 %v2474, %v2473
    %v2490 = vpack.c.b16 %v2476, %v2475
    %v2491 = vpack.c.b16 %v2478, %v2477
    %v2492 = vpack.c.b16 %v2480, %v2479
    %v2493 = vpack.c.b16 %v2482, %v2481
    %v2494 = vpack.c.b16 %v2484, %v2483
    %v2495 = vpack.c.b16 %v2486, %v2485
    %v2496 = vpack.c.b16 %v2488, %v2487
    %2505 = vmatprep.subr.bf16.mxu0 0
    %2506 = vmatpush1.bf16.msra.mxu0 %v2489
    %2507 = vmatprep.subr.bf16.mxu0 0
    %2508 = vmatpush1.bf16.msra.mxu0 %v2490
    %2509 = vmatprep.subr.bf16.mxu0 0
    %2510 = vmatpush1.bf16.msra.mxu0 %v2491
    %2511 = vmatprep.subr.bf16.mxu0 0
    %2512 = vmatpush1.bf16.msra.mxu0 %v2492
    %2513 = vmatprep.subr.bf16.mxu0 0
    %2514 = vmatpush1.bf16.msra.mxu0 %v2493
    %2515 = vmatprep.subr.bf16.mxu0 0
    %2516 = vmatpush1.bf16.msra.mxu0 %v2494
    %2517 = vmatprep.subr.bf16.mxu0 0
    %2518 = vmatpush1.bf16.msra.mxu0 %v2495
    %2519 = vmatprep.subr.bf16.mxu0 0
    %2520 = vmatpush1.bf16.msra.mxu0 %v2496
    %2521 = vmatprep.subr.bf16.mxu0 0
    %2522 = vmatpush1.bf16.msra.mxu0 0
    %2523 = vmatprep.subr.bf16.mxu0 0
    %2524 = vmatpush1.bf16.msra.mxu0 0
    %2525 = vmatprep.subr.bf16.mxu0 0
    %2526 = vmatpush1.bf16.msra.mxu0 0
    %2527 = vmatprep.subr.bf16.mxu0 0
    %2528 = vmatpush1.bf16.msra.mxu0 0
    %2529 = vmatprep.subr.bf16.mxu0 0
    %2530 = vmatpush1.bf16.msra.mxu0 0
    %2531 = vmatprep.subr.bf16.mxu0 0
    %2532 = vmatpush1.bf16.msra.mxu0 0
    %2533 = vmatprep.subr.bf16.mxu0 0
    %2534 = vmatpush1.bf16.msra.mxu0 0
    %2535 = vmatprep.subr.bf16.mxu0 0
    %2536 = vmatpush1.bf16.msra.mxu0 0
    %2537 = vmatprep.mubr.bf16.mxu0 0
    %2538 = vmatmul.mubr.bf16.gmra.mrb[0].mxu0 %v2325
    %v2539 = vpop.f32.mrb[0].mxu0
    %v2540 = vadd.f32 %v2451, %v2539
    %v2541 = vpop.f32.mrb[0].mxu0
    %v2542 = vpop.f32.mrb[0].mxu0
    %v2543 = vadd.f32 %v2454, %v2542
    %v2544 = vpop.f32.mrb[0].mxu0
    %2545 = vdwg.mxu0
    %s2546 = scalar_lea.vmem [#allocation6], 1088
    %v2547 = vld [vmem:[%s2546] sm:$0xf]
    %v2548 = vld [vmem:[%s2546 + $0x4] sm:$0xf]
    %v2549 = vld [vmem:[%s2546 + $0x8] sm:$0xf]
    %v2550 = vld [vmem:[%s2546 + $0xc] sm:$0xf]
    %v2551 = vld [vmem:[%s2546 + $0x10] sm:$0xf]
    %v2552 = vld [vmem:[%s2546 + $0x14] sm:$0xf]
    %v2553 = vld [vmem:[%s2546 + $0x18] sm:$0xf]
    %v2554 = vld [vmem:[%s2546 + $0x1c] sm:$0xf]
    %v2555 = vld [vmem:[%s2546 + $0x20] sm:$0xf]
    %v2556 = vld [vmem:[%s2546 + $0x24] sm:$0xf]
    %v2557 = vld [vmem:[%s2546 + $0x28] sm:$0xf]
    %v2558 = vld [vmem:[%s2546 + $0x2c] sm:$0xf]
    %v2559 = vld [vmem:[%s2546 + $0x30] sm:$0xf]
    %v2560 = vld [vmem:[%s2546 + $0x34] sm:$0xf]
    %v2561 = vld [vmem:[%s2546 + $0x38] sm:$0xf]
    %v2562 = vld [vmem:[%s2546 + $0x3c] sm:$0xf]
    %v2579 = vunpack.c.l.b16 %v2547
    %v2580 = vunpack.c.l.b16 %v2548
    %v2581 = vunpack.c.l.b16 %v2549
    %v2582 = vunpack.c.l.b16 %v2550
    %v2583 = vunpack.c.l.b16 %v2551
    %v2584 = vunpack.c.l.b16 %v2552
    %v2585 = vunpack.c.l.b16 %v2553
    %v2586 = vunpack.c.l.b16 %v2554
    %v2587 = vunpack.c.l.b16 %v2555
    %v2588 = vunpack.c.l.b16 %v2556
    %v2589 = vunpack.c.l.b16 %v2557
    %v2590 = vunpack.c.l.b16 %v2558
    %v2591 = vunpack.c.l.b16 %v2559
    %v2592 = vunpack.c.l.b16 %v2560
    %v2593 = vunpack.c.l.b16 %v2561
    %v2594 = vunpack.c.l.b16 %v2562
    %v2595 = vpack.c.b16 %v2580, %v2579
    %v2596 = vpack.c.b16 %v2582, %v2581
    %v2597 = vpack.c.b16 %v2584, %v2583
    %v2598 = vpack.c.b16 %v2586, %v2585
    %v2599 = vpack.c.b16 %v2588, %v2587
    %v2600 = vpack.c.b16 %v2590, %v2589
    %v2601 = vpack.c.b16 %v2592, %v2591
    %v2602 = vpack.c.b16 %v2594, %v2593
    %2611 = vmatprep.subr.bf16.mxu0 0
    %2612 = vmatpush1.bf16.msra.mxu0 %v2595
    %2613 = vmatprep.subr.bf16.mxu0 0
    %2614 = vmatpush1.bf16.msra.mxu0 %v2596
    %2615 = vmatprep.subr.bf16.mxu0 0
    %2616 = vmatpush1.bf16.msra.mxu0 %v2597
    %2617 = vmatprep.subr.bf16.mxu0 0
    %2618 = vmatpush1.bf16.msra.mxu0 %v2598
    %2619 = vmatprep.subr.bf16.mxu0 0
    %2620 = vmatpush1.bf16.msra.mxu0 %v2599
    %2621 = vmatprep.subr.bf16.mxu0 0
    %2622 = vmatpush1.bf16.msra.mxu0 %v2600
    %2623 = vmatprep.subr.bf16.mxu0 0
    %2624 = vmatpush1.bf16.msra.mxu0 %v2601
    %2625 = vmatprep.subr.bf16.mxu0 0
    %2626 = vmatpush1.bf16.msra.mxu0 %v2602
    %2627 = vmatprep.subr.bf16.mxu0 0
    %2628 = vmatpush1.bf16.msra.mxu0 0
    %2629 = vmatprep.subr.bf16.mxu0 0
    %2630 = vmatpush1.bf16.msra.mxu0 0
    %2631 = vmatprep.subr.bf16.mxu0 0
    %2632 = vmatpush1.bf16.msra.mxu0 0
    %2633 = vmatprep.subr.bf16.mxu0 0
    %2634 = vmatpush1.bf16.msra.mxu0 0
    %2635 = vmatprep.subr.bf16.mxu0 0
    %2636 = vmatpush1.bf16.msra.mxu0 0
    %2637 = vmatprep.subr.bf16.mxu0 0
    %2638 = vmatpush1.bf16.msra.mxu0 0
    %2639 = vmatprep.subr.bf16.mxu0 0
    %2640 = vmatpush1.bf16.msra.mxu0 0
    %2641 = vmatprep.subr.bf16.mxu0 0
    %2642 = vmatpush1.bf16.msra.mxu0 0
    %2643 = vmatprep.mubr.bf16.mxu0 0
    %2644 = vmatmul.mubr.bf16.gmra.mrb[0].mxu0 %v2333
    %v2645 = vpop.f32.mrb[0].mxu0
    %v2646 = vadd.f32 0.0, %v2645
    %v2647 = vpop.f32.mrb[0].mxu0
    %v2648 = vpop.f32.mrb[0].mxu0
    %v2649 = vadd.f32 0.0, %v2648
    %v2650 = vpop.f32.mrb[0].mxu0
    %2651 = vdwg.mxu0
    %v2652 = vadd.f32 %v2540, %v2646
    %v2653 = vadd.f32 %v2543, %v2649
    %2654 = vst [vmem:[#allocation2] sm:$0xff] %v2652
    %2655 = vst [vmem:[#allocation2 + $0x8] sm:$0xff] %v2653
    %v2656 = vld [vmem:[#allocation2] ss:$2 sm:$0xff]
    %v2657 = vrot.slane %v2656, 4
    %v2658 = vadd.f32 %v2656, %v2657
    %v2659 = vrot.slane %v2658, 2
    %v2660 = vadd.f32 %v2658, %v2659
    %v2661 = vrot.slane %v2660, 1
    %v2662 = vadd.f32 %v2660, %v2661
    %v2663 = vmul.f32 %v2662, 0.125
    %v2664 = vsub.f32 %v2656, %v2663
    %v2665 = vmul.f32 %v2664, %v2664
    %v2666 = vrot.slane %v2665, 4
    %v2667 = vadd.f32 %v2665, %v2666
    %v2668 = vrot.slane %v2667, 2
    %v2669 = vadd.f32 %v2667, %v2668
    %v2670 = vrot.slane %v2669, 1
    %v2671 = vadd.f32 %v2669, %v2670
    %v2672 = vmul.f32 %v2671, 0.125
    %s2673 = scalar_lea.vmem %s2, 5
    %v2674 = vld [vmem:[%s2673] sm:$0x1]
    %v2675 = vadd.f32 %v2672, 1e-05
    %v2676 = vrsqrt.pop %v2675
    %v2677 = vmul.f32 %v2674, %v2676
    %v2679 = vlaneseq
    %v2680 = vshrl.u32 %v2679, 7
    %v2681 = vsub.s32 0, %v2680
    %v2682 = vrot.slane %v2677, %v2681
    %v2684 = vmul.f32 %v2664, %v2682
    %s2685 = scalar_lea.vmem [#allocation8], 5
    %v2686 = vld [vmem:[%s2685] sm:$0x1]
    %v2688 = vlaneseq
    %v2689 = vshrl.u32 %v2688, 7
    %v2690 = vsub.s32 0, %v2689
    %v2691 = vrot.slane %v2686, %v2690
    %v2693 = vadd.f32 %v2684, %v2691
    %v2694 = vmax.f32 %v2693, 0.0
    %vm2695 = vcmp.lt.s32.totalorder %v69, 0
    %v2696 = vsub.s32 0, %v69
    %v2697 = vsel %vm2695, %v2696, %v69
    %v2698 = vshrl.u32 %v2697, 2
    %v2699 = vand.u32 %v2697, 3
    %v2700 = vsub.s32 0, %v2699
    %v2701 = vsel %vm2695, %v2700, %v2699
    %vm2702 = vcmp.ne.s32.totalorder %v2701, 0
    %vm2703 = vcmp.lt.s32.totalorder %v2701, 0
    %vm2704 = vmand %vm2703, %vm2702
    %v2705 = vadd.s32 %v2701, 4
    %v2706 = vsel %vm2704, %v2705, %v2701
    %vm2707 = vcmp.ne.s32.totalorder %v2706, 0
    %v2708 = vsel %vm2707, 1, 0
    %v2709 = vcvt.s32.f32 %v2708
    %vm2710 = vcmp.ne.s32.totalorder %v2706, 3
    %v2711 = vsel %vm2710, 1, 0
    %v2712 = vcvt.s32.f32 %v2711
    %v2713 = vrot.slane %v2694, 7
    %v2714 = vmul.f32 %v2713, %v2709
    %v2715 = vpack.c.bf16 %v2714, %v2714
    %v2716 = vpack.c.bf16 %v2694, %v2694
    %v2717 = vrot.slane %v2694, 1
    %v2718 = vmul.f32 %v2717, %v2712
    %v2719 = vpack.c.bf16 %v2718, %v2718
    %s2720 = scalar_lea.vmem [#allocation6], 1152
    %v2721 = vld [vmem:[%s2720] sm:$0xf]
    %v2722 = vld [vmem:[%s2720 + $0x4] sm:$0xf]
    %v2723 = vld [vmem:[%s2720 + $0x8] sm:$0xf]
    %v2724 = vld [vmem:[%s2720 + $0xc] sm:$0xf]
    %v2725 = vld [vmem:[%s2720 + $0x10] sm:$0xf]
    %v2726 = vld [vmem:[%s2720 + $0x14] sm:$0xf]
    %v2727 = vld [vmem:[%s2720 + $0x18] sm:$0xf]
    %v2728 = vld [vmem:[%s2720 + $0x1c] sm:$0xf]
    %v2729 = vld [vmem:[%s2720 + $0x20] sm:$0xf]
    %v2730 = vld [vmem:[%s2720 + $0x24] sm:$0xf]
    %v2731 = vld [vmem:[%s2720 + $0x28] sm:$0xf]
    %v2732 = vld [vmem:[%s2720 + $0x2c] sm:$0xf]
    %v2733 = vld [vmem:[%s2720 + $0x30] sm:$0xf]
    %v2734 = vld [vmem:[%s2720 + $0x34] sm:$0xf]
    %v2735 = vld [vmem:[%s2720 + $0x38] sm:$0xf]
    %v2736 = vld [vmem:[%s2720 + $0x3c] sm:$0xf]
    %s2737 = scalar_lea.vmem [#allocation6], 1216
    %v2738 = vld [vmem:[%s2737] sm:$0xf]
    %v2739 = vld [vmem:[%s2737 + $0x4] sm:$0xf]
    %v2740 = vld [vmem:[%s2737 + $0x8] sm:$0xf]
    %v2741 = vld [vmem:[%s2737 + $0xc] sm:$0xf]
    %v2742 = vld [vmem:[%s2737 + $0x10] sm:$0xf]
    %v2743 = vld [vmem:[%s2737 + $0x14] sm:$0xf]
    %v2744 = vld [vmem:[%s2737 + $0x18] sm:$0xf]
    %v2745 = vld [vmem:[%s2737 + $0x1c] sm:$0xf]
    %v2746 = vld [vmem:[%s2737 + $0x20] sm:$0xf]
    %v2747 = vld [vmem:[%s2737 + $0x24] sm:$0xf]
    %v2748 = vld [vmem:[%s2737 + $0x28] sm:$0xf]
    %v2749 = vld [vmem:[%s2737 + $0x2c] sm:$0xf]
    %v2750 = vld [vmem:[%s2737 + $0x30] sm:$0xf]
    %v2751 = vld [vmem:[%s2737 + $0x34] sm:$0xf]
    %v2752 = vld [vmem:[%s2737 + $0x38] sm:$0xf]
    %v2753 = vld [vmem:[%s2737 + $0x3c] sm:$0xf]
    %v2770 = vunpack.c.l.b16 %v2738
    %v2771 = vunpack.c.l.b16 %v2739
    %v2772 = vunpack.c.l.b16 %v2740
    %v2773 = vunpack.c.l.b16 %v2741
    %v2774 = vunpack.c.l.b16 %v2742
    %v2775 = vunpack.c.l.b16 %v2743
    %v2776 = vunpack.c.l.b16 %v2744
    %v2777 = vunpack.c.l.b16 %v2745
    %v2778 = vunpack.c.l.b16 %v2746
    %v2779 = vunpack.c.l.b16 %v2747
    %v2780 = vunpack.c.l.b16 %v2748
    %v2781 = vunpack.c.l.b16 %v2749
    %v2782 = vunpack.c.l.b16 %v2750
    %v2783 = vunpack.c.l.b16 %v2751
    %v2784 = vunpack.c.l.b16 %v2752
    %v2785 = vunpack.c.l.b16 %v2753
    %v2786 = vpack.c.b16 %v2771, %v2770
    %v2787 = vpack.c.b16 %v2773, %v2772
    %v2788 = vpack.c.b16 %v2775, %v2774
    %v2789 = vpack.c.b16 %v2777, %v2776
    %v2790 = vpack.c.b16 %v2779, %v2778
    %v2791 = vpack.c.b16 %v2781, %v2780
    %v2792 = vpack.c.b16 %v2783, %v2782
    %v2793 = vpack.c.b16 %v2785, %v2784
    %2802 = vmatprep.subr.bf16.mxu0 0
    %2803 = vmatpush1.bf16.msra.mxu0 %v2786
    %2804 = vmatprep.subr.bf16.mxu0 0
    %2805 = vmatpush1.bf16.msra.mxu0 %v2787
    %2806 = vmatprep.subr.bf16.mxu0 0
    %2807 = vmatpush1.bf16.msra.mxu0 %v2788
    %2808 = vmatprep.subr.bf16.mxu0 0
    %2809 = vmatpush1.bf16.msra.mxu0 %v2789
    %2810 = vmatprep.subr.bf16.mxu0 0
    %2811 = vmatpush1.bf16.msra.mxu0 %v2790
    %2812 = vmatprep.subr.bf16.mxu0 0
    %2813 = vmatpush1.bf16.msra.mxu0 %v2791
    %2814 = vmatprep.subr.bf16.mxu0 0
    %2815 = vmatpush1.bf16.msra.mxu0 %v2792
    %2816 = vmatprep.subr.bf16.mxu0 0
    %2817 = vmatpush1.bf16.msra.mxu0 %v2793
    %2818 = vmatprep.subr.bf16.mxu0 0
    %2819 = vmatpush1.bf16.msra.mxu0 0
    %2820 = vmatprep.subr.bf16.mxu0 0
    %2821 = vmatpush1.bf16.msra.mxu0 0
    %2822 = vmatprep.subr.bf16.mxu0 0
    %2823 = vmatpush1.bf16.msra.mxu0 0
    %2824 = vmatprep.subr.bf16.mxu0 0
    %2825 = vmatpush1.bf16.msra.mxu0 0
    %2826 = vmatprep.subr.bf16.mxu0 0
    %2827 = vmatpush1.bf16.msra.mxu0 0
    %2828 = vmatprep.subr.bf16.mxu0 0
    %2829 = vmatpush1.bf16.msra.mxu0 0
    %2830 = vmatprep.subr.bf16.mxu0 0
    %2831 = vmatpush1.bf16.msra.mxu0 0
    %2832 = vmatprep.subr.bf16.mxu0 0
    %2833 = vmatpush1.bf16.msra.mxu0 0
    %2834 = vmatprep.mubr.bf16.mxu0 0
    %2835 = vmatmul.mubr.bf16.gmra.mrb[0].mxu0 %v2716
    %v2836 = vpop.f32.mrb[0].mxu0
    %v2837 = vadd.f32 0.0, %v2836
    %v2838 = vpop.f32.mrb[0].mxu0
    %v2839 = vpop.f32.mrb[0].mxu0
    %v2840 = vpop.f32.mrb[0].mxu0
    %2841 = vdwg.mxu0
    %v2858 = vunpack.c.l.b16 %v2721
    %v2859 = vunpack.c.l.b16 %v2722
    %v2860 = vunpack.c.l.b16 %v2723
    %v2861 = vunpack.c.l.b16 %v2724
    %v2862 = vunpack.c.l.b16 %v2725
    %v2863 = vunpack.c.l.b16 %v2726
    %v2864 = vunpack.c.l.b16 %v2727
    %v2865 = vunpack.c.l.b16 %v2728
    %v2866 = vunpack.c.l.b16 %v2729
    %v2867 = vunpack.c.l.b16 %v2730
    %v2868 = vunpack.c.l.b16 %v2731
    %v2869 = vunpack.c.l.b16 %v2732
    %v2870 = vunpack.c.l.b16 %v2733
    %v2871 = vunpack.c.l.b16 %v2734
    %v2872 = vunpack.c.l.b16 %v2735
    %v2873 = vunpack.c.l.b16 %v2736
    %v2874 = vpack.c.b16 %v2859, %v2858
    %v2875 = vpack.c.b16 %v2861, %v2860
    %v2876 = vpack.c.b16 %v2863, %v2862
    %v2877 = vpack.c.b16 %v2865, %v2864
    %v2878 = vpack.c.b16 %v2867, %v2866
    %v2879 = vpack.c.b16 %v2869, %v2868
    %v2880 = vpack.c.b16 %v2871, %v2870
    %v2881 = vpack.c.b16 %v2873, %v2872
    %2890 = vmatprep.subr.bf16.mxu0 0
    %2891 = vmatpush1.bf16.msra.mxu0 %v2874
    %2892 = vmatprep.subr.bf16.mxu0 0
    %2893 = vmatpush1.bf16.msra.mxu0 %v2875
    %2894 = vmatprep.subr.bf16.mxu0 0
    %2895 = vmatpush1.bf16.msra.mxu0 %v2876
    %2896 = vmatprep.subr.bf16.mxu0 0
    %2897 = vmatpush1.bf16.msra.mxu0 %v2877
    %2898 = vmatprep.subr.bf16.mxu0 0
    %2899 = vmatpush1.bf16.msra.mxu0 %v2878
    %2900 = vmatprep.subr.bf16.mxu0 0
    %2901 = vmatpush1.bf16.msra.mxu0 %v2879
    %2902 = vmatprep.subr.bf16.mxu0 0
    %2903 = vmatpush1.bf16.msra.mxu0 %v2880
    %2904 = vmatprep.subr.bf16.mxu0 0
    %2905 = vmatpush1.bf16.msra.mxu0 %v2881
    %2906 = vmatprep.subr.bf16.mxu0 0
    %2907 = vmatpush1.bf16.msra.mxu0 0
    %2908 = vmatprep.subr.bf16.mxu0 0
    %2909 = vmatpush1.bf16.msra.mxu0 0
    %2910 = vmatprep.subr.bf16.mxu0 0
    %2911 = vmatpush1.bf16.msra.mxu0 0
    %2912 = vmatprep.subr.bf16.mxu0 0
    %2913 = vmatpush1.bf16.msra.mxu0 0
    %2914 = vmatprep.subr.bf16.mxu0 0
    %2915 = vmatpush1.bf16.msra.mxu0 0
    %2916 = vmatprep.subr.bf16.mxu0 0
    %2917 = vmatpush1.bf16.msra.mxu0 0
    %2918 = vmatprep.subr.bf16.mxu0 0
    %2919 = vmatpush1.bf16.msra.mxu0 0
    %2920 = vmatprep.subr.bf16.mxu0 0
    %2921 = vmatpush1.bf16.msra.mxu0 0
    %2922 = vmatprep.mubr.bf16.mxu0 0
    %2923 = vmatmul.mubr.bf16.gmra.mrb[0].mxu0 %v2715
    %v2924 = vpop.f32.mrb[0].mxu0
    %v2925 = vadd.f32 %v2837, %v2924
    %v2926 = vpop.f32.mrb[0].mxu0
    %v2927 = vpop.f32.mrb[0].mxu0
    %v2928 = vpop.f32.mrb[0].mxu0
    %2929 = vdwg.mxu0
    %s2930 = scalar_lea.vmem [#allocation6], 1280
    %v2931 = vld [vmem:[%s2930] sm:$0xf]
    %v2932 = vld [vmem:[%s2930 + $0x4] sm:$0xf]
    %v2933 = vld [vmem:[%s2930 + $0x8] sm:$0xf]
    %v2934 = vld [vmem:[%s2930 + $0xc] sm:$0xf]
    %v2935 = vld [vmem:[%s2930 + $0x10] sm:$0xf]
    %v2936 = vld [vmem:[%s2930 + $0x14] sm:$0xf]
    %v2937 = vld [vmem:[%s2930 + $0x18] sm:$0xf]
    %v2938 = vld [vmem:[%s2930 + $0x1c] sm:$0xf]
    %v2939 = vld [vmem:[%s2930 + $0x20] sm:$0xf]
    %v2940 = vld [vmem:[%s2930 + $0x24] sm:$0xf]
    %v2941 = vld [vmem:[%s2930 + $0x28] sm:$0xf]
    %v2942 = vld [vmem:[%s2930 + $0x2c] sm:$0xf]
    %v2943 = vld [vmem:[%s2930 + $0x30] sm:$0xf]
    %v2944 = vld [vmem:[%s2930 + $0x34] sm:$0xf]
    %v2945 = vld [vmem:[%s2930 + $0x38] sm:$0xf]
    %v2946 = vld [vmem:[%s2930 + $0x3c] sm:$0xf]
    %v2963 = vunpack.c.l.b16 %v2931
    %v2964 = vunpack.c.l.b16 %v2932
    %v2965 = vunpack.c.l.b16 %v2933
    %v2966 = vunpack.c.l.b16 %v2934
    %v2967 = vunpack.c.l.b16 %v2935
    %v2968 = vunpack.c.l.b16 %v2936
    %v2969 = vunpack.c.l.b16 %v2937
    %v2970 = vunpack.c.l.b16 %v2938
    %v2971 = vunpack.c.l.b16 %v2939
    %v2972 = vunpack.c.l.b16 %v2940
    %v2973 = vunpack.c.l.b16 %v2941
    %v2974 = vunpack.c.l.b16 %v2942
    %v2975 = vunpack.c.l.b16 %v2943
    %v2976 = vunpack.c.l.b16 %v2944
    %v2977 = vunpack.c.l.b16 %v2945
    %v2978 = vunpack.c.l.b16 %v2946
    %v2979 = vpack.c.b16 %v2964, %v2963
    %v2980 = vpack.c.b16 %v2966, %v2965
    %v2981 = vpack.c.b16 %v2968, %v2967
    %v2982 = vpack.c.b16 %v2970, %v2969
    %v2983 = vpack.c.b16 %v2972, %v2971
    %v2984 = vpack.c.b16 %v2974, %v2973
    %v2985 = vpack.c.b16 %v2976, %v2975
    %v2986 = vpack.c.b16 %v2978, %v2977
    %2995 = vmatprep.subr.bf16.mxu0 0
    %2996 = vmatpush1.bf16.msra.mxu0 %v2979
    %2997 = vmatprep.subr.bf16.mxu0 0
    %2998 = vmatpush1.bf16.msra.mxu0 %v2980
    %2999 = vmatprep.subr.bf16.mxu0 0
    %3000 = vmatpush1.bf16.msra.mxu0 %v2981
    %3001 = vmatprep.subr.bf16.mxu0 0
    %3002 = vmatpush1.bf16.msra.mxu0 %v2982
    %3003 = vmatprep.subr.bf16.mxu0 0
    %3004 = vmatpush1.bf16.msra.mxu0 %v2983
    %3005 = vmatprep.subr.bf16.mxu0 0
    %3006 = vmatpush1.bf16.msra.mxu0 %v2984
    %3007 = vmatprep.subr.bf16.mxu0 0
    %3008 = vmatpush1.bf16.msra.mxu0 %v2985
    %3009 = vmatprep.subr.bf16.mxu0 0
    %3010 = vmatpush1.bf16.msra.mxu0 %v2986
    %3011 = vmatprep.subr.bf16.mxu0 0
    %3012 = vmatpush1.bf16.msra.mxu0 0
    %3013 = vmatprep.subr.bf16.mxu0 0
    %3014 = vmatpush1.bf16.msra.mxu0 0
    %3015 = vmatprep.subr.bf16.mxu0 0
    %3016 = vmatpush1.bf16.msra.mxu0 0
    %3017 = vmatprep.subr.bf16.mxu0 0
    %3018 = vmatpush1.bf16.msra.mxu0 0
    %3019 = vmatprep.subr.bf16.mxu0 0
    %3020 = vmatpush1.bf16.msra.mxu0 0
    %3021 = vmatprep.subr.bf16.mxu0 0
    %3022 = vmatpush1.bf16.msra.mxu0 0
    %3023 = vmatprep.subr.bf16.mxu0 0
    %3024 = vmatpush1.bf16.msra.mxu0 0
    %3025 = vmatprep.subr.bf16.mxu0 0
    %3026 = vmatpush1.bf16.msra.mxu0 0
    %3027 = vmatprep.mubr.bf16.mxu0 0
    %3028 = vmatmul.mubr.bf16.gmra.mrb[0].mxu0 %v2719
    %v3029 = vpop.f32.mrb[0].mxu0
    %v3030 = vadd.f32 0.0, %v3029
    %v3031 = vpop.f32.mrb[0].mxu0
    %v3032 = vpop.f32.mrb[0].mxu0
    %v3033 = vpop.f32.mrb[0].mxu0
    %3034 = vdwg.mxu0
    %v3035 = vadd.f32 %v2925, %v3030
    %v3036 = vrot.slane %v3035, 4
    %v3037 = vadd.f32 %v3035, %v3036
    %v3038 = vrot.slane %v3037, 2
    %v3039 = vadd.f32 %v3037, %v3038
    %v3040 = vrot.slane %v3039, 1
    %v3041 = vadd.f32 %v3039, %v3040
    %v3042 = vmul.f32 %v3041, 0.125
    %v3043 = vsub.f32 %v3035, %v3042
    %v3044 = vmul.f32 %v3043, %v3043
    %v3045 = vrot.slane %v3044, 4
    %v3046 = vadd.f32 %v3044, %v3045
    %v3047 = vrot.slane %v3046, 2
    %v3048 = vadd.f32 %v3046, %v3047
    %v3049 = vrot.slane %v3048, 1
    %v3050 = vadd.f32 %v3048, %v3049
    %v3051 = vmul.f32 %v3050, 0.125
    %s3052 = scalar_lea.vmem %s2, 6
    %v3053 = vld [vmem:[%s3052] sm:$0x1]
    %v3054 = vadd.f32 %v3051, 1e-05
    %v3055 = vrsqrt.pop %v3054
    %v3056 = vmul.f32 %v3053, %v3055
    %v3058 = vlaneseq
    %v3059 = vshrl.u32 %v3058, 7
    %v3060 = vsub.s32 0, %v3059
    %v3061 = vrot.slane %v3056, %v3060
    %v3063 = vmul.f32 %v3043, %v3061
    %s3064 = scalar_lea.vmem [#allocation8], 6
    %v3065 = vld [vmem:[%s3064] sm:$0x1]
    %v3067 = vlaneseq
    %v3068 = vshrl.u32 %v3067, 7
    %v3069 = vsub.s32 0, %v3068
    %v3070 = vrot.slane %v3065, %v3069
    %v3072 = vadd.f32 %v3063, %v3070
    %3073 = vst [vmem:[#allocation2] sm:$0xff] %v2317
    %3074 = vst [vmem:[#allocation2 + $0x8] sm:$0xff] %v2318
    %v3075 = vld [vmem:[#allocation2] ss:$2 sm:$0xff]
    %3076 = vrot.lane.b32.xlu0 %v3075, 16
    %v3077 = vpop.permute.xlu0 %3076
    %v3078 = vadd.f32 %v3072, %v3077
    %v3079 = vmax.f32 %v3078, 0.0
    %v3081 = vcombine.high %v3079, %v3079
    %vm3083 = vcmask 1043456
    %v3084 = vsel %vm3083, %v3079, 0.0
    %v3085 = vrot.slane %v3084, 4
    %v3086 = vadd.f32 %v3084, %v3085
    %v3087 = vrot.slane %v3086, 2
    %v3088 = vadd.f32 %v3086, %v3087
    %v3089 = vrot.slane %v3088, 1
    %v3090 = vadd.f32 %v3088, %v3089
    %v3091 = vsel %vm3083, %v3081, 0.0
    %v3092 = vrot.slane %v3091, 4
    %v3093 = vadd.f32 %v3091, %v3092
    %v3094 = vrot.slane %v3093, 2
    %v3095 = vadd.f32 %v3093, %v3094
    %v3096 = vrot.slane %v3095, 1
    %v3097 = vadd.f32 %v3095, %v3096
    %v3098 = vrcp.pop 4.0
    %v3099 = vmul.f32 %v3090, %v3098
    %v3100 = vmul.f32 %v3097, %v3098
    %vm3103 = vcmask 1041409
    %v3104 = vsel %vm3103, %v3100, %v3099
    %3106 = vst [vmem:[#allocation9] sm:$0x3] %v3104
    // Predicated region
    $region30: #{tpu_custom_call.1} parent=1 // pred_check
      _
    $region31: #{tpu_custom_call.1} parent=1 // pred_check_branch
      %3108 = sbr.rel (0) target = $region33
    $region32: #{tpu_custom_call.1} parent=1 // pred_region
      %s3110 = ssub.s32 32, 32
      %3111 = vsyncadd [#allocation5], %s3110
      %s3113 = sshll.u32 [#allocation9], 4
      %s3114 = int_to_ptr.vmem [resolvable:$true] %s3113
      %3116 = dma.vmem_to_hbm [thread:$0]  %s3114, 32, %s4, [#allocation5]
    $region33: #{tpu_custom_call.1} parent=1 // pred_fallthru
      _
    // Predicated region
    $region34: #{tpu_custom_call.1} parent=1 // pred_check
      _
    $region35: #{tpu_custom_call.1} parent=1 // pred_check_branch
      %3118 = sbr.rel (0) target = $region37
    $region36: #{tpu_custom_call.1} parent=1 // pred_region
      %3119 = dma.done [#allocation5], 32
    $region37: #{tpu_custom_call.1} parent=1 // pred_fallthru
      _
    %3120 = vsyncpa [#allocation4], 1
    %3121 = vsyncpa [#allocation7], 1
    %3122 = vsyncpa [#allocation5], 1

</llo_original>
